<compile_context>
chip_gen: v5e
topology: v5e:2x2
jax: 0.10.0
libtpu: 0.0.40
codegen_flags: <defaults>
</compile_context>

<pallas_src>
import math

import numpy as np
import jax
import jax.numpy as jnp
from jax.experimental import pallas as pl
from jax.experimental.pallas import tpu as pltpu


# --------------------------------------------------------------------------
# Position-embedding column tables (precomputed once, hoisted out of kernel)
# --------------------------------------------------------------------------
def _pos_emb_table(n_dims, d_model, temperature=10000.0, scale=None):
    """Tables so the in-kernel embedding is sin(coords @ w_rows + phase).
    Matches PyTorch PositionEmbedding exactly (cos(x) == sin(x + pi/2);
    padding columns get weight 0 and phase 0, hence sin(0) == 0)."""
    if scale is None:
        scale = 1.0
    scale = scale * 2.0 * math.pi            # reference always multiplies by 2*pi
    npf = d_model // n_dims // 2 * 2         # num_pos_feats
    assert npf > 0, "d_model too small for n_dims"
    col = np.arange(d_model)
    k = col % npf
    d_idx = col // npf
    valid = col < npf * n_dims
    inv_dim_t = np.power(float(temperature), -(2.0 * (k // 2)) / float(npf))
    tab = np.zeros((n_dims + 1, d_model), np.float32)
    for d in range(n_dims):
        tab[d] = np.where(valid & (d_idx == d), scale * inv_dim_t, 0.0)
    tab[n_dims] = np.where(valid & (k % 2 == 1), np.pi / 2.0, 0.0)   # cos phase
    return jnp.asarray(tab)


def _embed(coords_flat, tab, n_dims):
    """coords_flat (R, n_dims) f32, tab (n_dims+1, C) f32 -> (R, C) f32."""
    divided = tab[n_dims:n_dims + 1, :]                 # phase row, (1, C)
    for d in range(n_dims):                             # static, tiny
        divided = divided + coords_flat[:, d:d + 1] * tab[d:d + 1, :]
    return jnp.sin(divided)


# --------------------------------------------------------------------------
# Fused IPOT forward kernel (Bt batch elements per grid step)
# --------------------------------------------------------------------------
def _make_ipot_kernel(input_dims, query_dims):
    bf16 = jnp.bfloat16
    f32 = jnp.float32

    def kernel(coords_ref, neg_mask_ref, qcoords_ref,
               enc_tab_ref, dec_tab_ref, q_enc_ref,
               enc_wk_ref, enc_wv_ref,
               proc_w1_ref, proc_b1_ref, proc_w2_ref, proc_b2_ref,
               dec_wq_ref, dec_wk_ref, dec_wv_ref,
               out_w_ref, out_b_ref,
               out_ref, latent_ref, feature_ref, attn_ref):
        Bt, N, _ = coords_ref.shape
        _, M, _ = qcoords_ref.shape
        L, D = q_enc_ref.shape
        O = out_w_ref.shape[1]
        inv_sqrt_d = 1.0 / math.sqrt(D)

        # ---- 1) position embeddings (single fused sin; tables precomputed) ----
        enc_in = _embed(coords_ref[...].reshape(Bt * N, input_dims),
                        enc_tab_ref[...], input_dims)               # (Bt*N, C) f32
        dec_q = _embed(qcoords_ref[...].reshape(Bt * M, query_dims),
                       dec_tab_ref[...], query_dims)                # (Bt*M, Cq) f32

        # ---- 2) encoder: induced latents attend to the masked inputs ----------
        enc_in_b = enc_in.astype(bf16)
        k = jnp.dot(enc_in_b, enc_wk_ref[...], preferred_element_type=f32)
        v = jnp.dot(enc_in_b, enc_wv_ref[...], preferred_element_type=f32)
        k = k.reshape(Bt, N, D).astype(bf16)
        v = v.reshape(Bt, N, D).astype(bf16)
        qe = jnp.broadcast_to(q_enc_ref[...], (Bt, L, D))   # pre-scaled, bf16, hoisted
        scores = jnp.einsum('bld,bnd->bln', qe, k, preferred_element_type=f32)
        scores = scores + neg_mask_ref[...]                 # -inf on padded keys
        # NOTE: a fully padded row yields NaN here, matching PyTorch MHA semantics.
        scores = scores - jnp.max(scores, axis=-1, keepdims=True)
        e = jnp.exp(scores)
        attn_e = e * pl.reciprocal(jnp.sum(e, axis=-1, keepdims=True), approx=True)
        lat = jnp.einsum('bln,bnd->bld', attn_e.astype(bf16), v,
                         preferred_element_type=f32)        # (Bt, L, D)

        # ---- 3) processor: per-latent MLP (GELU) -------------------------------
        lat_flat = lat.reshape(Bt * L, D)
        h = jnp.dot(lat_flat.astype(bf16), proc_w1_ref[...],
                    preferred_element_type=f32) + proc_b1_ref[...]
        h = jax.nn.gelu(h)
        latent_flat = jnp.dot(h.astype(bf16), proc_w2_ref[...],
                              preferred_element_type=f32) + proc_b2_ref[...]
        latent_ref[...] = latent_flat.reshape(Bt, L, D)

        # ---- 4) decoder: queries attend to the latent --------------------------
        qd = (jnp.dot(dec_q.astype(bf16), dec_wq_ref[...],
                      preferred_element_type=f32) * inv_sqrt_d)
        qd = qd.reshape(Bt, M, D).astype(bf16)
        latent_b = latent_flat.astype(bf16)
        kd = jnp.dot(latent_b, dec_wk_ref[...],
                     preferred_element_type=f32).reshape(Bt, L, D).astype(bf16)
        vd = jnp.dot(latent_b, dec_wv_ref[...],
                     preferred_element_type=f32).reshape(Bt, L, D).astype(bf16)
        sc = jnp.einsum('bmd,bld->bml', qd, kd, preferred_element_type=f32)
        sc = sc - jnp.max(sc, axis=-1, keepdims=True)
        ed = jnp.exp(sc)
        attn_d = ed / jnp.sum(ed, axis=-1, keepdims=True)    # exact (returned)
        feature = jnp.einsum('bml,bld->bmd', attn_d.astype(bf16), vd,
                             preferred_element_type=f32)     # (Bt, M, D)
        feature_ref[...] = feature
        attn_ref[...] = attn_d

        # ---- 5) output projection ----------------------------------------------
        out = jnp.dot(feature.reshape(Bt * M, D).astype(bf16), out_w_ref[...],
                      preferred_element_type=f32) + out_b_ref[...]
        out_ref[...] = out.reshape(Bt, M, O)

    return kernel


# --------------------------------------------------------------------------
# Parameter init + one-time prep + forward wrapper
# --------------------------------------------------------------------------
def init_params(key, input_dims, input_channels, query_dims, query_channels,
                num_latents, latent_dim, hidden_dim, out_channels):
    ks = jax.random.split(key, 12)
    s = 0.02
    return {
        "latent_init": s * jax.random.normal(ks[0], (num_latents, latent_dim), jnp.float32),
        "enc_wq": s * jax.random.normal(ks[1], (latent_dim, latent_dim), jnp.float32),
        "enc_wk": s * jax.random.normal(ks[2], (input_channels, latent_dim), jnp.float32),
        "enc_wv": s * jax.random.normal(ks[3], (input_channels, latent_dim), jnp.float32),
        "proc_w1": s * jax.random.normal(ks[4], (latent_dim, hidden_dim), jnp.float32),
        "proc_b1": jnp.zeros((1, hidden_dim), jnp.float32),
        "proc_w2": s * jax.random.normal(ks[5], (hidden_dim, latent_dim), jnp.float32),
        "proc_b2": jnp.zeros((1, latent_dim), jnp.float32),
        "dec_wq": s * jax.random.normal(ks[6], (query_channels, latent_dim), jnp.float32),
        "dec_wk": s * jax.random.normal(ks[7], (latent_dim, latent_dim), jnp.float32),
        "dec_wv": s * jax.random.normal(ks[8], (latent_dim, latent_dim), jnp.float32),
        "out_w": s * jax.random.normal(ks[9], (latent_dim, out_channels), jnp.float32),
        "out_b": jnp.zeros((1, out_channels), jnp.float32),
    }


def prepare_params(params, input_dims, input_channels, query_dims, query_channels,
                   temperature=10000.0, scale=None):
    """One-time prep: bf16 weight casts, hoisted batch-invariant encoder Q
    projection, and the pos-embedding column tables."""
    bf = lambda x: jnp.asarray(x, jnp.bfloat16)
    _, D = params["latent_init"].shape
    q_enc = (params["latent_init"] @ params["enc_wq"]) * (1.0 / math.sqrt(D))
    return {
        "enc_tab": _pos_emb_table(input_dims, input_channels, temperature, scale),
        "dec_tab": _pos_emb_table(query_dims, query_channels, temperature, scale),
        "q_enc": bf(q_enc),
        "enc_wk": bf(params["enc_wk"]), "enc_wv": bf(params["enc_wv"]),
        "proc_w1": bf(params["proc_w1"]), "proc_b1": jnp.asarray(params["proc_b1"], jnp.float32),
        "proc_w2": bf(params["proc_w2"]), "proc_b2": jnp.asarray(params["proc_b2"], jnp.float32),
        "dec_wq": bf(params["dec_wq"]), "dec_wk": bf(params["dec_wk"]),
        "dec_wv": bf(params["dec_wv"]),
        "out_w": bf(params["out_w"]), "out_b": jnp.asarray(params["out_b"], jnp.float32),
    }


def _pick_batch_block(b):
    """Largest small divisor Bt of B that still leaves >= 2 grid steps
    (keeps both v7x TensorCores busy while amortizing per-step overhead)."""
    if b <= 1:
        return 1
    for bt in (8, 4, 2, 1):
        if b % bt == 0 and b // bt >= 2:
            return bt
    return 1


def ipot_forward(prepped, inputs, key_padding_mask, query):
    B, N, input_dims = inputs.shape
    _, M, query_dims = query.shape
    L, D = prepped["q_enc"].shape
    O = prepped["out_w"].shape[1]

    Bt = _pick_batch_block(B)
    assert B % Bt == 0
    grid = (B // Bt,)

    # Additive key-padding mask (True == padded key, as in PyTorch MHA).
    neg_mask = jnp.where(key_padding_mask, float("-inf"), 0.0).astype(jnp.float32)
    neg_mask = neg_mask[:, None, :]                              # (B, 1, N)

    kernel = _make_ipot_kernel(input_dims, query_dims)

    def full2d(arr):
        return pl.BlockSpec(arr.shape, lambda b: (0, 0))

    in_specs = [
        pl.BlockSpec((Bt, N, input_dims), lambda b: (b, 0, 0)),   # input coords
        pl.BlockSpec((Bt, 1, N), lambda b: (b, 0, 0)),            # additive mask
        pl.BlockSpec((Bt, M, query_dims), lambda b: (b, 0, 0)),   # query coords
        full2d(prepped["enc_tab"]), full2d(prepped["dec_tab"]),
        full2d(prepped["q_enc"]),
        full2d(prepped["enc_wk"]), full2d(prepped["enc_wv"]),
        full2d(prepped["proc_w1"]), full2d(prepped["proc_b1"]),
        full2d(prepped["proc_w2"]), full2d(prepped["proc_b2"]),
        full2d(prepped["dec_wq"]), full2d(prepped["dec_wk"]), full2d(prepped["dec_wv"]),
        full2d(prepped["out_w"]), full2d(prepped["out_b"]),
    ]
    out_shapes = (
        jax.ShapeDtypeStruct((B, M, O), jnp.float32),   # output
        jax.ShapeDtypeStruct((B, L, D), jnp.float32),   # latent
        jax.ShapeDtypeStruct((B, M, D), jnp.float32),   # feature
        jax.ShapeDtypeStruct((B, M, L), jnp.float32),   # attn_weights
    )
    out_specs = (
        pl.BlockSpec((Bt, M, O), lambda b: (b, 0, 0)),
        pl.BlockSpec((Bt, L, D), lambda b: (b, 0, 0)),
        pl.BlockSpec((Bt, M, D), lambda b: (b, 0, 0)),
        pl.BlockSpec((Bt, M, L), lambda b: (b, 0, 0)),
    )

    output, latent, feature, attn = pl.pallas_call(
        kernel,
        out_shape=out_shapes,
        grid=grid,
        in_specs=in_specs,
        out_specs=out_specs,
        compiler_params=pltpu.CompilerParams(
            dimension_semantics=("parallel",)),
    )(
        inputs.astype(jnp.float32), neg_mask, query.astype(jnp.float32),
        prepped["enc_tab"], prepped["dec_tab"], prepped["q_enc"],
        prepped["enc_wk"], prepped["enc_wv"],
        prepped["proc_w1"], prepped["proc_b1"],
        prepped["proc_w2"], prepped["proc_b2"],
        prepped["dec_wq"], prepped["dec_wk"], prepped["dec_wv"],
        prepped["out_w"], prepped["out_b"],
    )
    return {"output": output, "latent": latent,
            "feature": feature, "attn_weights": attn}


if __name__ == "__main__":
    # small, deterministic example
    B = 2
    N = 64           # number of input points
    M = 16           # number of query points
    input_dims = 2
    query_dims = 2
    input_channels = 32
    query_channels = 32
    num_latents = 8
    latent_dim = 32
    hidden_dim = 64
    out_channels = 4

    key = jax.random.PRNGKey(0)
    k_in, k_q, k_p = jax.random.split(key, 3)

    inputs = jax.random.uniform(k_in, (B, N, input_dims), jnp.float32)   # coords in [0,1)
    query = jax.random.uniform(k_q, (B, M, query_dims), jnp.float32)
    # True == padded key (ignored), PyTorch key_padding_mask convention
    col = jnp.arange(N)
    key_padding_mask = jnp.stack([col >= 56, col >= 60], axis=0)         # (B, N) bool

    params = init_params(k_p, input_dims, input_channels, query_dims, query_channels,
                         num_latents, latent_dim, hidden_dim, out_channels)
    prepped = prepare_params(params, input_dims, input_channels,
                             query_dims, query_channels)                  # one-time prep

    fwd = jax.jit(ipot_forward)
    out = fwd(prepped, inputs, key_padding_mask, query)
    jax.block_until_ready(out)

    assert out["output"].shape == (B, M, out_channels)
    assert out["latent"].shape == (B, num_latents, latent_dim)
    assert out["feature"].shape == (B, M, latent_dim)
    assert out["attn_weights"].shape == (B, M, num_latents)
    assert bool(jnp.all(jnp.isfinite(out["output"])))
    assert bool(jnp.all(jnp.isfinite(out["attn_weights"])))
    # decoder attention rows must sum to 1 (exact softmax is returned)
    assert bool(jnp.allclose(jnp.sum(out["attn_weights"], axis=-1), 1.0, atol=1e-5))
    print("KERNEL_OK")
</pallas_src>

<mosaic_0001>
module attributes {stable_mosaic.version = 11 : i64} {
  func.func @kernel(%arg0: i32, %arg1: memref<1x64x2xf32, #tpu.memory_space<vmem>>, %arg2: memref<1x1x64xf32, #tpu.memory_space<vmem>>, %arg3: memref<1x16x2xf32, #tpu.memory_space<vmem>>, %arg4: memref<3x32xf32, #tpu.memory_space<vmem>>, %arg5: memref<3x32xf32, #tpu.memory_space<vmem>>, %arg6: memref<8x32xbf16, #tpu.memory_space<vmem>>, %arg7: memref<32x32xbf16, #tpu.memory_space<vmem>>, %arg8: memref<32x32xbf16, #tpu.memory_space<vmem>>, %arg9: memref<32x64xbf16, #tpu.memory_space<vmem>>, %arg10: memref<1x64xf32, #tpu.memory_space<vmem>>, %arg11: memref<64x32xbf16, #tpu.memory_space<vmem>>, %arg12: memref<1x32xf32, #tpu.memory_space<vmem>>, %arg13: memref<32x32xbf16, #tpu.memory_space<vmem>>, %arg14: memref<32x32xbf16, #tpu.memory_space<vmem>>, %arg15: memref<32x32xbf16, #tpu.memory_space<vmem>>, %arg16: memref<32x4xbf16, #tpu.memory_space<vmem>>, %arg17: memref<1x4xf32, #tpu.memory_space<vmem>>, %arg18: memref<1x16x4xf32, #tpu.memory_space<vmem>>, %arg19: memref<1x8x32xf32, #tpu.memory_space<vmem>>, %arg20: memref<1x16x32xf32, #tpu.memory_space<vmem>>, %arg21: memref<1x16x8xf32, #tpu.memory_space<vmem>>) attributes {dimension_semantics = [#tpu.dimension_semantics<parallel>], iteration_bounds = array<i64: 2>, scalar_prefetch = 0 : i64, scratch_operands = 0 : i64, tpu.core_type = #tpu.core_type<tc>, window_params = [{transform_indices = @transform_0, window_bounds = array<i64: 1, 64, 2>}, {transform_indices = @transform_1, window_bounds = array<i64: 1, 1, 64>}, {transform_indices = @transform_2, window_bounds = array<i64: 1, 16, 2>}, {pipeline_mode = #tpu.pipeline_mode<synchronous>, transform_indices = @transform_3, window_bounds = array<i64: 3, 32>}, {pipeline_mode = #tpu.pipeline_mode<synchronous>, transform_indices = @transform_4, window_bounds = array<i64: 3, 32>}, {pipeline_mode = #tpu.pipeline_mode<synchronous>, transform_indices = @transform_5, window_bounds = array<i64: 8, 32>}, {pipeline_mode = #tpu.pipeline_mode<synchronous>, transform_indices = @transform_6, window_bounds = array<i64: 32, 32>}, {pipeline_mode = #tpu.pipeline_mode<synchronous>, transform_indices = @transform_7, window_bounds = array<i64: 32, 32>}, {pipeline_mode = #tpu.pipeline_mode<synchronous>, transform_indices = @transform_8, window_bounds = array<i64: 32, 64>}, {pipeline_mode = #tpu.pipeline_mode<synchronous>, transform_indices = @transform_9, window_bounds = array<i64: 1, 64>}, {pipeline_mode = #tpu.pipeline_mode<synchronous>, transform_indices = @transform_10, window_bounds = array<i64: 64, 32>}, {pipeline_mode = #tpu.pipeline_mode<synchronous>, transform_indices = @transform_11, window_bounds = array<i64: 1, 32>}, {pipeline_mode = #tpu.pipeline_mode<synchronous>, transform_indices = @transform_12, window_bounds = array<i64: 32, 32>}, {pipeline_mode = #tpu.pipeline_mode<synchronous>, transform_indices = @transform_13, window_bounds = array<i64: 32, 32>}, {pipeline_mode = #tpu.pipeline_mode<synchronous>, transform_indices = @transform_14, window_bounds = array<i64: 32, 32>}, {pipeline_mode = #tpu.pipeline_mode<synchronous>, transform_indices = @transform_15, window_bounds = array<i64: 32, 4>}, {pipeline_mode = #tpu.pipeline_mode<synchronous>, transform_indices = @transform_16, window_bounds = array<i64: 1, 4>}, {transform_indices = @transform_17, window_bounds = array<i64: 1, 16, 4>}, {transform_indices = @transform_18, window_bounds = array<i64: 1, 8, 32>}, {transform_indices = @transform_19, window_bounds = array<i64: 1, 16, 32>}, {transform_indices = @transform_20, window_bounds = array<i64: 1, 16, 8>}]} {
    %c0 = arith.constant 0 : index
    %c0_0 = arith.constant 0 : index
    %c0_1 = arith.constant 0 : index
    %0 = vector.load %arg1[%c0, %c0_0, %c0_1] : memref<1x64x2xf32, #tpu.memory_space<vmem>>, vector<1x64x2xf32>
    %1 = vector.shape_cast %0 : vector<1x64x2xf32> to vector<64x2xf32>
    %c0_2 = arith.constant 0 : index
    %c0_3 = arith.constant 0 : index
    %2 = vector.load %arg4[%c0_2, %c0_3] : memref<3x32xf32, #tpu.memory_space<vmem>>, vector<3x32xf32>
    %3 = vector.extract_strided_slice %2 {offsets = [2, 0], sizes = [1, 32], strides = [1, 1]} : vector<3x32xf32> to vector<1x32xf32>
    %4 = vector.extract_strided_slice %1 {offsets = [0, 0], sizes = [64, 1], strides = [1, 1]} : vector<64x2xf32> to vector<64x1xf32>
    %5 = vector.extract_strided_slice %2 {offsets = [0, 0], sizes = [1, 32], strides = [1, 1]} : vector<3x32xf32> to vector<1x32xf32>
    %6 = vector.broadcast %4 : vector<64x1xf32> to vector<64x32xf32>
    %7 = vector.broadcast %5 : vector<1x32xf32> to vector<64x32xf32>
    %8 = arith.mulf %6, %7 : vector<64x32xf32>
    %9 = vector.broadcast %3 : vector<1x32xf32> to vector<64x32xf32>
    %10 = arith.addf %9, %8 : vector<64x32xf32>
    %11 = vector.extract_strided_slice %1 {offsets = [0, 1], sizes = [64, 1], strides = [1, 1]} : vector<64x2xf32> to vector<64x1xf32>
    %12 = vector.extract_strided_slice %2 {offsets = [1, 0], sizes = [1, 32], strides = [1, 1]} : vector<3x32xf32> to vector<1x32xf32>
    %13 = vector.broadcast %11 : vector<64x1xf32> to vector<64x32xf32>
    %14 = vector.broadcast %12 : vector<1x32xf32> to vector<64x32xf32>
    %15 = arith.mulf %13, %14 : vector<64x32xf32>
    %16 = arith.addf %10, %15 : vector<64x32xf32>
    %17 = math.sin %16 : vector<64x32xf32>
    %c0_4 = arith.constant 0 : index
    %c0_5 = arith.constant 0 : index
    %c0_6 = arith.constant 0 : index
    %18 = vector.load %arg3[%c0_4, %c0_5, %c0_6] : memref<1x16x2xf32, #tpu.memory_space<vmem>>, vector<1x16x2xf32>
    %19 = vector.shape_cast %18 : vector<1x16x2xf32> to vector<16x2xf32>
    %c0_7 = arith.constant 0 : index
    %c0_8 = arith.constant 0 : index
    %20 = vector.load %arg5[%c0_7, %c0_8] : memref<3x32xf32, #tpu.memory_space<vmem>>, vector<3x32xf32>
    %21 = vector.extract_strided_slice %20 {offsets = [2, 0], sizes = [1, 32], strides = [1, 1]} : vector<3x32xf32> to vector<1x32xf32>
    %22 = vector.extract_strided_slice %19 {offsets = [0, 0], sizes = [16, 1], strides = [1, 1]} : vector<16x2xf32> to vector<16x1xf32>
    %23 = vector.extract_strided_slice %20 {offsets = [0, 0], sizes = [1, 32], strides = [1, 1]} : vector<3x32xf32> to vector<1x32xf32>
    %24 = vector.broadcast %22 : vector<16x1xf32> to vector<16x32xf32>
    %25 = vector.broadcast %23 : vector<1x32xf32> to vector<16x32xf32>
    %26 = arith.mulf %24, %25 : vector<16x32xf32>
    %27 = vector.broadcast %21 : vector<1x32xf32> to vector<16x32xf32>
    %28 = arith.addf %27, %26 : vector<16x32xf32>
    %29 = vector.extract_strided_slice %19 {offsets = [0, 1], sizes = [16, 1], strides = [1, 1]} : vector<16x2xf32> to vector<16x1xf32>
    %30 = vector.extract_strided_slice %20 {offsets = [1, 0], sizes = [1, 32], strides = [1, 1]} : vector<3x32xf32> to vector<1x32xf32>
    %31 = vector.broadcast %29 : vector<16x1xf32> to vector<16x32xf32>
    %32 = vector.broadcast %30 : vector<1x32xf32> to vector<16x32xf32>
    %33 = arith.mulf %31, %32 : vector<16x32xf32>
    %34 = arith.addf %28, %33 : vector<16x32xf32>
    %35 = math.sin %34 : vector<16x32xf32>
    %36 = arith.truncf %17 : vector<64x32xf32> to vector<64x32xbf16>
    %c0_9 = arith.constant 0 : index
    %c0_10 = arith.constant 0 : index
    %37 = vector.load %arg7[%c0_9, %c0_10] : memref<32x32xbf16, #tpu.memory_space<vmem>>, vector<32x32xbf16>
    %cst = arith.constant dense<0.000000e+00> : vector<64x32xf32>
    %38 = tpu.matmul %36, %37, %cst {dimension_numbers = #tpu.dot_dimension_numbers<[1], [0], [0], [1], [0, 0, 1, 1], [], []>} : vector<64x32xbf16>, vector<32x32xbf16>, vector<64x32xf32> -> vector<64x32xf32>
    %c0_11 = arith.constant 0 : index
    %c0_12 = arith.constant 0 : index
    %39 = vector.load %arg8[%c0_11, %c0_12] : memref<32x32xbf16, #tpu.memory_space<vmem>>, vector<32x32xbf16>
    %cst_13 = arith.constant dense<0.000000e+00> : vector<64x32xf32>
    %40 = tpu.matmul %36, %39, %cst_13 {dimension_numbers = #tpu.dot_dimension_numbers<[1], [0], [0], [1], [0, 0, 1, 1], [], []>} : vector<64x32xbf16>, vector<32x32xbf16>, vector<64x32xf32> -> vector<64x32xf32>
    %41 = vector.shape_cast %38 : vector<64x32xf32> to vector<1x64x32xf32>
    %42 = arith.truncf %41 : vector<1x64x32xf32> to vector<1x64x32xbf16>
    %43 = vector.shape_cast %40 : vector<64x32xf32> to vector<1x64x32xf32>
    %44 = arith.truncf %43 : vector<1x64x32xf32> to vector<1x64x32xbf16>
    %c0_14 = arith.constant 0 : index
    %c0_15 = arith.constant 0 : index
    %45 = vector.load %arg6[%c0_14, %c0_15] : memref<8x32xbf16, #tpu.memory_space<vmem>>, vector<8x32xbf16>
    %46 = vector.shape_cast %45 : vector<8x32xbf16> to vector<1x8x32xbf16>
    "tpu.trace_start"() <{level = 10 : i32, message = "bld,bnd->bln"}> : () -> ()
    %cst_16 = arith.constant dense<0.000000e+00> : vector<1x8x64xf32>
    %47 = tpu.matmul %46, %42, %cst_16 {dimension_numbers = #tpu.dot_dimension_numbers<[2], [2], [1], [1], [0, 0, 0, 1, 1, 1], [0], [0]>} : vector<1x8x32xbf16>, vector<1x64x32xbf16>, vector<1x8x64xf32> -> vector<1x8x64xf32>
    "tpu.trace_stop"() : () -> ()
    %c0_17 = arith.constant 0 : index
    %c0_18 = arith.constant 0 : index
    %c0_19 = arith.constant 0 : index
    %48 = vector.load %arg2[%c0_17, %c0_18, %c0_19] : memref<1x1x64xf32, #tpu.memory_space<vmem>>, vector<1x1x64xf32>
    %49 = vector.broadcast %48 : vector<1x1x64xf32> to vector<1x8x64xf32>
    %50 = arith.addf %47, %49 : vector<1x8x64xf32>
    %cst_20 = arith.constant dense<0xFF800000> : vector<1x8xf32>
    %51 = vector.multi_reduction <maximumf>, %50, %cst_20 [2] : vector<1x8x64xf32> to vector<1x8xf32>
    %52 = vector.shape_cast %51 : vector<1x8xf32> to vector<1x8x1xf32>
    %53 = vector.broadcast %52 : vector<1x8x1xf32> to vector<1x8x64xf32>
    %54 = arith.subf %50, %53 : vector<1x8x64xf32>
    %55 = math.exp %54 : vector<1x8x64xf32>
    %cst_21 = arith.constant dense<0.000000e+00> : vector<1x8xf32>
    %56 = vector.multi_reduction <add>, %55, %cst_21 [2] : vector<1x8x64xf32> to vector<1x8xf32>
    %57 = vector.shape_cast %56 : vector<1x8xf32> to vector<1x8x1xf32>
    %58 = tpu.reciprocal %57 {approx = true} : vector<1x8x1xf32> -> vector<1x8x1xf32>
    %59 = vector.broadcast %58 : vector<1x8x1xf32> to vector<1x8x64xf32>
    %60 = arith.mulf %55, %59 : vector<1x8x64xf32>
    %61 = arith.truncf %60 : vector<1x8x64xf32> to vector<1x8x64xbf16>
    "tpu.trace_start"() <{level = 10 : i32, message = "bln,bnd->bld"}> : () -> ()
    %cst_22 = arith.constant dense<0.000000e+00> : vector<1x8x32xf32>
    %62 = tpu.matmul %61, %44, %cst_22 {dimension_numbers = #tpu.dot_dimension_numbers<[2], [1], [1], [2], [0, 0, 0, 1, 1, 2], [0], [0]>} : vector<1x8x64xbf16>, vector<1x64x32xbf16>, vector<1x8x32xf32> -> vector<1x8x32xf32>
    "tpu.trace_stop"() : () -> ()
    %63 = vector.shape_cast %62 : vector<1x8x32xf32> to vector<8x32xf32>
    %64 = arith.truncf %63 : vector<8x32xf32> to vector<8x32xbf16>
    %c0_23 = arith.constant 0 : index
    %c0_24 = arith.constant 0 : index
    %65 = vector.load %arg9[%c0_23, %c0_24] : memref<32x64xbf16, #tpu.memory_space<vmem>>, vector<32x64xbf16>
    %cst_25 = arith.constant dense<0.000000e+00> : vector<8x64xf32>
    %66 = tpu.matmul %64, %65, %cst_25 {dimension_numbers = #tpu.dot_dimension_numbers<[1], [0], [0], [1], [0, 0, 1, 1], [], []>} : vector<8x32xbf16>, vector<32x64xbf16>, vector<8x64xf32> -> vector<8x64xf32>
    %c0_26 = arith.constant 0 : index
    %c0_27 = arith.constant 0 : index
    %67 = vector.load %arg10[%c0_26, %c0_27] : memref<1x64xf32, #tpu.memory_space<vmem>>, vector<1x64xf32>
    %68 = vector.broadcast %67 : vector<1x64xf32> to vector<8x64xf32>
    %69 = arith.addf %66, %68 : vector<8x64xf32>
    %70 = arith.mulf %69, %69 : vector<8x64xf32>
    %71 = arith.mulf %69, %70 : vector<8x64xf32>
    %cst_28 = arith.constant 4.471500e-02 : f32
    %72 = vector.broadcast %cst_28 : f32 to vector<8x64xf32>
    %73 = arith.mulf %72, %71 : vector<8x64xf32>
    %74 = arith.addf %69, %73 : vector<8x64xf32>
    %cst_29 = arith.constant 0.797884583 : f32
    %75 = vector.broadcast %cst_29 : f32 to vector<8x64xf32>
    %76 = arith.mulf %75, %74 : vector<8x64xf32>
    %77 = math.tanh %76 : vector<8x64xf32>
    %cst_30 = arith.constant 1.000000e+00 : f32
    %78 = vector.broadcast %cst_30 : f32 to vector<8x64xf32>
    %79 = arith.addf %78, %77 : vector<8x64xf32>
    %cst_31 = arith.constant 5.000000e-01 : f32
    %80 = vector.broadcast %cst_31 : f32 to vector<8x64xf32>
    %81 = arith.mulf %80, %79 : vector<8x64xf32>
    %82 = arith.mulf %69, %81 : vector<8x64xf32>
    %83 = arith.truncf %82 : vector<8x64xf32> to vector<8x64xbf16>
    %c0_32 = arith.constant 0 : index
    %c0_33 = arith.constant 0 : index
    %84 = vector.load %arg11[%c0_32, %c0_33] : memref<64x32xbf16, #tpu.memory_space<vmem>>, vector<64x32xbf16>
    %cst_34 = arith.constant dense<0.000000e+00> : vector<8x32xf32>
    %85 = tpu.matmul %83, %84, %cst_34 {dimension_numbers = #tpu.dot_dimension_numbers<[1], [0], [0], [1], [0, 0, 1, 1], [], []>} : vector<8x64xbf16>, vector<64x32xbf16>, vector<8x32xf32> -> vector<8x32xf32>
    %c0_35 = arith.constant 0 : index
    %c0_36 = arith.constant 0 : index
    %86 = vector.load %arg12[%c0_35, %c0_36] : memref<1x32xf32, #tpu.memory_space<vmem>>, vector<1x32xf32>
    %87 = vector.broadcast %86 : vector<1x32xf32> to vector<8x32xf32>
    %88 = arith.addf %85, %87 : vector<8x32xf32>
    %89 = vector.shape_cast %88 : vector<8x32xf32> to vector<1x8x32xf32>
    %c0_37 = arith.constant 0 : index
    %c0_38 = arith.constant 0 : index
    %c0_39 = arith.constant 0 : index
    %90 = vector.load %arg19[%c0_37, %c0_38, %c0_39] : memref<1x8x32xf32, #tpu.memory_space<vmem>>, vector<1x8x32xf32>
    tpu.vector_store %arg19[%c0_37, %c0_38, %c0_39], %89 {strides = array<i32>} : memref<1x8x32xf32, #tpu.memory_space<vmem>>, vector<1x8x32xf32>,
    %91 = arith.truncf %35 : vector<16x32xf32> to vector<16x32xbf16>
    %c0_40 = arith.constant 0 : index
    %c0_41 = arith.constant 0 : index
    %92 = vector.load %arg13[%c0_40, %c0_41] : memref<32x32xbf16, #tpu.memory_space<vmem>>, vector<32x32xbf16>
    %cst_42 = arith.constant dense<0.000000e+00> : vector<16x32xf32>
    %93 = tpu.matmul %91, %92, %cst_42 {dimension_numbers = #tpu.dot_dimension_numbers<[1], [0], [0], [1], [0, 0, 1, 1], [], []>} : vector<16x32xbf16>, vector<32x32xbf16>, vector<16x32xf32> -> vector<16x32xf32>
    %cst_43 = arith.constant 0.176776692 : f32
    %94 = vector.broadcast %cst_43 : f32 to vector<16x32xf32>
    %95 = arith.mulf %93, %94 : vector<16x32xf32>
    %96 = vector.shape_cast %95 : vector<16x32xf32> to vector<1x16x32xf32>
    %97 = arith.truncf %96 : vector<1x16x32xf32> to vector<1x16x32xbf16>
    %98 = arith.truncf %88 : vector<8x32xf32> to vector<8x32xbf16>
    %c0_44 = arith.constant 0 : index
    %c0_45 = arith.constant 0 : index
    %99 = vector.load %arg14[%c0_44, %c0_45] : memref<32x32xbf16, #tpu.memory_space<vmem>>, vector<32x32xbf16>
    %cst_46 = arith.constant dense<0.000000e+00> : vector<8x32xf32>
    %100 = tpu.matmul %98, %99, %cst_46 {dimension_numbers = #tpu.dot_dimension_numbers<[1], [0], [0], [1], [0, 0, 1, 1], [], []>} : vector<8x32xbf16>, vector<32x32xbf16>, vector<8x32xf32> -> vector<8x32xf32>
    %101 = vector.shape_cast %100 : vector<8x32xf32> to vector<1x8x32xf32>
    %102 = arith.truncf %101 : vector<1x8x32xf32> to vector<1x8x32xbf16>
    %c0_47 = arith.constant 0 : index
    %c0_48 = arith.constant 0 : index
    %103 = vector.load %arg15[%c0_47, %c0_48] : memref<32x32xbf16, #tpu.memory_space<vmem>>, vector<32x32xbf16>
    %cst_49 = arith.constant dense<0.000000e+00> : vector<8x32xf32>
    %104 = tpu.matmul %98, %103, %cst_49 {dimension_numbers = #tpu.dot_dimension_numbers<[1], [0], [0], [1], [0, 0, 1, 1], [], []>} : vector<8x32xbf16>, vector<32x32xbf16>, vector<8x32xf32> -> vector<8x32xf32>
    %105 = vector.shape_cast %104 : vector<8x32xf32> to vector<1x8x32xf32>
    %106 = arith.truncf %105 : vector<1x8x32xf32> to vector<1x8x32xbf16>
    "tpu.trace_start"() <{level = 10 : i32, message = "bmd,bld->bml"}> : () -> ()
    %cst_50 = arith.constant dense<0.000000e+00> : vector<1x16x8xf32>
    %107 = tpu.matmul %97, %102, %cst_50 {dimension_numbers = #tpu.dot_dimension_numbers<[2], [2], [1], [1], [0, 0, 0, 1, 1, 1], [0], [0]>} : vector<1x16x32xbf16>, vector<1x8x32xbf16>, vector<1x16x8xf32> -> vector<1x16x8xf32>
    "tpu.trace_stop"() : () -> ()
    %cst_51 = arith.constant dense<0xFF800000> : vector<1x16xf32>
    %108 = vector.multi_reduction <maximumf>, %107, %cst_51 [2] : vector<1x16x8xf32> to vector<1x16xf32>
    %109 = vector.shape_cast %108 : vector<1x16xf32> to vector<1x16x1xf32>
    %110 = vector.broadcast %109 : vector<1x16x1xf32> to vector<1x16x8xf32>
    %111 = arith.subf %107, %110 : vector<1x16x8xf32>
    %112 = math.exp %111 : vector<1x16x8xf32>
    %cst_52 = arith.constant dense<0.000000e+00> : vector<1x16xf32>
    %113 = vector.multi_reduction <add>, %112, %cst_52 [2] : vector<1x16x8xf32> to vector<1x16xf32>
    %114 = vector.shape_cast %113 : vector<1x16xf32> to vector<1x16x1xf32>
    %115 = vector.broadcast %114 : vector<1x16x1xf32> to vector<1x16x8xf32>
    %116 = arith.divf %112, %115 : vector<1x16x8xf32>
    %117 = arith.truncf %116 : vector<1x16x8xf32> to vector<1x16x8xbf16>
    "tpu.trace_start"() <{level = 10 : i32, message = "bml,bld->bmd"}> : () -> ()
    %cst_53 = arith.constant dense<0.000000e+00> : vector<1x16x32xf32>
    %118 = tpu.matmul %117, %106, %cst_53 {dimension_numbers = #tpu.dot_dimension_numbers<[2], [1], [1], [2], [0, 0, 0, 1, 1, 2], [0], [0]>} : vector<1x16x8xbf16>, vector<1x8x32xbf16>, vector<1x16x32xf32> -> vector<1x16x32xf32>
    "tpu.trace_stop"() : () -> ()
    %c0_54 = arith.constant 0 : index
    %c0_55 = arith.constant 0 : index
    %c0_56 = arith.constant 0 : index
    %119 = vector.load %arg20[%c0_54, %c0_55, %c0_56] : memref<1x16x32xf32, #tpu.memory_space<vmem>>, vector<1x16x32xf32>
    tpu.vector_store %arg20[%c0_54, %c0_55, %c0_56], %118 {strides = array<i32>} : memref<1x16x32xf32, #tpu.memory_space<vmem>>, vector<1x16x32xf32>,
    %c0_57 = arith.constant 0 : index
    %c0_58 = arith.constant 0 : index
    %c0_59 = arith.constant 0 : index
    %120 = vector.load %arg21[%c0_57, %c0_58, %c0_59] : memref<1x16x8xf32, #tpu.memory_space<vmem>>, vector<1x16x8xf32>
    tpu.vector_store %arg21[%c0_57, %c0_58, %c0_59], %116 {strides = array<i32>} : memref<1x16x8xf32, #tpu.memory_space<vmem>>, vector<1x16x8xf32>,
    %121 = vector.shape_cast %118 : vector<1x16x32xf32> to vector<16x32xf32>
    %122 = arith.truncf %121 : vector<16x32xf32> to vector<16x32xbf16>
    %c0_60 = arith.constant 0 : index
    %c0_61 = arith.constant 0 : index
    %123 = vector.load %arg16[%c0_60, %c0_61] : memref<32x4xbf16, #tpu.memory_space<vmem>>, vector<32x4xbf16>
    %cst_62 = arith.constant dense<0.000000e+00> : vector<16x4xf32>
    %124 = tpu.matmul %122, %123, %cst_62 {dimension_numbers = #tpu.dot_dimension_numbers<[1], [0], [0], [1], [0, 0, 1, 1], [], []>} : vector<16x32xbf16>, vector<32x4xbf16>, vector<16x4xf32> -> vector<16x4xf32>
    %c0_63 = arith.constant 0 : index
    %c0_64 = arith.constant 0 : index
    %125 = vector.load %arg17[%c0_63, %c0_64] : memref<1x4xf32, #tpu.memory_space<vmem>>, vector<1x4xf32>
    %126 = vector.broadcast %125 : vector<1x4xf32> to vector<16x4xf32>
    %127 = arith.addf %124, %126 : vector<16x4xf32>
    %128 = vector.shape_cast %127 : vector<16x4xf32> to vector<1x16x4xf32>
    %c0_65 = arith.constant 0 : index
    %c0_66 = arith.constant 0 : index
    %c0_67 = arith.constant 0 : index
    %129 = vector.load %arg18[%c0_65, %c0_66, %c0_67] : memref<1x16x4xf32, #tpu.memory_space<vmem>>, vector<1x16x4xf32>
    tpu.vector_store %arg18[%c0_65, %c0_66, %c0_67], %128 {strides = array<i32>} : memref<1x16x4xf32, #tpu.memory_space<vmem>>, vector<1x16x4xf32>,
    return
  }
  func.func @transform_0(%arg0: i32) -> (i32, i32, i32) {
    %c0_i32 = arith.constant 0 : i32
    %c0_i32_0 = arith.constant 0 : i32
    %c0_i32_1 = arith.constant 0 : i32
    return %arg0, %c0_i32, %c0_i32_0 : i32, i32, i32
  }
  func.func @transform_1(%arg0: i32) -> (i32, i32, i32) {
    %c0_i32 = arith.constant 0 : i32
    %c0_i32_0 = arith.constant 0 : i32
    %c0_i32_1 = arith.constant 0 : i32
    return %arg0, %c0_i32, %c0_i32_0 : i32, i32, i32
  }
  func.func @transform_2(%arg0: i32) -> (i32, i32, i32) {
    %c0_i32 = arith.constant 0 : i32
    %c0_i32_0 = arith.constant 0 : i32
    %c0_i32_1 = arith.constant 0 : i32
    return %arg0, %c0_i32, %c0_i32_0 : i32, i32, i32
  }
  func.func @transform_3(%arg0: i32) -> (i32, i32) {
    %c0_i32 = arith.constant 0 : i32
    %c0_i32_0 = arith.constant 0 : i32
    %c0_i32_1 = arith.constant 0 : i32
    return %c0_i32, %c0_i32_0 : i32, i32
  }
  func.func @transform_4(%arg0: i32) -> (i32, i32) {
    %c0_i32 = arith.constant 0 : i32
    %c0_i32_0 = arith.constant 0 : i32
    %c0_i32_1 = arith.constant 0 : i32
    return %c0_i32, %c0_i32_0 : i32, i32
  }
  func.func @transform_5(%arg0: i32) -> (i32, i32) {
    %c0_i32 = arith.constant 0 : i32
    %c0_i32_0 = arith.constant 0 : i32
    %c0_i32_1 = arith.constant 0 : i32
    return %c0_i32, %c0_i32_0 : i32, i32
  }
  func.func @transform_6(%arg0: i32) -> (i32, i32) {
    %c0_i32 = arith.constant 0 : i32
    %c0_i32_0 = arith.constant 0 : i32
    %c0_i32_1 = arith.constant 0 : i32
    return %c0_i32, %c0_i32_0 : i32, i32
  }
  func.func @transform_7(%arg0: i32) -> (i32, i32) {
    %c0_i32 = arith.constant 0 : i32
    %c0_i32_0 = arith.constant 0 : i32
    %c0_i32_1 = arith.constant 0 : i32
    return %c0_i32, %c0_i32_0 : i32, i32
  }
  func.func @transform_8(%arg0: i32) -> (i32, i32) {
    %c0_i32 = arith.constant 0 : i32
    %c0_i32_0 = arith.constant 0 : i32
    %c0_i32_1 = arith.constant 0 : i32
    return %c0_i32, %c0_i32_0 : i32, i32
  }
  func.func @transform_9(%arg0: i32) -> (i32, i32) {
    %c0_i32 = arith.constant 0 : i32
    %c0_i32_0 = arith.constant 0 : i32
    %c0_i32_1 = arith.constant 0 : i32
    return %c0_i32, %c0_i32_0 : i32, i32
  }
  func.func @transform_10(%arg0: i32) -> (i32, i32) {
    %c0_i32 = arith.constant 0 : i32
    %c0_i32_0 = arith.constant 0 : i32
    %c0_i32_1 = arith.constant 0 : i32
    return %c0_i32, %c0_i32_0 : i32, i32
  }
  func.func @transform_11(%arg0: i32) -> (i32, i32) {
    %c0_i32 = arith.constant 0 : i32
    %c0_i32_0 = arith.constant 0 : i32
    %c0_i32_1 = arith.constant 0 : i32
    return %c0_i32, %c0_i32_0 : i32, i32
  }
  func.func @transform_12(%arg0: i32) -> (i32, i32) {
    %c0_i32 = arith.constant 0 : i32
    %c0_i32_0 = arith.constant 0 : i32
    %c0_i32_1 = arith.constant 0 : i32
    return %c0_i32, %c0_i32_0 : i32, i32
  }
  func.func @transform_13(%arg0: i32) -> (i32, i32) {
    %c0_i32 = arith.constant 0 : i32
    %c0_i32_0 = arith.constant 0 : i32
    %c0_i32_1 = arith.constant 0 : i32
    return %c0_i32, %c0_i32_0 : i32, i32
  }
  func.func @transform_14(%arg0: i32) -> (i32, i32) {
    %c0_i32 = arith.constant 0 : i32
    %c0_i32_0 = arith.constant 0 : i32
    %c0_i32_1 = arith.constant 0 : i32
    return %c0_i32, %c0_i32_0 : i32, i32
  }
  func.func @transform_15(%arg0: i32) -> (i32, i32) {
    %c0_i32 = arith.constant 0 : i32
    %c0_i32_0 = arith.constant 0 : i32
    %c0_i32_1 = arith.constant 0 : i32
    return %c0_i32, %c0_i32_0 : i32, i32
  }
  func.func @transform_16(%arg0: i32) -> (i32, i32) {
    %c0_i32 = arith.constant 0 : i32
    %c0_i32_0 = arith.constant 0 : i32
    %c0_i32_1 = arith.constant 0 : i32
    return %c0_i32, %c0_i32_0 : i32, i32
  }
  func.func @transform_17(%arg0: i32) -> (i32, i32, i32) {
    %c0_i32 = arith.constant 0 : i32
    %c0_i32_0 = arith.constant 0 : i32
    %c0_i32_1 = arith.constant 0 : i32
    return %arg0, %c0_i32, %c0_i32_0 : i32, i32, i32
  }
  func.func @transform_18(%arg0: i32) -> (i32, i32, i32) {
    %c0_i32 = arith.constant 0 : i32
    %c0_i32_0 = arith.constant 0 : i32
    %c0_i32_1 = arith.constant 0 : i32
    return %arg0, %c0_i32, %c0_i32_0 : i32, i32, i32
  }
  func.func @transform_19(%arg0: i32) -> (i32, i32, i32) {
    %c0_i32 = arith.constant 0 : i32
    %c0_i32_0 = arith.constant 0 : i32
    %c0_i32_1 = arith.constant 0 : i32
    return %arg0, %c0_i32, %c0_i32_0 : i32, i32, i32
  }
  func.func @transform_20(%arg0: i32) -> (i32, i32, i32) {
    %c0_i32 = arith.constant 0 : i32
    %c0_i32_0 = arith.constant 0 : i32
    %c0_i32_1 = arith.constant 0 : i32
    return %arg0, %c0_i32, %c0_i32_0 : i32, i32, i32
  }
}

</mosaic_0001>

<llo_original>
// kernel: ipot_forward.1
$region0: #{ipot_forward.1}
  #allocation0 [shape = 'u32[]', space=smem, size = 0x4, offset = 0x4, fixed_abs, tag = 'smem constant byte address 0x4 - core index']
  #allocation1 [shape = 'u32[72,128]{1,0:T(1,128)}', space=vmem, size = 0x9000, scoped, tag = 'internal scratch']
  %s0 = inlined_call_operand.vmem [shape: f32[2,64,2], index: 0, kind: input, shape index: {}]
  %s1 = inlined_call_operand.vmem [shape: f32[2,1,64], index: 1, kind: input, shape index: {}]
  %s2 = inlined_call_operand.vmem [shape: f32[2,16,2], index: 2, kind: input, shape index: {}]
  %s3 = inlined_call_operand.vmem [shape: f32[3,32], index: 3, kind: input, shape index: {}]
  %s4 = inlined_call_operand.vmem [shape: f32[3,32], index: 4, kind: input, shape index: {}]
  %s5 = inlined_call_operand.vmem [shape: bf16[8,32], index: 5, kind: input, shape index: {}]
  %s6 = inlined_call_operand.vmem [shape: bf16[32,32], index: 6, kind: input, shape index: {}]
  %s7 = inlined_call_operand.vmem [shape: bf16[32,32], index: 7, kind: input, shape index: {}]
  %s8 = inlined_call_operand.vmem [shape: bf16[32,64], index: 8, kind: input, shape index: {}]
  %s9 = inlined_call_operand.vmem [shape: f32[1,64], index: 9, kind: input, shape index: {}]
  %s10 = inlined_call_operand.vmem [shape: bf16[64,32], index: 10, kind: input, shape index: {}]
  %s11 = inlined_call_operand.vmem [shape: f32[1,32], index: 11, kind: input, shape index: {}]
  %s12 = inlined_call_operand.vmem [shape: bf16[32,32], index: 12, kind: input, shape index: {}]
  %s13 = inlined_call_operand.vmem [shape: bf16[32,32], index: 13, kind: input, shape index: {}]
  %s14 = inlined_call_operand.vmem [shape: bf16[32,32], index: 14, kind: input, shape index: {}]
  %s15 = inlined_call_operand.vmem [shape: bf16[32,4], index: 15, kind: input, shape index: {}]
  %s16 = inlined_call_operand.vmem [shape: f32[1,4], index: 16, kind: input, shape index: {}]
  %s17 = inlined_call_operand.vmem [shape: f32[2,16,4], index: 17, kind: output, shape index: {0}]
  %s18 = inlined_call_operand.hbm [shape: f32[2,8,32], index: 18, kind: output, shape index: {1}]
  %s19 = inlined_call_operand.hbm [shape: f32[2,16,32], index: 19, kind: output, shape index: {2}]
  %s20 = inlined_call_operand.vmem [shape: f32[2,16,8], index: 20, kind: output, shape index: {3}]
  %21 = xla_tuple %s17, %s18, %s19, %s20
  %s22 = sld [smem:[#allocation0]]
  $region125: #{ipot_forward.1} parent=0
    _
  %s24 = ssub.s32 1, %s22
  %s25 = scalar_select 0, %s24, %s22
  $region1: #{ipot_forward.1} parent=0
    #allocation2 [shape = 'u8[8192]{0}', space=vmem, size = 0x2000, scoped, tag = 'output window, operand 1']
    #allocation3 [shape = 's32[2]{0}', space=sflag, size = 0x8, scoped, tag = 'scoped memory for ipot_forward.1']
    #allocation4 [shape = 'u8[16384]{0}', space=vmem, size = 0x4000, scoped, tag = 'output window, operand 2']
    #allocation5 [shape = 's32[2]{0}', space=sflag, size = 0x8, scoped, tag = 'scoped memory for ipot_forward.1']
    %26 = vsyncpa [#allocation3], 0
    %s27 = scalar_lea.sflag [#allocation3], 1
    %28 = vsyncpa %s27, 0
    %29 = vsyncpa [#allocation5], 0
    %s30 = scalar_lea.sflag [#allocation5], 1
    %31 = vsyncpa %s30, 0
    loop: start=0, step=1, limit=4
    $region2: #{ipot_forward.1} parent=1 // loop_pre_header
      _
    $region3: #{ipot_forward.1} parent=1 // loop_header
      %s33 = sphi 0, %s37
      %p34 = scmp.ge.s32.totalorder %s33, 4
      %s43 = sphi 0, %s45
      %s46 = sphi 0, %s43
      %s47 = sphi 0, %s46
      %s63 = sphi 0, %s47
      %s69 = sphi 0, %s71
      %s72 = sphi 0, %s69
      %s73 = sphi 0, %s72
      %s89 = sphi 0, %s73
      %s95 = sphi 0, %s97
      %s98 = sphi 0, %s95
      %s99 = sphi 0, %s98
      %s115 = sphi 0, %s99
      %s119 = sphi 0, %s119
      %s121 = sphi 0, %s119
      %s122 = sphi 0, %s121
      %s136 = sphi 0, %s122
      %s140 = sphi 0, %s140
      %s142 = sphi 0, %s140
      %s143 = sphi 0, %s142
      %s157 = sphi 0, %s143
      %s161 = sphi 0, %s161
      %s163 = sphi 0, %s161
      %s164 = sphi 0, %s163
      %s178 = sphi 0, %s164
      %s182 = sphi 0, %s182
      %s184 = sphi 0, %s182
      %s185 = sphi 0, %s184
      %s199 = sphi 0, %s185
      %s203 = sphi 0, %s203
      %s205 = sphi 0, %s203
      %s206 = sphi 0, %s205
      %s220 = sphi 0, %s206
      %s224 = sphi 0, %s224
      %s226 = sphi 0, %s224
      %s227 = sphi 0, %s226
      %s241 = sphi 0, %s227
      %s245 = sphi 0, %s245
      %s247 = sphi 0, %s245
      %s248 = sphi 0, %s247
      %s262 = sphi 0, %s248
      %s266 = sphi 0, %s266
      %s268 = sphi 0, %s266
      %s269 = sphi 0, %s268
      %s283 = sphi 0, %s269
      %s287 = sphi 0, %s287
      %s289 = sphi 0, %s287
      %s290 = sphi 0, %s289
      %s304 = sphi 0, %s290
      %s308 = sphi 0, %s308
      %s310 = sphi 0, %s308
      %s311 = sphi 0, %s310
      %s325 = sphi 0, %s311
      %s329 = sphi 0, %s329
      %s331 = sphi 0, %s329
      %s332 = sphi 0, %s331
      %s346 = sphi 0, %s332
      %s350 = sphi 0, %s350
      %s352 = sphi 0, %s350
      %s353 = sphi 0, %s352
      %s367 = sphi 0, %s353
      %s371 = sphi 0, %s371
      %s373 = sphi 0, %s371
      %s374 = sphi 0, %s373
      %s388 = sphi 0, %s374
      %s392 = sphi 0, %s392
      %s394 = sphi 0, %s392
      %s395 = sphi 0, %s394
      %s409 = sphi 0, %s395
      %s415 = sphi 0, %s417
      %s418 = sphi 0, %s415
      %s419 = sphi 0, %s418
      %s435 = sphi 0, %s419
      %s441 = sphi 0, %s443
      %s444 = sphi 0, %s441
      %s445 = sphi 0, %s444
      %s461 = sphi 0, %s445
      %s467 = sphi 0, %s469
      %s470 = sphi 0, %s467
      %s471 = sphi 0, %s470
      %s487 = sphi 0, %s471
      %s493 = sphi 0, %s495
      %s496 = sphi 0, %s493
      %s497 = sphi 0, %s496
      %s513 = sphi 0, %s497
    $region4: #{ipot_forward.1} parent=1 // loop_header_branch
      %36 = sbr.rel (%p34) target = $region8
    $region5: #{ipot_forward.1} parent=1 // loop_body
      %s38 = ssub.s32 %s33, 1
      %s39 = ssub.s32 %s33, 2
      %s40 = sadd.s32 %s33, 1
      %s41 = ssub.s32 %s33, %s40
      %p42 = scmp.eq.s32.totalorder %s41, 0
      %s44 = sadd.s32 %s43, 1
      %s45 = scalar_select %p42, %s43, %s44
      %p48 = pneg %p42
      %p49 = scmp.eq.s32.totalorder %s33, 1
      %p50 = por %p48, %p49
      %p51 = scmp.ne.s32.totalorder %s43, %s46
      %p52 = scmp.eq.s32.totalorder %s33, 0
      %p53 = por %p51, %p52
      %p54 = scmp.ne.s32.totalorder %s43, %s46
      %p55 = scmp.eq.s32.totalorder %s38, 1
      %p56 = por %p54, %p55
      %p57 = scmp.ne.s32.totalorder %s46, %s47
      %p58 = scmp.eq.s32.totalorder %s38, 0
      %p59 = por %p57, %p58
      %p60 = scmp.ne.s32.totalorder %s46, %s47
      %p61 = scmp.eq.s32.totalorder %s39, 1
      %p62 = por %p60, %p61
      %p64 = scmp.ne.s32.totalorder %s47, %s63
      %p65 = scmp.eq.s32.totalorder %s39, 0
      %p66 = por %p64, %p65
      %s67 = ssub.s32 %s33, %s40
      %p68 = scmp.eq.s32.totalorder %s67, 0
      %s70 = sadd.s32 %s69, 1
      %s71 = scalar_select %p68, %s69, %s70
      %p74 = pneg %p68
      %p75 = scmp.eq.s32.totalorder %s33, 1
      %p76 = por %p74, %p75
      %p77 = scmp.ne.s32.totalorder %s69, %s72
      %p78 = scmp.eq.s32.totalorder %s33, 0
      %p79 = por %p77, %p78
      %p80 = scmp.ne.s32.totalorder %s69, %s72
      %p81 = scmp.eq.s32.totalorder %s38, 1
      %p82 = por %p80, %p81
      %p83 = scmp.ne.s32.totalorder %s72, %s73
      %p84 = scmp.eq.s32.totalorder %s38, 0
      %p85 = por %p83, %p84
      %p86 = scmp.ne.s32.totalorder %s72, %s73
      %p87 = scmp.eq.s32.totalorder %s39, 1
      %p88 = por %p86, %p87
      %p90 = scmp.ne.s32.totalorder %s73, %s89
      %p91 = scmp.eq.s32.totalorder %s39, 0
      %p92 = por %p90, %p91
      %s93 = ssub.s32 %s33, %s40
      %p94 = scmp.eq.s32.totalorder %s93, 0
      %s96 = sadd.s32 %s95, 1
      %s97 = scalar_select %p94, %s95, %s96
      %p100 = pneg %p94
      %p101 = scmp.eq.s32.totalorder %s33, 1
      %p102 = por %p100, %p101
      %p103 = scmp.ne.s32.totalorder %s95, %s98
      %p104 = scmp.eq.s32.totalorder %s33, 0
      %p105 = por %p103, %p104
      %p106 = scmp.ne.s32.totalorder %s95, %s98
      %p107 = scmp.eq.s32.totalorder %s38, 1
      %p108 = por %p106, %p107
      %p109 = scmp.ne.s32.totalorder %s98, %s99
      %p110 = scmp.eq.s32.totalorder %s38, 0
      %p111 = por %p109, %p110
      %p112 = scmp.ne.s32.totalorder %s98, %s99
      %p113 = scmp.eq.s32.totalorder %s39, 1
      %p114 = por %p112, %p113
      %p116 = scmp.ne.s32.totalorder %s99, %s115
      %p117 = scmp.eq.s32.totalorder %s39, 0
      %p118 = por %p116, %p117
      %s120 = sadd.s32 %s119, 1
      %p123 = scmp.eq.s32.totalorder %s33, 1
      %p124 = scmp.ne.s32.totalorder %s119, %s121
      %p125 = scmp.eq.s32.totalorder %s33, 0
      %p126 = por %p124, %p125
      %p127 = scmp.ne.s32.totalorder %s119, %s121
      %p128 = scmp.eq.s32.totalorder %s38, 1
      %p129 = por %p127, %p128
      %p130 = scmp.ne.s32.totalorder %s121, %s122
      %p131 = scmp.eq.s32.totalorder %s38, 0
      %p132 = por %p130, %p131
      %p133 = scmp.ne.s32.totalorder %s121, %s122
      %p134 = scmp.eq.s32.totalorder %s39, 1
      %p135 = por %p133, %p134
      %p137 = scmp.ne.s32.totalorder %s122, %s136
      %p138 = scmp.eq.s32.totalorder %s39, 0
      %p139 = por %p137, %p138
      %s141 = sadd.s32 %s140, 1
      %p144 = scmp.eq.s32.totalorder %s33, 1
      %p145 = scmp.ne.s32.totalorder %s140, %s142
      %p146 = scmp.eq.s32.totalorder %s33, 0
      %p147 = por %p145, %p146
      %p148 = scmp.ne.s32.totalorder %s140, %s142
      %p149 = scmp.eq.s32.totalorder %s38, 1
      %p150 = por %p148, %p149
      %p151 = scmp.ne.s32.totalorder %s142, %s143
      %p152 = scmp.eq.s32.totalorder %s38, 0
      %p153 = por %p151, %p152
      %p154 = scmp.ne.s32.totalorder %s142, %s143
      %p155 = scmp.eq.s32.totalorder %s39, 1
      %p156 = por %p154, %p155
      %p158 = scmp.ne.s32.totalorder %s143, %s157
      %p159 = scmp.eq.s32.totalorder %s39, 0
      %p160 = por %p158, %p159
      %s162 = sadd.s32 %s161, 1
      %p165 = scmp.eq.s32.totalorder %s33, 1
      %p166 = scmp.ne.s32.totalorder %s161, %s163
      %p167 = scmp.eq.s32.totalorder %s33, 0
      %p168 = por %p166, %p167
      %p169 = scmp.ne.s32.totalorder %s161, %s163
      %p170 = scmp.eq.s32.totalorder %s38, 1
      %p171 = por %p169, %p170
      %p172 = scmp.ne.s32.totalorder %s163, %s164
      %p173 = scmp.eq.s32.totalorder %s38, 0
      %p174 = por %p172, %p173
      %p175 = scmp.ne.s32.totalorder %s163, %s164
      %p176 = scmp.eq.s32.totalorder %s39, 1
      %p177 = por %p175, %p176
      %p179 = scmp.ne.s32.totalorder %s164, %s178
      %p180 = scmp.eq.s32.totalorder %s39, 0
      %p181 = por %p179, %p180
      %s183 = sadd.s32 %s182, 1
      %p186 = scmp.eq.s32.totalorder %s33, 1
      %p187 = scmp.ne.s32.totalorder %s182, %s184
      %p188 = scmp.eq.s32.totalorder %s33, 0
      %p189 = por %p187, %p188
      %p190 = scmp.ne.s32.totalorder %s182, %s184
      %p191 = scmp.eq.s32.totalorder %s38, 1
      %p192 = por %p190, %p191
      %p193 = scmp.ne.s32.totalorder %s184, %s185
      %p194 = scmp.eq.s32.totalorder %s38, 0
      %p195 = por %p193, %p194
      %p196 = scmp.ne.s32.totalorder %s184, %s185
      %p197 = scmp.eq.s32.totalorder %s39, 1
      %p198 = por %p196, %p197
      %p200 = scmp.ne.s32.totalorder %s185, %s199
      %p201 = scmp.eq.s32.totalorder %s39, 0
      %p202 = por %p200, %p201
      %s204 = sadd.s32 %s203, 1
      %p207 = scmp.eq.s32.totalorder %s33, 1
      %p208 = scmp.ne.s32.totalorder %s203, %s205
      %p209 = scmp.eq.s32.totalorder %s33, 0
      %p210 = por %p208, %p209
      %p211 = scmp.ne.s32.totalorder %s203, %s205
      %p212 = scmp.eq.s32.totalorder %s38, 1
      %p213 = por %p211, %p212
      %p214 = scmp.ne.s32.totalorder %s205, %s206
      %p215 = scmp.eq.s32.totalorder %s38, 0
      %p216 = por %p214, %p215
      %p217 = scmp.ne.s32.totalorder %s205, %s206
      %p218 = scmp.eq.s32.totalorder %s39, 1
      %p219 = por %p217, %p218
      %p221 = scmp.ne.s32.totalorder %s206, %s220
      %p222 = scmp.eq.s32.totalorder %s39, 0
      %p223 = por %p221, %p222
      %s225 = sadd.s32 %s224, 1
      %p228 = scmp.eq.s32.totalorder %s33, 1
      %p229 = scmp.ne.s32.totalorder %s224, %s226
      %p230 = scmp.eq.s32.totalorder %s33, 0
      %p231 = por %p229, %p230
      %p232 = scmp.ne.s32.totalorder %s224, %s226
      %p233 = scmp.eq.s32.totalorder %s38, 1
      %p234 = por %p232, %p233
      %p235 = scmp.ne.s32.totalorder %s226, %s227
      %p236 = scmp.eq.s32.totalorder %s38, 0
      %p237 = por %p235, %p236
      %p238 = scmp.ne.s32.totalorder %s226, %s227
      %p239 = scmp.eq.s32.totalorder %s39, 1
      %p240 = por %p238, %p239
      %p242 = scmp.ne.s32.totalorder %s227, %s241
      %p243 = scmp.eq.s32.totalorder %s39, 0
      %p244 = por %p242, %p243
      %s246 = sadd.s32 %s245, 1
      %p249 = scmp.eq.s32.totalorder %s33, 1
      %p250 = scmp.ne.s32.totalorder %s245, %s247
      %p251 = scmp.eq.s32.totalorder %s33, 0
      %p252 = por %p250, %p251
      %p253 = scmp.ne.s32.totalorder %s245, %s247
      %p254 = scmp.eq.s32.totalorder %s38, 1
      %p255 = por %p253, %p254
      %p256 = scmp.ne.s32.totalorder %s247, %s248
      %p257 = scmp.eq.s32.totalorder %s38, 0
      %p258 = por %p256, %p257
      %p259 = scmp.ne.s32.totalorder %s247, %s248
      %p260 = scmp.eq.s32.totalorder %s39, 1
      %p261 = por %p259, %p260
      %p263 = scmp.ne.s32.totalorder %s248, %s262
      %p264 = scmp.eq.s32.totalorder %s39, 0
      %p265 = por %p263, %p264
      %s267 = sadd.s32 %s266, 1
      %p270 = scmp.eq.s32.totalorder %s33, 1
      %p271 = scmp.ne.s32.totalorder %s266, %s268
      %p272 = scmp.eq.s32.totalorder %s33, 0
      %p273 = por %p271, %p272
      %p274 = scmp.ne.s32.totalorder %s266, %s268
      %p275 = scmp.eq.s32.totalorder %s38, 1
      %p276 = por %p274, %p275
      %p277 = scmp.ne.s32.totalorder %s268, %s269
      %p278 = scmp.eq.s32.totalorder %s38, 0
      %p279 = por %p277, %p278
      %p280 = scmp.ne.s32.totalorder %s268, %s269
      %p281 = scmp.eq.s32.totalorder %s39, 1
      %p282 = por %p280, %p281
      %p284 = scmp.ne.s32.totalorder %s269, %s283
      %p285 = scmp.eq.s32.totalorder %s39, 0
      %p286 = por %p284, %p285
      %s288 = sadd.s32 %s287, 1
      %p291 = scmp.eq.s32.totalorder %s33, 1
      %p292 = scmp.ne.s32.totalorder %s287, %s289
      %p293 = scmp.eq.s32.totalorder %s33, 0
      %p294 = por %p292, %p293
      %p295 = scmp.ne.s32.totalorder %s287, %s289
      %p296 = scmp.eq.s32.totalorder %s38, 1
      %p297 = por %p295, %p296
      %p298 = scmp.ne.s32.totalorder %s289, %s290
      %p299 = scmp.eq.s32.totalorder %s38, 0
      %p300 = por %p298, %p299
      %p301 = scmp.ne.s32.totalorder %s289, %s290
      %p302 = scmp.eq.s32.totalorder %s39, 1
      %p303 = por %p301, %p302
      %p305 = scmp.ne.s32.totalorder %s290, %s304
      %p306 = scmp.eq.s32.totalorder %s39, 0
      %p307 = por %p305, %p306
      %s309 = sadd.s32 %s308, 1
      %p312 = scmp.eq.s32.totalorder %s33, 1
      %p313 = scmp.ne.s32.totalorder %s308, %s310
      %p314 = scmp.eq.s32.totalorder %s33, 0
      %p315 = por %p313, %p314
      %p316 = scmp.ne.s32.totalorder %s308, %s310
      %p317 = scmp.eq.s32.totalorder %s38, 1
      %p318 = por %p316, %p317
      %p319 = scmp.ne.s32.totalorder %s310, %s311
      %p320 = scmp.eq.s32.totalorder %s38, 0
      %p321 = por %p319, %p320
      %p322 = scmp.ne.s32.totalorder %s310, %s311
      %p323 = scmp.eq.s32.totalorder %s39, 1
      %p324 = por %p322, %p323
      %p326 = scmp.ne.s32.totalorder %s311, %s325
      %p327 = scmp.eq.s32.totalorder %s39, 0
      %p328 = por %p326, %p327
      %s330 = sadd.s32 %s329, 1
      %p333 = scmp.eq.s32.totalorder %s33, 1
      %p334 = scmp.ne.s32.totalorder %s329, %s331
      %p335 = scmp.eq.s32.totalorder %s33, 0
      %p336 = por %p334, %p335
      %p337 = scmp.ne.s32.totalorder %s329, %s331
      %p338 = scmp.eq.s32.totalorder %s38, 1
      %p339 = por %p337, %p338
      %p340 = scmp.ne.s32.totalorder %s331, %s332
      %p341 = scmp.eq.s32.totalorder %s38, 0
      %p342 = por %p340, %p341
      %p343 = scmp.ne.s32.totalorder %s331, %s332
      %p344 = scmp.eq.s32.totalorder %s39, 1
      %p345 = por %p343, %p344
      %p347 = scmp.ne.s32.totalorder %s332, %s346
      %p348 = scmp.eq.s32.totalorder %s39, 0
      %p349 = por %p347, %p348
      %s351 = sadd.s32 %s350, 1
      %p354 = scmp.eq.s32.totalorder %s33, 1
      %p355 = scmp.ne.s32.totalorder %s350, %s352
      %p356 = scmp.eq.s32.totalorder %s33, 0
      %p357 = por %p355, %p356
      %p358 = scmp.ne.s32.totalorder %s350, %s352
      %p359 = scmp.eq.s32.totalorder %s38, 1
      %p360 = por %p358, %p359
      %p361 = scmp.ne.s32.totalorder %s352, %s353
      %p362 = scmp.eq.s32.totalorder %s38, 0
      %p363 = por %p361, %p362
      %p364 = scmp.ne.s32.totalorder %s352, %s353
      %p365 = scmp.eq.s32.totalorder %s39, 1
      %p366 = por %p364, %p365
      %p368 = scmp.ne.s32.totalorder %s353, %s367
      %p369 = scmp.eq.s32.totalorder %s39, 0
      %p370 = por %p368, %p369
      %s372 = sadd.s32 %s371, 1
      %p375 = scmp.eq.s32.totalorder %s33, 1
      %p376 = scmp.ne.s32.totalorder %s371, %s373
      %p377 = scmp.eq.s32.totalorder %s33, 0
      %p378 = por %p376, %p377
      %p379 = scmp.ne.s32.totalorder %s371, %s373
      %p380 = scmp.eq.s32.totalorder %s38, 1
      %p381 = por %p379, %p380
      %p382 = scmp.ne.s32.totalorder %s373, %s374
      %p383 = scmp.eq.s32.totalorder %s38, 0
      %p384 = por %p382, %p383
      %p385 = scmp.ne.s32.totalorder %s373, %s374
      %p386 = scmp.eq.s32.totalorder %s39, 1
      %p387 = por %p385, %p386
      %p389 = scmp.ne.s32.totalorder %s374, %s388
      %p390 = scmp.eq.s32.totalorder %s39, 0
      %p391 = por %p389, %p390
      %s393 = sadd.s32 %s392, 1
      %p396 = scmp.eq.s32.totalorder %s33, 1
      %p397 = scmp.ne.s32.totalorder %s392, %s394
      %p398 = scmp.eq.s32.totalorder %s33, 0
      %p399 = por %p397, %p398
      %p400 = scmp.ne.s32.totalorder %s392, %s394
      %p401 = scmp.eq.s32.totalorder %s38, 1
      %p402 = por %p400, %p401
      %p403 = scmp.ne.s32.totalorder %s394, %s395
      %p404 = scmp.eq.s32.totalorder %s38, 0
      %p405 = por %p403, %p404
      %p406 = scmp.ne.s32.totalorder %s394, %s395
      %p407 = scmp.eq.s32.totalorder %s39, 1
      %p408 = por %p406, %p407
      %p410 = scmp.ne.s32.totalorder %s395, %s409
      %p411 = scmp.eq.s32.totalorder %s39, 0
      %p412 = por %p410, %p411
      %s413 = ssub.s32 %s33, %s40
      %p414 = scmp.eq.s32.totalorder %s413, 0
      %s416 = sadd.s32 %s415, 1
      %s417 = scalar_select %p414, %s415, %s416
      %p420 = pneg %p414
      %p421 = scmp.eq.s32.totalorder %s33, 1
      %p422 = por %p420, %p421
      %p423 = scmp.ne.s32.totalorder %s415, %s418
      %p424 = scmp.eq.s32.totalorder %s33, 0
      %p425 = por %p423, %p424
      %p426 = scmp.ne.s32.totalorder %s415, %s418
      %p427 = scmp.eq.s32.totalorder %s38, 1
      %p428 = por %p426, %p427
      %p429 = scmp.ne.s32.totalorder %s418, %s419
      %p430 = scmp.eq.s32.totalorder %s38, 0
      %p431 = por %p429, %p430
      %p432 = scmp.ne.s32.totalorder %s418, %s419
      %p433 = scmp.eq.s32.totalorder %s39, 1
      %p434 = por %p432, %p433
      %p436 = scmp.ne.s32.totalorder %s419, %s435
      %p437 = scmp.eq.s32.totalorder %s39, 0
      %p438 = por %p436, %p437
      %s439 = ssub.s32 %s33, %s40
      %p440 = scmp.eq.s32.totalorder %s439, 0
      %s442 = sadd.s32 %s441, 1
      %s443 = scalar_select %p440, %s441, %s442
      %p446 = pneg %p440
      %p447 = scmp.eq.s32.totalorder %s33, 1
      %p448 = por %p446, %p447
      %p449 = scmp.ne.s32.totalorder %s441, %s444
      %p450 = scmp.eq.s32.totalorder %s33, 0
      %p451 = por %p449, %p450
      %p452 = scmp.ne.s32.totalorder %s441, %s444
      %p453 = scmp.eq.s32.totalorder %s38, 1
      %p454 = por %p452, %p453
      %p455 = scmp.ne.s32.totalorder %s444, %s445
      %p456 = scmp.eq.s32.totalorder %s38, 0
      %p457 = por %p455, %p456
      %p458 = scmp.ne.s32.totalorder %s444, %s445
      %p459 = scmp.eq.s32.totalorder %s39, 1
      %p460 = por %p458, %p459
      %p462 = scmp.ne.s32.totalorder %s445, %s461
      %p463 = scmp.eq.s32.totalorder %s39, 0
      %p464 = por %p462, %p463
      %s465 = ssub.s32 %s33, %s40
      %p466 = scmp.eq.s32.totalorder %s465, 0
      %s468 = sadd.s32 %s467, 1
      %s469 = scalar_select %p466, %s467, %s468
      %p472 = pneg %p466
      %p473 = scmp.eq.s32.totalorder %s33, 1
      %p474 = por %p472, %p473
      %p475 = scmp.ne.s32.totalorder %s467, %s470
      %p476 = scmp.eq.s32.totalorder %s33, 0
      %p477 = por %p475, %p476
      %p478 = scmp.ne.s32.totalorder %s467, %s470
      %p479 = scmp.eq.s32.totalorder %s38, 1
      %p480 = por %p478, %p479
      %p481 = scmp.ne.s32.totalorder %s470, %s471
      %p482 = scmp.eq.s32.totalorder %s38, 0
      %p483 = por %p481, %p482
      %p484 = scmp.ne.s32.totalorder %s470, %s471
      %p485 = scmp.eq.s32.totalorder %s39, 1
      %p486 = por %p484, %p485
      %p488 = scmp.ne.s32.totalorder %s471, %s487
      %p489 = scmp.eq.s32.totalorder %s39, 0
      %p490 = por %p488, %p489
      %s491 = ssub.s32 %s33, %s40
      %p492 = scmp.eq.s32.totalorder %s491, 0
      %s494 = sadd.s32 %s493, 1
      %s495 = scalar_select %p492, %s493, %s494
      %p498 = pneg %p492
      %p499 = scmp.eq.s32.totalorder %s33, 1
      %p500 = por %p498, %p499
      %p501 = scmp.ne.s32.totalorder %s493, %s496
      %p502 = scmp.eq.s32.totalorder %s33, 0
      %p503 = por %p501, %p502
      %p504 = scmp.ne.s32.totalorder %s493, %s496
      %p505 = scmp.eq.s32.totalorder %s38, 1
      %p506 = por %p504, %p505
      %p507 = scmp.ne.s32.totalorder %s496, %s497
      %p508 = scmp.eq.s32.totalorder %s38, 0
      %p509 = por %p507, %p508
      %p510 = scmp.ne.s32.totalorder %s496, %s497
      %p511 = scmp.eq.s32.totalorder %s39, 1
      %p512 = por %p510, %p511
      %p514 = scmp.ne.s32.totalorder %s497, %s513
      %p515 = scmp.eq.s32.totalorder %s39, 0
      %p516 = por %p514, %p515
      %p517 = scmp.le.s32.totalorder 1, %s33
      %p518 = scmp.lt.s32.totalorder %s33, 3
      %p519 = pnand %p517, %p518
      %p520 = pneg %p519
      // Predicated region
      $region9: #{ipot_forward.1} parent=5 // pred_check
        _
      $region10: #{ipot_forward.1} parent=5 // pred_check_branch
        %522 = sbr.rel (%p519) target = $region12
      $region11: #{ipot_forward.1} parent=5 // pred_region
        %s523 = ssub.s32 %s33, 1
        // Predicated region
        $region13: #{ipot_forward.1} parent=11 // pred_check
          %p524 = pneg %p132
        $region14: #{ipot_forward.1} parent=11 // pred_check_branch
          %526 = sbr.rel (%p524) target = $region16
        $region15: #{ipot_forward.1} parent=11 // pred_region
          _
        $region16: #{ipot_forward.1} parent=11 // pred_fallthru
          _
        // Predicated region
        $region17: #{ipot_forward.1} parent=11 // pred_check
          %p527 = pneg %p153
        $region18: #{ipot_forward.1} parent=11 // pred_check_branch
          %529 = sbr.rel (%p527) target = $region20
        $region19: #{ipot_forward.1} parent=11 // pred_region
          _
        $region20: #{ipot_forward.1} parent=11 // pred_fallthru
          _
        // Predicated region
        $region21: #{ipot_forward.1} parent=11 // pred_check
          %p530 = pneg %p174
        $region22: #{ipot_forward.1} parent=11 // pred_check_branch
          %532 = sbr.rel (%p530) target = $region24
        $region23: #{ipot_forward.1} parent=11 // pred_region
          _
        $region24: #{ipot_forward.1} parent=11 // pred_fallthru
          _
        // Predicated region
        $region25: #{ipot_forward.1} parent=11 // pred_check
          %p533 = pneg %p195
        $region26: #{ipot_forward.1} parent=11 // pred_check_branch
          %535 = sbr.rel (%p533) target = $region28
        $region27: #{ipot_forward.1} parent=11 // pred_region
          _
        $region28: #{ipot_forward.1} parent=11 // pred_fallthru
          _
        // Predicated region
        $region29: #{ipot_forward.1} parent=11 // pred_check
          %p536 = pneg %p216
        $region30: #{ipot_forward.1} parent=11 // pred_check_branch
          %538 = sbr.rel (%p536) target = $region32
        $region31: #{ipot_forward.1} parent=11 // pred_region
          _
        $region32: #{ipot_forward.1} parent=11 // pred_fallthru
          _
        // Predicated region
        $region33: #{ipot_forward.1} parent=11 // pred_check
          %p539 = pneg %p237
        $region34: #{ipot_forward.1} parent=11 // pred_check_branch
          %541 = sbr.rel (%p539) target = $region36
        $region35: #{ipot_forward.1} parent=11 // pred_region
          _
        $region36: #{ipot_forward.1} parent=11 // pred_fallthru
          _
        // Predicated region
        $region37: #{ipot_forward.1} parent=11 // pred_check
          %p542 = pneg %p258
        $region38: #{ipot_forward.1} parent=11 // pred_check_branch
          %544 = sbr.rel (%p542) target = $region40
        $region39: #{ipot_forward.1} parent=11 // pred_region
          _
        $region40: #{ipot_forward.1} parent=11 // pred_fallthru
          _
        // Predicated region
        $region41: #{ipot_forward.1} parent=11 // pred_check
          %p545 = pneg %p279
        $region42: #{ipot_forward.1} parent=11 // pred_check_branch
          %547 = sbr.rel (%p545) target = $region44
        $region43: #{ipot_forward.1} parent=11 // pred_region
          _
        $region44: #{ipot_forward.1} parent=11 // pred_fallthru
          _
        // Predicated region
        $region45: #{ipot_forward.1} parent=11 // pred_check
          %p548 = pneg %p300
        $region46: #{ipot_forward.1} parent=11 // pred_check_branch
          %550 = sbr.rel (%p548) target = $region48
        $region47: #{ipot_forward.1} parent=11 // pred_region
          _
        $region48: #{ipot_forward.1} parent=11 // pred_fallthru
          _
        // Predicated region
        $region49: #{ipot_forward.1} parent=11 // pred_check
          %p551 = pneg %p321
        $region50: #{ipot_forward.1} parent=11 // pred_check_branch
          %553 = sbr.rel (%p551) target = $region52
        $region51: #{ipot_forward.1} parent=11 // pred_region
          _
        $region52: #{ipot_forward.1} parent=11 // pred_fallthru
          _
        // Predicated region
        $region53: #{ipot_forward.1} parent=11 // pred_check
          %p554 = pneg %p342
        $region54: #{ipot_forward.1} parent=11 // pred_check_branch
          %556 = sbr.rel (%p554) target = $region56
        $region55: #{ipot_forward.1} parent=11 // pred_region
          _
        $region56: #{ipot_forward.1} parent=11 // pred_fallthru
          _
        // Predicated region
        $region57: #{ipot_forward.1} parent=11 // pred_check
          %p557 = pneg %p363
        $region58: #{ipot_forward.1} parent=11 // pred_check_branch
          %559 = sbr.rel (%p557) target = $region60
        $region59: #{ipot_forward.1} parent=11 // pred_region
          _
        $region60: #{ipot_forward.1} parent=11 // pred_fallthru
          _
        // Predicated region
        $region61: #{ipot_forward.1} parent=11 // pred_check
          %p560 = pneg %p384
        $region62: #{ipot_forward.1} parent=11 // pred_check_branch
          %562 = sbr.rel (%p560) target = $region64
        $region63: #{ipot_forward.1} parent=11 // pred_region
          _
        $region64: #{ipot_forward.1} parent=11 // pred_fallthru
          _
        // Predicated region
        $region65: #{ipot_forward.1} parent=11 // pred_check
          %p563 = pneg %p405
        $region66: #{ipot_forward.1} parent=11 // pred_check_branch
          %565 = sbr.rel (%p563) target = $region68
        $region67: #{ipot_forward.1} parent=11 // pred_region
          _
        $region68: #{ipot_forward.1} parent=11 // pred_fallthru
          _
      $region12: #{ipot_forward.1} parent=5 // pred_fallthru
        _
      %p566 = scmp.lt.s32.totalorder %s33, 2
      // Predicated region
      $region69: #{ipot_forward.1} parent=5 // pred_check
        %p567 = pneg %p566
      $region70: #{ipot_forward.1} parent=5 // pred_check_branch
        %569 = sbr.rel (%p567) target = $region72
      $region71: #{ipot_forward.1} parent=5 // pred_region
        // Predicated region
        $region73: #{ipot_forward.1} parent=71 // pred_check
          %p570 = pneg %p53
        $region74: #{ipot_forward.1} parent=71 // pred_check_branch
          %572 = sbr.rel (%p570) target = $region76
        $region75: #{ipot_forward.1} parent=71 // pred_region
          %p573 = scmp.lt.s32.totalorder %s33, 1
          %s574 = scalar_select %p573, %s33, 1
          %s575 = smul.addr %s574, 8
          %s576 = smul.addr %s575, 8
          %s577 = scalar_lea.vmem %s0, %s576
        $region76: #{ipot_forward.1} parent=71 // pred_fallthru
          _
        // Predicated region
        $region77: #{ipot_forward.1} parent=71 // pred_check
          %p578 = pneg %p79
        $region78: #{ipot_forward.1} parent=71 // pred_check_branch
          %580 = sbr.rel (%p578) target = $region80
        $region79: #{ipot_forward.1} parent=71 // pred_region
          %p581 = scmp.lt.s32.totalorder %s33, 1
          %s582 = scalar_select %p581, %s33, 1
          %s583 = scalar_lea.vmem %s1, %s582
        $region80: #{ipot_forward.1} parent=71 // pred_fallthru
          _
        // Predicated region
        $region81: #{ipot_forward.1} parent=71 // pred_check
          %p584 = pneg %p105
        $region82: #{ipot_forward.1} parent=71 // pred_check_branch
          %586 = sbr.rel (%p584) target = $region84
        $region83: #{ipot_forward.1} parent=71 // pred_region
          %p587 = scmp.lt.s32.totalorder %s33, 1
          %s588 = scalar_select %p587, %s33, 1
          %s589 = smul.addr %s588, 2
          %s590 = smul.addr %s589, 8
          %s591 = scalar_lea.vmem %s2, %s590
        $region84: #{ipot_forward.1} parent=71 // pred_fallthru
          _
      $region72: #{ipot_forward.1} parent=5 // pred_fallthru
        _
      %p592 = scmp.le.s32.totalorder 1, %s33
      %p593 = scmp.lt.s32.totalorder %s33, 3
      %p594 = pnand %p592, %p593
      %p595 = pneg %p594
      // Predicated region
      $region85: #{ipot_forward.1} parent=5 // pred_check
        _
      $region86: #{ipot_forward.1} parent=5 // pred_check_branch
        %597 = sbr.rel (%p594) target = $region88
      $region87: #{ipot_forward.1} parent=5 // pred_region
        %s598 = ssub.s32 %s33, 1
        %p599 = scmp.lt.s32.totalorder %s38, 1
        %s600 = scalar_select %p599, %s38, 1
        %s601 = smul.addr %s600, 8
        %s602 = smul.addr %s601, 8
        %s603 = scalar_lea.vmem %s0, %s602
        %p604 = pneg %p59
        %p605 = pneg %p56
        %p606 = scmp.lt.s32.totalorder %s38, 1
        %s607 = scalar_select %p606, %s38, 1
        %s608 = scalar_lea.vmem %s1, %s607
        %p609 = pneg %p85
        %p610 = pneg %p82
        %p611 = scmp.lt.s32.totalorder %s38, 1
        %s612 = scalar_select %p611, %s38, 1
        %s613 = smul.addr %s612, 2
        %s614 = smul.addr %s613, 8
        %s615 = scalar_lea.vmem %s2, %s614
        %p616 = pneg %p111
        %p617 = pneg %p108
        %p618 = pneg %p132
        %p619 = pneg %p129
        %p620 = pneg %p153
        %p621 = pneg %p150
        %p622 = pneg %p174
        %p623 = pneg %p171
        %p624 = pneg %p195
        %p625 = pneg %p192
        %p626 = pneg %p216
        %p627 = pneg %p213
        %p628 = pneg %p237
        %p629 = pneg %p234
        %p630 = pneg %p258
        %p631 = pneg %p255
        %p632 = pneg %p279
        %p633 = pneg %p276
        %p634 = pneg %p300
        %p635 = pneg %p297
        %p636 = pneg %p321
        %p637 = pneg %p318
        %p638 = pneg %p342
        %p639 = pneg %p339
        %p640 = pneg %p363
        %p641 = pneg %p360
        %p642 = pneg %p384
        %p643 = pneg %p381
        %p644 = pneg %p405
        %p645 = pneg %p402
        %p646 = pneg %p431
        %p647 = pneg %p428
        %p648 = scmp.lt.s32.totalorder %s38, 1
        %s649 = scalar_select %p648, %s38, 1
        %s650 = smul.addr %s649, 2
        %s651 = smul.addr %s650, 8
        %s652 = scalar_lea.vmem %s17, %s651
        %p653 = pneg %p457
        %p654 = pneg %p454
        %s655 = sand.u32 %s444, 1
        %s656 = scalar_lea.sflag [#allocation3], %s655
        %s657 = sand.u32 %s444, 1
        %s658 = smul.addr %s657, 8
        %s659 = scalar_lea.vmem [#allocation2], %s658
        %p660 = pneg %p483
        %p661 = pneg %p480
        %s662 = sand.u32 %s470, 1
        %s663 = scalar_lea.sflag [#allocation5], %s662
        %s664 = sand.u32 %s470, 1
        %s665 = smul.addr %s664, 16
        %s666 = scalar_lea.vmem [#allocation4], %s665
        %p667 = pneg %p509
        %p668 = pneg %p506
        %p669 = scmp.lt.s32.totalorder %s38, 1
        %s670 = scalar_select %p669, %s38, 1
        %s671 = smul.addr %s670, 2
        %s672 = smul.addr %s671, 8
        %s673 = scalar_lea.vmem %s20, %s672
        %p674 = scmp.lt.s32.totalorder %s38, 1
        %s675 = scalar_select %p674, %s38, 1
        %s676 = smul.addr %s675, 8
        %s677 = smul.addr %s676, 8
        %s678 = scalar_lea.vmem %s0, %s677
        %p679 = scmp.lt.s32.totalorder %s38, 1
        %s680 = scalar_select %p679, %s38, 1
        %s681 = scalar_lea.vmem %s1, %s680
        %p682 = scmp.lt.s32.totalorder %s38, 1
        %s683 = scalar_select %p682, %s38, 1
        %s684 = smul.addr %s683, 2
        %s685 = smul.addr %s684, 8
        %s686 = scalar_lea.vmem %s2, %s685
        %p687 = scmp.lt.s32.totalorder %s38, 1
        %s688 = scalar_select %p687, %s38, 1
        %s689 = smul.addr %s688, 2
        %s690 = smul.addr %s689, 8
        %s691 = scalar_lea.vmem %s17, %s690
        %p692 = scmp.lt.s32.totalorder %s38, 1
        %s693 = scalar_select %p692, %s38, 1
        %s694 = smul.addr %s693, 2
        %s695 = smul.addr %s694, 8
        %s696 = scalar_lea.vmem %s20, %s695
        %v698 = vld [vmem:[%s678] sm:$0xff]
        %v699 = vld [vmem:[%s678 + $0x8] sm:$0xff]
        %v700 = vld [vmem:[%s678 + $0x10] sm:$0xff]
        %v701 = vld [vmem:[%s678 + $0x18] sm:$0xff]
        %v702 = vld [vmem:[%s678 + $0x20] sm:$0xff]
        %v703 = vld [vmem:[%s678 + $0x28] sm:$0xff]
        %v704 = vld [vmem:[%s678 + $0x30] sm:$0xff]
        %v705 = vld [vmem:[%s678 + $0x38] sm:$0xff]
        %v706 = vld [vmem:[%s3] sm:$0x7]
        %708 = vset.pattern.permute.xlu0 0
        %709 = vperm.xlu0 %708, %v698
        %v710 = vpop.permute.xlu0 %709
        %713 = vset.pattern.permute.xlu0 0
        %714 = vperm.xlu0 %713, %v699
        %v715 = vpop.permute.xlu0 %714
        %718 = vset.pattern.permute.xlu0 0
        %719 = vperm.xlu0 %718, %v700
        %v720 = vpop.permute.xlu0 %719
        %723 = vset.pattern.permute.xlu0 0
        %724 = vperm.xlu0 %723, %v701
        %v725 = vpop.permute.xlu0 %724
        %728 = vset.pattern.permute.xlu0 0
        %729 = vperm.xlu0 %728, %v702
        %v730 = vpop.permute.xlu0 %729
        %733 = vset.pattern.permute.xlu0 0
        %734 = vperm.xlu0 %733, %v703
        %v735 = vpop.permute.xlu0 %734
        %738 = vset.pattern.permute.xlu0 0
        %739 = vperm.xlu0 %738, %v704
        %v740 = vpop.permute.xlu0 %739
        %743 = vset.pattern.permute.xlu0 0
        %744 = vperm.xlu0 %743, %v705
        %v745 = vpop.permute.xlu0 %744
        %v747 = vperm.slane %v706, 0
        %v748 = vmul.f32 %v710, %v747
        %v749 = vmul.f32 %v715, %v747
        %v750 = vmul.f32 %v720, %v747
        %v751 = vmul.f32 %v725, %v747
        %v752 = vmul.f32 %v730, %v747
        %v753 = vmul.f32 %v735, %v747
        %v754 = vmul.f32 %v740, %v747
        %v755 = vmul.f32 %v745, %v747
        %v756 = vperm.slane %v706, 2
        %v757 = vadd.f32 %v756, %v748
        %v758 = vadd.f32 %v756, %v749
        %v759 = vadd.f32 %v756, %v750
        %v760 = vadd.f32 %v756, %v751
        %v761 = vadd.f32 %v756, %v752
        %v762 = vadd.f32 %v756, %v753
        %v763 = vadd.f32 %v756, %v754
        %v764 = vadd.f32 %v756, %v755
        %765 = vset.pattern.permute.xlu0 1
        %766 = vperm.xlu0 %765, %v698
        %v767 = vpop.permute.xlu0 %766
        %769 = vset.pattern.permute.xlu0 1
        %770 = vperm.xlu0 %769, %v699
        %v771 = vpop.permute.xlu0 %770
        %773 = vset.pattern.permute.xlu0 1
        %774 = vperm.xlu0 %773, %v700
        %v775 = vpop.permute.xlu0 %774
        %777 = vset.pattern.permute.xlu0 1
        %778 = vperm.xlu0 %777, %v701
        %v779 = vpop.permute.xlu0 %778
        %781 = vset.pattern.permute.xlu0 1
        %782 = vperm.xlu0 %781, %v702
        %v783 = vpop.permute.xlu0 %782
        %785 = vset.pattern.permute.xlu0 1
        %786 = vperm.xlu0 %785, %v703
        %v787 = vpop.permute.xlu0 %786
        %789 = vset.pattern.permute.xlu0 1
        %790 = vperm.xlu0 %789, %v704
        %v791 = vpop.permute.xlu0 %790
        %793 = vset.pattern.permute.xlu0 1
        %794 = vperm.xlu0 %793, %v705
        %v795 = vpop.permute.xlu0 %794
        %v797 = vperm.slane %v706, 1
        %v798 = vmul.f32 %v767, %v797
        %v799 = vmul.f32 %v771, %v797
        %v800 = vmul.f32 %v775, %v797
        %v801 = vmul.f32 %v779, %v797
        %v802 = vmul.f32 %v783, %v797
        %v803 = vmul.f32 %v787, %v797
        %v804 = vmul.f32 %v791, %v797
        %v805 = vmul.f32 %v795, %v797
        %v806 = vadd.f32 %v757, %v798
        %v807 = vadd.f32 %v758, %v799
        %v808 = vadd.f32 %v759, %v800
        %v809 = vadd.f32 %v760, %v801
        %v810 = vadd.f32 %v761, %v802
        %v811 = vadd.f32 %v762, %v803
        %v812 = vadd.f32 %v763, %v804
        %v813 = vadd.f32 %v764, %v805
        %v814 = vand.u32 2147483647, %v806
        %vm815 = vcmp.le.f32.partialorder %v814, 0.7853982
        %vm816 = vcmp.lt.s32.totalorder %v806, 0
        %v817 = vand.u32 %v806, 2139095040
        %v818 = vshrl.u32 %v817, 23
        %v819 = vsub.s32 %v818, 127
        %v820 = vand.u32 2147483647, %v806
        %v821 = vand.u32 %v820, 8388607
        %v822 = vor.u32 %v821, 8388608
        %v823 = vsub.s32 0, %v822
        %v824 = vadd.s32 %v819, 1
        %vm825 = vcmp.gt.s32.totalorder %v824, 0
        %v826 = vsel %vm825, %v824, 0
        %v827 = vshrl.u32 %v826, 5
        %v828 = vand.u32 %v826, 31
        %v829 = vsub.s32 32, %v828
        %v830 = vshrl.u32 683565275, %v829
        %v831 = vshll.u32 683565275, %v828
        %v832 = vshrl.u32 2475754826, %v829
        %v833 = vor.u32 %v831, %v832
        %v834 = vshll.u32 2475754826, %v828
        %v835 = vshrl.u32 2131351028, %v829
        %v836 = vor.u32 %v834, %v835
        %v837 = vshll.u32 2131351028, %v828
        %v838 = vshrl.u32 2102212464, %v829
        %v839 = vor.u32 %v837, %v838
        %v840 = vshll.u32 2102212464, %v828
        %v841 = vshrl.u32 920167782, %v829
        %v842 = vor.u32 %v840, %v841
        %v843 = vshll.u32 920167782, %v828
        %v844 = vshrl.u32 1326507024, %v829
        %v845 = vor.u32 %v843, %v844
        %vm846 = vcmp.lt.s32.totalorder %v827, 1
        %vm847 = vcmp.lt.s32.totalorder %v827, 2
        %vm848 = vcmp.lt.s32.totalorder %v827, 3
        %vm849 = vcmp.lt.s32.totalorder %v827, 4
        %v850 = vsel %vm846, %v830, %v833
        %v851 = vsel %vm849, %v839, 2102212464
        %v852 = vsel %vm848, %v836, %v851
        %v853 = vsel %vm847, %v850, %v852
        %v854 = vsel %vm846, %v833, %v836
        %v855 = vsel %vm849, %v842, 920167782
        %v856 = vsel %vm848, %v839, %v855
        %v857 = vsel %vm847, %v854, %v856
        %v858 = vsel %vm846, %v836, %v839
        %v859 = vsel %vm849, %v845, 1326507024
        %v860 = vsel %vm848, %v842, %v859
        %v861 = vsel %vm847, %v858, %v860
        %v862 = vshll.u32 %v822, 8
        %v863 = vand.u32 %v862, 65535
        %v864 = vshrl.u32 %v862, 16
        %v865 = vand.u32 %v861, 65535
        %v866 = vshrl.u32 %v861, 16
        %v867 = vmul.u32 %v863, %v865
        %v868 = vmul.u32 %v863, %v866
        %v869 = vmul.u32 %v864, %v865
        %v870 = vmul.u32 %v864, %v866
        %v871 = vshll.u32 %v868, 16
        %v872 = vshrl.u32 %v868, 16
        %v873 = vshll.u32 %v869, 16
        %v874 = vshrl.u32 %v869, 16
        %vm875 = vc.u32 %v867, %v871
        %v876 = vsel %vm875, 1, 0
        %v877 = vadd.s32 %v867, %v871
        %v878 = vadd.s32 %v870, %v876
        %vm879 = vc.u32 %v877, %v873
        %v880 = vsel %vm879, 1, 0
        %v881 = vadd.s32 %v877, %v873
        %v882 = vadd.s32 %v878, %v880
        %v883 = vadd.s32 %v882, %v872
        %v884 = vadd.s32 %v883, %v874
        %v885 = vand.u32 %v862, 65535
        %v886 = vshrl.u32 %v862, 16
        %v887 = vand.u32 %v857, 65535
        %v888 = vshrl.u32 %v857, 16
        %v889 = vmul.u32 %v885, %v887
        %v890 = vmul.u32 %v885, %v888
        %v891 = vmul.u32 %v886, %v887
        %v892 = vmul.u32 %v886, %v888
        %v893 = vshll.u32 %v890, 16
        %v894 = vshrl.u32 %v890, 16
        %v895 = vshll.u32 %v891, 16
        %v896 = vshrl.u32 %v891, 16
        %vm897 = vc.u32 %v889, %v893
        %v898 = vsel %vm897, 1, 0
        %v899 = vadd.s32 %v889, %v893
        %v900 = vadd.s32 %v892, %v898
        %vm901 = vc.u32 %v899, %v895
        %v902 = vsel %vm901, 1, 0
        %v903 = vadd.s32 %v899, %v895
        %v904 = vadd.s32 %v900, %v902
        %v905 = vadd.s32 %v904, %v894
        %v906 = vadd.s32 %v905, %v896
        %v907 = vmul.u32 %v862, %v853
        %v908 = vadd.s32 %v884, %v903
        %vm909 = vc.u32 %v884, %v903
        %v910 = vadd.s32 %v906, 1
        %v911 = vsel %vm909, %v910, %v906
        %v912 = vadd.s32 %v907, %v911
        %v913 = vadd.s32 %v912, 536870912
        %v914 = vshrl.u32 %v913, 30
        %v915 = vshll.u32 %v914, 30
        %v916 = vsub.s32 %v912, %v915
        %vm917 = vcmp.lt.s32.totalorder %v916, 0
        %v918 = vsub.s32 0, %v916
        %v919 = vsel %vm917, %v918, %v916
        %v920 = vclz %v919
        %v921 = vsub.s32 %v920, 2
        %vm922 = vcmp.gt.s32.totalorder 0, %v921
        %v923 = vsel %vm922, 0, %v921
        %v924 = vsub.s32 32, %v923
        %v925 = vshll.u32 %v916, %v923
        %v926 = vshrl.u32 %v908, %v924
        %v927 = vor.u32 %v925, %v926
        %v928 = vsub.s32 4294967266, %v923
        %v929 = vadd.s32 %v928, 127
        %v930 = vshll.u32 %v929, 23
        %v931 = vor.u32 4788187, %v930
        %v932 = vand.u32 2147483647, %v931
        %v934 = vcvt.s32.f32 %v927
        %v935 = vmul.f32 %v934, %v932
        %v936 = vxor.u32 %v935, 2147483648
        %v937 = vsel %vm816, %v936, %v935
        %v938 = vsub.s32 4, %v914
        %v939 = vsel %vm816, %v938, %v914
        %v940 = vsel %vm815, %v806, %v937
        %v941 = vsel %vm815, 0, %v939
        %v942 = vmul.f32 %v940, %v940
        %v943 = vmul.f32 %v942, -0.001358992
        %v944 = vadd.f32 %v943, 0.041655596
        %v945 = vmul.f32 %v942, %v944
        %v946 = vadd.f32 %v945, -0.4999988
        %v947 = vmul.f32 %v942, %v946
        %v948 = vadd.f32 1.0, %v947
        %v949 = vmul.f32 %v940, %v940
        %v950 = vmul.f32 %v949, -0.00019511016
        %v951 = vadd.f32 %v950, 0.008332121
        %v952 = vmul.f32 %v949, %v951
        %v953 = vadd.f32 %v952, -0.16666654
        %v954 = vmul.f32 %v949, %v953
        %v955 = vadd.f32 %v954, 1.0
        %v956 = vmul.f32 %v955, %v940
        %vm957 = vweird.f32 %v806
        %v958 = vadd.s32 %v941, 3
        %v959 = vand.u32 %v958, 3
        %vm960 = vcmp.lt.s32.totalorder %v959, 2
        %vm961 = vcmp.eq.s32.totalorder %v959, 0
        %v962 = vxor.u32 %v956, 2147483648
        %v963 = vsel %vm961, %v948, %v962
        %vm964 = vcmp.eq.s32.totalorder %v959, 2
        %v965 = vxor.u32 %v948, 2147483648
        %v966 = vsel %vm964, %v965, %v956
        %v967 = vsel %vm960, %v963, %v966
        %v968 = vsel %vm957, nan, %v967
        %v969 = vand.u32 2147483647, %v807
        %vm970 = vcmp.le.f32.partialorder %v969, 0.7853982
        %vm971 = vcmp.lt.s32.totalorder %v807, 0
        %v972 = vand.u32 %v807, 2139095040
        %v973 = vshrl.u32 %v972, 23
        %v974 = vsub.s32 %v973, 127
        %v975 = vand.u32 2147483647, %v807
        %v976 = vand.u32 %v975, 8388607
        %v977 = vor.u32 %v976, 8388608
        %v978 = vsub.s32 0, %v977
        %v979 = vadd.s32 %v974, 1
        %vm980 = vcmp.gt.s32.totalorder %v979, 0
        %v981 = vsel %vm980, %v979, 0
        %v982 = vshrl.u32 %v981, 5
        %v983 = vand.u32 %v981, 31
        %v984 = vsub.s32 32, %v983
        %v985 = vshrl.u32 683565275, %v984
        %v986 = vshll.u32 683565275, %v983
        %v987 = vshrl.u32 2475754826, %v984
        %v988 = vor.u32 %v986, %v987
        %v989 = vshll.u32 2475754826, %v983
        %v990 = vshrl.u32 2131351028, %v984
        %v991 = vor.u32 %v989, %v990
        %v992 = vshll.u32 2131351028, %v983
        %v993 = vshrl.u32 2102212464, %v984
        %v994 = vor.u32 %v992, %v993
        %v995 = vshll.u32 2102212464, %v983
        %v996 = vshrl.u32 920167782, %v984
        %v997 = vor.u32 %v995, %v996
        %v998 = vshll.u32 920167782, %v983
        %v999 = vshrl.u32 1326507024, %v984
        %v1000 = vor.u32 %v998, %v999
        %vm1001 = vcmp.lt.s32.totalorder %v982, 1
        %vm1002 = vcmp.lt.s32.totalorder %v982, 2
        %vm1003 = vcmp.lt.s32.totalorder %v982, 3
        %vm1004 = vcmp.lt.s32.totalorder %v982, 4
        %v1005 = vsel %vm1001, %v985, %v988
        %v1006 = vsel %vm1004, %v994, 2102212464
        %v1007 = vsel %vm1003, %v991, %v1006
        %v1008 = vsel %vm1002, %v1005, %v1007
        %v1009 = vsel %vm1001, %v988, %v991
        %v1010 = vsel %vm1004, %v997, 920167782
        %v1011 = vsel %vm1003, %v994, %v1010
        %v1012 = vsel %vm1002, %v1009, %v1011
        %v1013 = vsel %vm1001, %v991, %v994
        %v1014 = vsel %vm1004, %v1000, 1326507024
        %v1015 = vsel %vm1003, %v997, %v1014
        %v1016 = vsel %vm1002, %v1013, %v1015
        %v1017 = vshll.u32 %v977, 8
        %v1018 = vand.u32 %v1017, 65535
        %v1019 = vshrl.u32 %v1017, 16
        %v1020 = vand.u32 %v1016, 65535
        %v1021 = vshrl.u32 %v1016, 16
        %v1022 = vmul.u32 %v1018, %v1020
        %v1023 = vmul.u32 %v1018, %v1021
        %v1024 = vmul.u32 %v1019, %v1020
        %v1025 = vmul.u32 %v1019, %v1021
        %v1026 = vshll.u32 %v1023, 16
        %v1027 = vshrl.u32 %v1023, 16
        %v1028 = vshll.u32 %v1024, 16
        %v1029 = vshrl.u32 %v1024, 16
        %vm1030 = vc.u32 %v1022, %v1026
        %v1031 = vsel %vm1030, 1, 0
        %v1032 = vadd.s32 %v1022, %v1026
        %v1033 = vadd.s32 %v1025, %v1031
        %vm1034 = vc.u32 %v1032, %v1028
        %v1035 = vsel %vm1034, 1, 0
        %v1036 = vadd.s32 %v1032, %v1028
        %v1037 = vadd.s32 %v1033, %v1035
        %v1038 = vadd.s32 %v1037, %v1027
        %v1039 = vadd.s32 %v1038, %v1029
        %v1040 = vand.u32 %v1017, 65535
        %v1041 = vshrl.u32 %v1017, 16
        %v1042 = vand.u32 %v1012, 65535
        %v1043 = vshrl.u32 %v1012, 16
        %v1044 = vmul.u32 %v1040, %v1042
        %v1045 = vmul.u32 %v1040, %v1043
        %v1046 = vmul.u32 %v1041, %v1042
        %v1047 = vmul.u32 %v1041, %v1043
        %v1048 = vshll.u32 %v1045, 16
        %v1049 = vshrl.u32 %v1045, 16
        %v1050 = vshll.u32 %v1046, 16
        %v1051 = vshrl.u32 %v1046, 16
        %vm1052 = vc.u32 %v1044, %v1048
        %v1053 = vsel %vm1052, 1, 0
        %v1054 = vadd.s32 %v1044, %v1048
        %v1055 = vadd.s32 %v1047, %v1053
        %vm1056 = vc.u32 %v1054, %v1050
        %v1057 = vsel %vm1056, 1, 0
        %v1058 = vadd.s32 %v1054, %v1050
        %v1059 = vadd.s32 %v1055, %v1057
        %v1060 = vadd.s32 %v1059, %v1049
        %v1061 = vadd.s32 %v1060, %v1051
        %v1062 = vmul.u32 %v1017, %v1008
        %v1063 = vadd.s32 %v1039, %v1058
        %vm1064 = vc.u32 %v1039, %v1058
        %v1065 = vadd.s32 %v1061, 1
        %v1066 = vsel %vm1064, %v1065, %v1061
        %v1067 = vadd.s32 %v1062, %v1066
        %v1068 = vadd.s32 %v1067, 536870912
        %v1069 = vshrl.u32 %v1068, 30
        %v1070 = vshll.u32 %v1069, 30
        %v1071 = vsub.s32 %v1067, %v1070
        %vm1072 = vcmp.lt.s32.totalorder %v1071, 0
        %v1073 = vsub.s32 0, %v1071
        %v1074 = vsel %vm1072, %v1073, %v1071
        %v1075 = vclz %v1074
        %v1076 = vsub.s32 %v1075, 2
        %vm1077 = vcmp.gt.s32.totalorder 0, %v1076
        %v1078 = vsel %vm1077, 0, %v1076
        %v1079 = vsub.s32 32, %v1078
        %v1080 = vshll.u32 %v1071, %v1078
        %v1081 = vshrl.u32 %v1063, %v1079
        %v1082 = vor.u32 %v1080, %v1081
        %v1083 = vsub.s32 4294967266, %v1078
        %v1084 = vadd.s32 %v1083, 127
        %v1085 = vshll.u32 %v1084, 23
        %v1086 = vor.u32 4788187, %v1085
        %v1087 = vand.u32 2147483647, %v1086
        %v1089 = vcvt.s32.f32 %v1082
        %v1090 = vmul.f32 %v1089, %v1087
        %v1091 = vxor.u32 %v1090, 2147483648
        %v1092 = vsel %vm971, %v1091, %v1090
        %v1093 = vsub.s32 4, %v1069
        %v1094 = vsel %vm971, %v1093, %v1069
        %v1095 = vsel %vm970, %v807, %v1092
        %v1096 = vsel %vm970, 0, %v1094
        %v1097 = vmul.f32 %v1095, %v1095
        %v1098 = vmul.f32 %v1097, -0.001358992
        %v1099 = vadd.f32 %v1098, 0.041655596
        %v1100 = vmul.f32 %v1097, %v1099
        %v1101 = vadd.f32 %v1100, -0.4999988
        %v1102 = vmul.f32 %v1097, %v1101
        %v1103 = vadd.f32 1.0, %v1102
        %v1104 = vmul.f32 %v1095, %v1095
        %v1105 = vmul.f32 %v1104, -0.00019511016
        %v1106 = vadd.f32 %v1105, 0.008332121
        %v1107 = vmul.f32 %v1104, %v1106
        %v1108 = vadd.f32 %v1107, -0.16666654
        %v1109 = vmul.f32 %v1104, %v1108
        %v1110 = vadd.f32 %v1109, 1.0
        %v1111 = vmul.f32 %v1110, %v1095
        %vm1112 = vweird.f32 %v807
        %v1113 = vadd.s32 %v1096, 3
        %v1114 = vand.u32 %v1113, 3
        %vm1115 = vcmp.lt.s32.totalorder %v1114, 2
        %vm1116 = vcmp.eq.s32.totalorder %v1114, 0
        %v1117 = vxor.u32 %v1111, 2147483648
        %v1118 = vsel %vm1116, %v1103, %v1117
        %vm1119 = vcmp.eq.s32.totalorder %v1114, 2
        %v1120 = vxor.u32 %v1103, 2147483648
        %v1121 = vsel %vm1119, %v1120, %v1111
        %v1122 = vsel %vm1115, %v1118, %v1121
        %v1123 = vsel %vm1112, nan, %v1122
        %v1124 = vand.u32 2147483647, %v808
        %vm1125 = vcmp.le.f32.partialorder %v1124, 0.7853982
        %vm1126 = vcmp.lt.s32.totalorder %v808, 0
        %v1127 = vand.u32 %v808, 2139095040
        %v1128 = vshrl.u32 %v1127, 23
        %v1129 = vsub.s32 %v1128, 127
        %v1130 = vand.u32 2147483647, %v808
        %v1131 = vand.u32 %v1130, 8388607
        %v1132 = vor.u32 %v1131, 8388608
        %v1133 = vsub.s32 0, %v1132
        %v1134 = vadd.s32 %v1129, 1
        %vm1135 = vcmp.gt.s32.totalorder %v1134, 0
        %v1136 = vsel %vm1135, %v1134, 0
        %v1137 = vshrl.u32 %v1136, 5
        %v1138 = vand.u32 %v1136, 31
        %v1139 = vsub.s32 32, %v1138
        %v1140 = vshrl.u32 683565275, %v1139
        %v1141 = vshll.u32 683565275, %v1138
        %v1142 = vshrl.u32 2475754826, %v1139
        %v1143 = vor.u32 %v1141, %v1142
        %v1144 = vshll.u32 2475754826, %v1138
        %v1145 = vshrl.u32 2131351028, %v1139
        %v1146 = vor.u32 %v1144, %v1145
        %v1147 = vshll.u32 2131351028, %v1138
        %v1148 = vshrl.u32 2102212464, %v1139
        %v1149 = vor.u32 %v1147, %v1148
        %v1150 = vshll.u32 2102212464, %v1138
        %v1151 = vshrl.u32 920167782, %v1139
        %v1152 = vor.u32 %v1150, %v1151
        %v1153 = vshll.u32 920167782, %v1138
        %v1154 = vshrl.u32 1326507024, %v1139
        %v1155 = vor.u32 %v1153, %v1154
        %vm1156 = vcmp.lt.s32.totalorder %v1137, 1
        %vm1157 = vcmp.lt.s32.totalorder %v1137, 2
        %vm1158 = vcmp.lt.s32.totalorder %v1137, 3
        %vm1159 = vcmp.lt.s32.totalorder %v1137, 4
        %v1160 = vsel %vm1156, %v1140, %v1143
        %v1161 = vsel %vm1159, %v1149, 2102212464
        %v1162 = vsel %vm1158, %v1146, %v1161
        %v1163 = vsel %vm1157, %v1160, %v1162
        %v1164 = vsel %vm1156, %v1143, %v1146
        %v1165 = vsel %vm1159, %v1152, 920167782
        %v1166 = vsel %vm1158, %v1149, %v1165
        %v1167 = vsel %vm1157, %v1164, %v1166
        %v1168 = vsel %vm1156, %v1146, %v1149
        %v1169 = vsel %vm1159, %v1155, 1326507024
        %v1170 = vsel %vm1158, %v1152, %v1169
        %v1171 = vsel %vm1157, %v1168, %v1170
        %v1172 = vshll.u32 %v1132, 8
        %v1173 = vand.u32 %v1172, 65535
        %v1174 = vshrl.u32 %v1172, 16
        %v1175 = vand.u32 %v1171, 65535
        %v1176 = vshrl.u32 %v1171, 16
        %v1177 = vmul.u32 %v1173, %v1175
        %v1178 = vmul.u32 %v1173, %v1176
        %v1179 = vmul.u32 %v1174, %v1175
        %v1180 = vmul.u32 %v1174, %v1176
        %v1181 = vshll.u32 %v1178, 16
        %v1182 = vshrl.u32 %v1178, 16
        %v1183 = vshll.u32 %v1179, 16
        %v1184 = vshrl.u32 %v1179, 16
        %vm1185 = vc.u32 %v1177, %v1181
        %v1186 = vsel %vm1185, 1, 0
        %v1187 = vadd.s32 %v1177, %v1181
        %v1188 = vadd.s32 %v1180, %v1186
        %vm1189 = vc.u32 %v1187, %v1183
        %v1190 = vsel %vm1189, 1, 0
        %v1191 = vadd.s32 %v1187, %v1183
        %v1192 = vadd.s32 %v1188, %v1190
        %v1193 = vadd.s32 %v1192, %v1182
        %v1194 = vadd.s32 %v1193, %v1184
        %v1195 = vand.u32 %v1172, 65535
        %v1196 = vshrl.u32 %v1172, 16
        %v1197 = vand.u32 %v1167, 65535
        %v1198 = vshrl.u32 %v1167, 16
        %v1199 = vmul.u32 %v1195, %v1197
        %v1200 = vmul.u32 %v1195, %v1198
        %v1201 = vmul.u32 %v1196, %v1197
        %v1202 = vmul.u32 %v1196, %v1198
        %v1203 = vshll.u32 %v1200, 16
        %v1204 = vshrl.u32 %v1200, 16
        %v1205 = vshll.u32 %v1201, 16
        %v1206 = vshrl.u32 %v1201, 16
        %vm1207 = vc.u32 %v1199, %v1203
        %v1208 = vsel %vm1207, 1, 0
        %v1209 = vadd.s32 %v1199, %v1203
        %v1210 = vadd.s32 %v1202, %v1208
        %vm1211 = vc.u32 %v1209, %v1205
        %v1212 = vsel %vm1211, 1, 0
        %v1213 = vadd.s32 %v1209, %v1205
        %v1214 = vadd.s32 %v1210, %v1212
        %v1215 = vadd.s32 %v1214, %v1204
        %v1216 = vadd.s32 %v1215, %v1206
        %v1217 = vmul.u32 %v1172, %v1163
        %v1218 = vadd.s32 %v1194, %v1213
        %vm1219 = vc.u32 %v1194, %v1213
        %v1220 = vadd.s32 %v1216, 1
        %v1221 = vsel %vm1219, %v1220, %v1216
        %v1222 = vadd.s32 %v1217, %v1221
        %v1223 = vadd.s32 %v1222, 536870912
        %v1224 = vshrl.u32 %v1223, 30
        %v1225 = vshll.u32 %v1224, 30
        %v1226 = vsub.s32 %v1222, %v1225
        %vm1227 = vcmp.lt.s32.totalorder %v1226, 0
        %v1228 = vsub.s32 0, %v1226
        %v1229 = vsel %vm1227, %v1228, %v1226
        %v1230 = vclz %v1229
        %v1231 = vsub.s32 %v1230, 2
        %vm1232 = vcmp.gt.s32.totalorder 0, %v1231
        %v1233 = vsel %vm1232, 0, %v1231
        %v1234 = vsub.s32 32, %v1233
        %v1235 = vshll.u32 %v1226, %v1233
        %v1236 = vshrl.u32 %v1218, %v1234
        %v1237 = vor.u32 %v1235, %v1236
        %v1238 = vsub.s32 4294967266, %v1233
        %v1239 = vadd.s32 %v1238, 127
        %v1240 = vshll.u32 %v1239, 23
        %v1241 = vor.u32 4788187, %v1240
        %v1242 = vand.u32 2147483647, %v1241
        %v1244 = vcvt.s32.f32 %v1237
        %v1245 = vmul.f32 %v1244, %v1242
        %v1246 = vxor.u32 %v1245, 2147483648
        %v1247 = vsel %vm1126, %v1246, %v1245
        %v1248 = vsub.s32 4, %v1224
        %v1249 = vsel %vm1126, %v1248, %v1224
        %v1250 = vsel %vm1125, %v808, %v1247
        %v1251 = vsel %vm1125, 0, %v1249
        %v1252 = vmul.f32 %v1250, %v1250
        %v1253 = vmul.f32 %v1252, -0.001358992
        %v1254 = vadd.f32 %v1253, 0.041655596
        %v1255 = vmul.f32 %v1252, %v1254
        %v1256 = vadd.f32 %v1255, -0.4999988
        %v1257 = vmul.f32 %v1252, %v1256
        %v1258 = vadd.f32 1.0, %v1257
        %v1259 = vmul.f32 %v1250, %v1250
        %v1260 = vmul.f32 %v1259, -0.00019511016
        %v1261 = vadd.f32 %v1260, 0.008332121
        %v1262 = vmul.f32 %v1259, %v1261
        %v1263 = vadd.f32 %v1262, -0.16666654
        %v1264 = vmul.f32 %v1259, %v1263
        %v1265 = vadd.f32 %v1264, 1.0
        %v1266 = vmul.f32 %v1265, %v1250
        %vm1267 = vweird.f32 %v808
        %v1268 = vadd.s32 %v1251, 3
        %v1269 = vand.u32 %v1268, 3
        %vm1270 = vcmp.lt.s32.totalorder %v1269, 2
        %vm1271 = vcmp.eq.s32.totalorder %v1269, 0
        %v1272 = vxor.u32 %v1266, 2147483648
        %v1273 = vsel %vm1271, %v1258, %v1272
        %vm1274 = vcmp.eq.s32.totalorder %v1269, 2
        %v1275 = vxor.u32 %v1258, 2147483648
        %v1276 = vsel %vm1274, %v1275, %v1266
        %v1277 = vsel %vm1270, %v1273, %v1276
        %v1278 = vsel %vm1267, nan, %v1277
        %v1279 = vand.u32 2147483647, %v809
        %vm1280 = vcmp.le.f32.partialorder %v1279, 0.7853982
        %vm1281 = vcmp.lt.s32.totalorder %v809, 0
        %v1282 = vand.u32 %v809, 2139095040
        %v1283 = vshrl.u32 %v1282, 23
        %v1284 = vsub.s32 %v1283, 127
        %v1285 = vand.u32 2147483647, %v809
        %v1286 = vand.u32 %v1285, 8388607
        %v1287 = vor.u32 %v1286, 8388608
        %v1288 = vsub.s32 0, %v1287
        %v1289 = vadd.s32 %v1284, 1
        %vm1290 = vcmp.gt.s32.totalorder %v1289, 0
        %v1291 = vsel %vm1290, %v1289, 0
        %v1292 = vshrl.u32 %v1291, 5
        %v1293 = vand.u32 %v1291, 31
        %v1294 = vsub.s32 32, %v1293
        %v1295 = vshrl.u32 683565275, %v1294
        %v1296 = vshll.u32 683565275, %v1293
        %v1297 = vshrl.u32 2475754826, %v1294
        %v1298 = vor.u32 %v1296, %v1297
        %v1299 = vshll.u32 2475754826, %v1293
        %v1300 = vshrl.u32 2131351028, %v1294
        %v1301 = vor.u32 %v1299, %v1300
        %v1302 = vshll.u32 2131351028, %v1293
        %v1303 = vshrl.u32 2102212464, %v1294
        %v1304 = vor.u32 %v1302, %v1303
        %v1305 = vshll.u32 2102212464, %v1293
        %v1306 = vshrl.u32 920167782, %v1294
        %v1307 = vor.u32 %v1305, %v1306
        %v1308 = vshll.u32 920167782, %v1293
        %v1309 = vshrl.u32 1326507024, %v1294
        %v1310 = vor.u32 %v1308, %v1309
        %vm1311 = vcmp.lt.s32.totalorder %v1292, 1
        %vm1312 = vcmp.lt.s32.totalorder %v1292, 2
        %vm1313 = vcmp.lt.s32.totalorder %v1292, 3
        %vm1314 = vcmp.lt.s32.totalorder %v1292, 4
        %v1315 = vsel %vm1311, %v1295, %v1298
        %v1316 = vsel %vm1314, %v1304, 2102212464
        %v1317 = vsel %vm1313, %v1301, %v1316
        %v1318 = vsel %vm1312, %v1315, %v1317
        %v1319 = vsel %vm1311, %v1298, %v1301
        %v1320 = vsel %vm1314, %v1307, 920167782
        %v1321 = vsel %vm1313, %v1304, %v1320
        %v1322 = vsel %vm1312, %v1319, %v1321
        %v1323 = vsel %vm1311, %v1301, %v1304
        %v1324 = vsel %vm1314, %v1310, 1326507024
        %v1325 = vsel %vm1313, %v1307, %v1324
        %v1326 = vsel %vm1312, %v1323, %v1325
        %v1327 = vshll.u32 %v1287, 8
        %v1328 = vand.u32 %v1327, 65535
        %v1329 = vshrl.u32 %v1327, 16
        %v1330 = vand.u32 %v1326, 65535
        %v1331 = vshrl.u32 %v1326, 16
        %v1332 = vmul.u32 %v1328, %v1330
        %v1333 = vmul.u32 %v1328, %v1331
        %v1334 = vmul.u32 %v1329, %v1330
        %v1335 = vmul.u32 %v1329, %v1331
        %v1336 = vshll.u32 %v1333, 16
        %v1337 = vshrl.u32 %v1333, 16
        %v1338 = vshll.u32 %v1334, 16
        %v1339 = vshrl.u32 %v1334, 16
        %vm1340 = vc.u32 %v1332, %v1336
        %v1341 = vsel %vm1340, 1, 0
        %v1342 = vadd.s32 %v1332, %v1336
        %v1343 = vadd.s32 %v1335, %v1341
        %vm1344 = vc.u32 %v1342, %v1338
        %v1345 = vsel %vm1344, 1, 0
        %v1346 = vadd.s32 %v1342, %v1338
        %v1347 = vadd.s32 %v1343, %v1345
        %v1348 = vadd.s32 %v1347, %v1337
        %v1349 = vadd.s32 %v1348, %v1339
        %v1350 = vand.u32 %v1327, 65535
        %v1351 = vshrl.u32 %v1327, 16
        %v1352 = vand.u32 %v1322, 65535
        %v1353 = vshrl.u32 %v1322, 16
        %v1354 = vmul.u32 %v1350, %v1352
        %v1355 = vmul.u32 %v1350, %v1353
        %v1356 = vmul.u32 %v1351, %v1352
        %v1357 = vmul.u32 %v1351, %v1353
        %v1358 = vshll.u32 %v1355, 16
        %v1359 = vshrl.u32 %v1355, 16
        %v1360 = vshll.u32 %v1356, 16
        %v1361 = vshrl.u32 %v1356, 16
        %vm1362 = vc.u32 %v1354, %v1358
        %v1363 = vsel %vm1362, 1, 0
        %v1364 = vadd.s32 %v1354, %v1358
        %v1365 = vadd.s32 %v1357, %v1363
        %vm1366 = vc.u32 %v1364, %v1360
        %v1367 = vsel %vm1366, 1, 0
        %v1368 = vadd.s32 %v1364, %v1360
        %v1369 = vadd.s32 %v1365, %v1367
        %v1370 = vadd.s32 %v1369, %v1359
        %v1371 = vadd.s32 %v1370, %v1361
        %v1372 = vmul.u32 %v1327, %v1318
        %v1373 = vadd.s32 %v1349, %v1368
        %vm1374 = vc.u32 %v1349, %v1368
        %v1375 = vadd.s32 %v1371, 1
        %v1376 = vsel %vm1374, %v1375, %v1371
        %v1377 = vadd.s32 %v1372, %v1376
        %v1378 = vadd.s32 %v1377, 536870912
        %v1379 = vshrl.u32 %v1378, 30
        %v1380 = vshll.u32 %v1379, 30
        %v1381 = vsub.s32 %v1377, %v1380
        %vm1382 = vcmp.lt.s32.totalorder %v1381, 0
        %v1383 = vsub.s32 0, %v1381
        %v1384 = vsel %vm1382, %v1383, %v1381
        %v1385 = vclz %v1384
        %v1386 = vsub.s32 %v1385, 2
        %vm1387 = vcmp.gt.s32.totalorder 0, %v1386
        %v1388 = vsel %vm1387, 0, %v1386
        %v1389 = vsub.s32 32, %v1388
        %v1390 = vshll.u32 %v1381, %v1388
        %v1391 = vshrl.u32 %v1373, %v1389
        %v1392 = vor.u32 %v1390, %v1391
        %v1393 = vsub.s32 4294967266, %v1388
        %v1394 = vadd.s32 %v1393, 127
        %v1395 = vshll.u32 %v1394, 23
        %v1396 = vor.u32 4788187, %v1395
        %v1397 = vand.u32 2147483647, %v1396
        %v1399 = vcvt.s32.f32 %v1392
        %v1400 = vmul.f32 %v1399, %v1397
        %v1401 = vxor.u32 %v1400, 2147483648
        %v1402 = vsel %vm1281, %v1401, %v1400
        %v1403 = vsub.s32 4, %v1379
        %v1404 = vsel %vm1281, %v1403, %v1379
        %v1405 = vsel %vm1280, %v809, %v1402
        %v1406 = vsel %vm1280, 0, %v1404
        %v1407 = vmul.f32 %v1405, %v1405
        %v1408 = vmul.f32 %v1407, -0.001358992
        %v1409 = vadd.f32 %v1408, 0.041655596
        %v1410 = vmul.f32 %v1407, %v1409
        %v1411 = vadd.f32 %v1410, -0.4999988
        %v1412 = vmul.f32 %v1407, %v1411
        %v1413 = vadd.f32 1.0, %v1412
        %v1414 = vmul.f32 %v1405, %v1405
        %v1415 = vmul.f32 %v1414, -0.00019511016
        %v1416 = vadd.f32 %v1415, 0.008332121
        %v1417 = vmul.f32 %v1414, %v1416
        %v1418 = vadd.f32 %v1417, -0.16666654
        %v1419 = vmul.f32 %v1414, %v1418
        %v1420 = vadd.f32 %v1419, 1.0
        %v1421 = vmul.f32 %v1420, %v1405
        %vm1422 = vweird.f32 %v809
        %v1423 = vadd.s32 %v1406, 3
        %v1424 = vand.u32 %v1423, 3
        %vm1425 = vcmp.lt.s32.totalorder %v1424, 2
        %vm1426 = vcmp.eq.s32.totalorder %v1424, 0
        %v1427 = vxor.u32 %v1421, 2147483648
        %v1428 = vsel %vm1426, %v1413, %v1427
        %vm1429 = vcmp.eq.s32.totalorder %v1424, 2
        %v1430 = vxor.u32 %v1413, 2147483648
        %v1431 = vsel %vm1429, %v1430, %v1421
        %v1432 = vsel %vm1425, %v1428, %v1431
        %v1433 = vsel %vm1422, nan, %v1432
        %v1434 = vand.u32 2147483647, %v810
        %vm1435 = vcmp.le.f32.partialorder %v1434, 0.7853982
        %vm1436 = vcmp.lt.s32.totalorder %v810, 0
        %v1437 = vand.u32 %v810, 2139095040
        %v1438 = vshrl.u32 %v1437, 23
        %v1439 = vsub.s32 %v1438, 127
        %v1440 = vand.u32 2147483647, %v810
        %v1441 = vand.u32 %v1440, 8388607
        %v1442 = vor.u32 %v1441, 8388608
        %v1443 = vsub.s32 0, %v1442
        %v1444 = vadd.s32 %v1439, 1
        %vm1445 = vcmp.gt.s32.totalorder %v1444, 0
        %v1446 = vsel %vm1445, %v1444, 0
        %v1447 = vshrl.u32 %v1446, 5
        %v1448 = vand.u32 %v1446, 31
        %v1449 = vsub.s32 32, %v1448
        %v1450 = vshrl.u32 683565275, %v1449
        %v1451 = vshll.u32 683565275, %v1448
        %v1452 = vshrl.u32 2475754826, %v1449
        %v1453 = vor.u32 %v1451, %v1452
        %v1454 = vshll.u32 2475754826, %v1448
        %v1455 = vshrl.u32 2131351028, %v1449
        %v1456 = vor.u32 %v1454, %v1455
        %v1457 = vshll.u32 2131351028, %v1448
        %v1458 = vshrl.u32 2102212464, %v1449
        %v1459 = vor.u32 %v1457, %v1458
        %v1460 = vshll.u32 2102212464, %v1448
        %v1461 = vshrl.u32 920167782, %v1449
        %v1462 = vor.u32 %v1460, %v1461
        %v1463 = vshll.u32 920167782, %v1448
        %v1464 = vshrl.u32 1326507024, %v1449
        %v1465 = vor.u32 %v1463, %v1464
        %vm1466 = vcmp.lt.s32.totalorder %v1447, 1
        %vm1467 = vcmp.lt.s32.totalorder %v1447, 2
        %vm1468 = vcmp.lt.s32.totalorder %v1447, 3
        %vm1469 = vcmp.lt.s32.totalorder %v1447, 4
        %v1470 = vsel %vm1466, %v1450, %v1453
        %v1471 = vsel %vm1469, %v1459, 2102212464
        %v1472 = vsel %vm1468, %v1456, %v1471
        %v1473 = vsel %vm1467, %v1470, %v1472
        %v1474 = vsel %vm1466, %v1453, %v1456
        %v1475 = vsel %vm1469, %v1462, 920167782
        %v1476 = vsel %vm1468, %v1459, %v1475
        %v1477 = vsel %vm1467, %v1474, %v1476
        %v1478 = vsel %vm1466, %v1456, %v1459
        %v1479 = vsel %vm1469, %v1465, 1326507024
        %v1480 = vsel %vm1468, %v1462, %v1479
        %v1481 = vsel %vm1467, %v1478, %v1480
        %v1482 = vshll.u32 %v1442, 8
        %v1483 = vand.u32 %v1482, 65535
        %v1484 = vshrl.u32 %v1482, 16
        %v1485 = vand.u32 %v1481, 65535
        %v1486 = vshrl.u32 %v1481, 16
        %v1487 = vmul.u32 %v1483, %v1485
        %v1488 = vmul.u32 %v1483, %v1486
        %v1489 = vmul.u32 %v1484, %v1485
        %v1490 = vmul.u32 %v1484, %v1486
        %v1491 = vshll.u32 %v1488, 16
        %v1492 = vshrl.u32 %v1488, 16
        %v1493 = vshll.u32 %v1489, 16
        %v1494 = vshrl.u32 %v1489, 16
        %vm1495 = vc.u32 %v1487, %v1491
        %v1496 = vsel %vm1495, 1, 0
        %v1497 = vadd.s32 %v1487, %v1491
        %v1498 = vadd.s32 %v1490, %v1496
        %vm1499 = vc.u32 %v1497, %v1493
        %v1500 = vsel %vm1499, 1, 0
        %v1501 = vadd.s32 %v1497, %v1493
        %v1502 = vadd.s32 %v1498, %v1500
        %v1503 = vadd.s32 %v1502, %v1492
        %v1504 = vadd.s32 %v1503, %v1494
        %v1505 = vand.u32 %v1482, 65535
        %v1506 = vshrl.u32 %v1482, 16
        %v1507 = vand.u32 %v1477, 65535
        %v1508 = vshrl.u32 %v1477, 16
        %v1509 = vmul.u32 %v1505, %v1507
        %v1510 = vmul.u32 %v1505, %v1508
        %v1511 = vmul.u32 %v1506, %v1507
        %v1512 = vmul.u32 %v1506, %v1508
        %v1513 = vshll.u32 %v1510, 16
        %v1514 = vshrl.u32 %v1510, 16
        %v1515 = vshll.u32 %v1511, 16
        %v1516 = vshrl.u32 %v1511, 16
        %vm1517 = vc.u32 %v1509, %v1513
        %v1518 = vsel %vm1517, 1, 0
        %v1519 = vadd.s32 %v1509, %v1513
        %v1520 = vadd.s32 %v1512, %v1518
        %vm1521 = vc.u32 %v1519, %v1515
        %v1522 = vsel %vm1521, 1, 0
        %v1523 = vadd.s32 %v1519, %v1515
        %v1524 = vadd.s32 %v1520, %v1522
        %v1525 = vadd.s32 %v1524, %v1514
        %v1526 = vadd.s32 %v1525, %v1516
        %v1527 = vmul.u32 %v1482, %v1473
        %v1528 = vadd.s32 %v1504, %v1523
        %vm1529 = vc.u32 %v1504, %v1523
        %v1530 = vadd.s32 %v1526, 1
        %v1531 = vsel %vm1529, %v1530, %v1526
        %v1532 = vadd.s32 %v1527, %v1531
        %v1533 = vadd.s32 %v1532, 536870912
        %v1534 = vshrl.u32 %v1533, 30
        %v1535 = vshll.u32 %v1534, 30
        %v1536 = vsub.s32 %v1532, %v1535
        %vm1537 = vcmp.lt.s32.totalorder %v1536, 0
        %v1538 = vsub.s32 0, %v1536
        %v1539 = vsel %vm1537, %v1538, %v1536
        %v1540 = vclz %v1539
        %v1541 = vsub.s32 %v1540, 2
        %vm1542 = vcmp.gt.s32.totalorder 0, %v1541
        %v1543 = vsel %vm1542, 0, %v1541
        %v1544 = vsub.s32 32, %v1543
        %v1545 = vshll.u32 %v1536, %v1543
        %v1546 = vshrl.u32 %v1528, %v1544
        %v1547 = vor.u32 %v1545, %v1546
        %v1548 = vsub.s32 4294967266, %v1543
        %v1549 = vadd.s32 %v1548, 127
        %v1550 = vshll.u32 %v1549, 23
        %v1551 = vor.u32 4788187, %v1550
        %v1552 = vand.u32 2147483647, %v1551
        %v1554 = vcvt.s32.f32 %v1547
        %v1555 = vmul.f32 %v1554, %v1552
        %v1556 = vxor.u32 %v1555, 2147483648
        %v1557 = vsel %vm1436, %v1556, %v1555
        %v1558 = vsub.s32 4, %v1534
        %v1559 = vsel %vm1436, %v1558, %v1534
        %v1560 = vsel %vm1435, %v810, %v1557
        %v1561 = vsel %vm1435, 0, %v1559
        %v1562 = vmul.f32 %v1560, %v1560
        %v1563 = vmul.f32 %v1562, -0.001358992
        %v1564 = vadd.f32 %v1563, 0.041655596
        %v1565 = vmul.f32 %v1562, %v1564
        %v1566 = vadd.f32 %v1565, -0.4999988
        %v1567 = vmul.f32 %v1562, %v1566
        %v1568 = vadd.f32 1.0, %v1567
        %v1569 = vmul.f32 %v1560, %v1560
        %v1570 = vmul.f32 %v1569, -0.00019511016
        %v1571 = vadd.f32 %v1570, 0.008332121
        %v1572 = vmul.f32 %v1569, %v1571
        %v1573 = vadd.f32 %v1572, -0.16666654
        %v1574 = vmul.f32 %v1569, %v1573
        %v1575 = vadd.f32 %v1574, 1.0
        %v1576 = vmul.f32 %v1575, %v1560
        %vm1577 = vweird.f32 %v810
        %v1578 = vadd.s32 %v1561, 3
        %v1579 = vand.u32 %v1578, 3
        %vm1580 = vcmp.lt.s32.totalorder %v1579, 2
        %vm1581 = vcmp.eq.s32.totalorder %v1579, 0
        %v1582 = vxor.u32 %v1576, 2147483648
        %v1583 = vsel %vm1581, %v1568, %v1582
        %vm1584 = vcmp.eq.s32.totalorder %v1579, 2
        %v1585 = vxor.u32 %v1568, 2147483648
        %v1586 = vsel %vm1584, %v1585, %v1576
        %v1587 = vsel %vm1580, %v1583, %v1586
        %v1588 = vsel %vm1577, nan, %v1587
        %v1589 = vand.u32 2147483647, %v811
        %vm1590 = vcmp.le.f32.partialorder %v1589, 0.7853982
        %vm1591 = vcmp.lt.s32.totalorder %v811, 0
        %v1592 = vand.u32 %v811, 2139095040
        %v1593 = vshrl.u32 %v1592, 23
        %v1594 = vsub.s32 %v1593, 127
        %v1595 = vand.u32 2147483647, %v811
        %v1596 = vand.u32 %v1595, 8388607
        %v1597 = vor.u32 %v1596, 8388608
        %v1598 = vsub.s32 0, %v1597
        %v1599 = vadd.s32 %v1594, 1
        %vm1600 = vcmp.gt.s32.totalorder %v1599, 0
        %v1601 = vsel %vm1600, %v1599, 0
        %v1602 = vshrl.u32 %v1601, 5
        %v1603 = vand.u32 %v1601, 31
        %v1604 = vsub.s32 32, %v1603
        %v1605 = vshrl.u32 683565275, %v1604
        %v1606 = vshll.u32 683565275, %v1603
        %v1607 = vshrl.u32 2475754826, %v1604
        %v1608 = vor.u32 %v1606, %v1607
        %v1609 = vshll.u32 2475754826, %v1603
        %v1610 = vshrl.u32 2131351028, %v1604
        %v1611 = vor.u32 %v1609, %v1610
        %v1612 = vshll.u32 2131351028, %v1603
        %v1613 = vshrl.u32 2102212464, %v1604
        %v1614 = vor.u32 %v1612, %v1613
        %v1615 = vshll.u32 2102212464, %v1603
        %v1616 = vshrl.u32 920167782, %v1604
        %v1617 = vor.u32 %v1615, %v1616
        %v1618 = vshll.u32 920167782, %v1603
        %v1619 = vshrl.u32 1326507024, %v1604
        %v1620 = vor.u32 %v1618, %v1619
        %vm1621 = vcmp.lt.s32.totalorder %v1602, 1
        %vm1622 = vcmp.lt.s32.totalorder %v1602, 2
        %vm1623 = vcmp.lt.s32.totalorder %v1602, 3
        %vm1624 = vcmp.lt.s32.totalorder %v1602, 4
        %v1625 = vsel %vm1621, %v1605, %v1608
        %v1626 = vsel %vm1624, %v1614, 2102212464
        %v1627 = vsel %vm1623, %v1611, %v1626
        %v1628 = vsel %vm1622, %v1625, %v1627
        %v1629 = vsel %vm1621, %v1608, %v1611
        %v1630 = vsel %vm1624, %v1617, 920167782
        %v1631 = vsel %vm1623, %v1614, %v1630
        %v1632 = vsel %vm1622, %v1629, %v1631
        %v1633 = vsel %vm1621, %v1611, %v1614
        %v1634 = vsel %vm1624, %v1620, 1326507024
        %v1635 = vsel %vm1623, %v1617, %v1634
        %v1636 = vsel %vm1622, %v1633, %v1635
        %v1637 = vshll.u32 %v1597, 8
        %v1638 = vand.u32 %v1637, 65535
        %v1639 = vshrl.u32 %v1637, 16
        %v1640 = vand.u32 %v1636, 65535
        %v1641 = vshrl.u32 %v1636, 16
        %v1642 = vmul.u32 %v1638, %v1640
        %v1643 = vmul.u32 %v1638, %v1641
        %v1644 = vmul.u32 %v1639, %v1640
        %v1645 = vmul.u32 %v1639, %v1641
        %v1646 = vshll.u32 %v1643, 16
        %v1647 = vshrl.u32 %v1643, 16
        %v1648 = vshll.u32 %v1644, 16
        %v1649 = vshrl.u32 %v1644, 16
        %vm1650 = vc.u32 %v1642, %v1646
        %v1651 = vsel %vm1650, 1, 0
        %v1652 = vadd.s32 %v1642, %v1646
        %v1653 = vadd.s32 %v1645, %v1651
        %vm1654 = vc.u32 %v1652, %v1648
        %v1655 = vsel %vm1654, 1, 0
        %v1656 = vadd.s32 %v1652, %v1648
        %v1657 = vadd.s32 %v1653, %v1655
        %v1658 = vadd.s32 %v1657, %v1647
        %v1659 = vadd.s32 %v1658, %v1649
        %v1660 = vand.u32 %v1637, 65535
        %v1661 = vshrl.u32 %v1637, 16
        %v1662 = vand.u32 %v1632, 65535
        %v1663 = vshrl.u32 %v1632, 16
        %v1664 = vmul.u32 %v1660, %v1662
        %v1665 = vmul.u32 %v1660, %v1663
        %v1666 = vmul.u32 %v1661, %v1662
        %v1667 = vmul.u32 %v1661, %v1663
        %v1668 = vshll.u32 %v1665, 16
        %v1669 = vshrl.u32 %v1665, 16
        %v1670 = vshll.u32 %v1666, 16
        %v1671 = vshrl.u32 %v1666, 16
        %vm1672 = vc.u32 %v1664, %v1668
        %v1673 = vsel %vm1672, 1, 0
        %v1674 = vadd.s32 %v1664, %v1668
        %v1675 = vadd.s32 %v1667, %v1673
        %vm1676 = vc.u32 %v1674, %v1670
        %v1677 = vsel %vm1676, 1, 0
        %v1678 = vadd.s32 %v1674, %v1670
        %v1679 = vadd.s32 %v1675, %v1677
        %v1680 = vadd.s32 %v1679, %v1669
        %v1681 = vadd.s32 %v1680, %v1671
        %v1682 = vmul.u32 %v1637, %v1628
        %v1683 = vadd.s32 %v1659, %v1678
        %vm1684 = vc.u32 %v1659, %v1678
        %v1685 = vadd.s32 %v1681, 1
        %v1686 = vsel %vm1684, %v1685, %v1681
        %v1687 = vadd.s32 %v1682, %v1686
        %v1688 = vadd.s32 %v1687, 536870912
        %v1689 = vshrl.u32 %v1688, 30
        %v1690 = vshll.u32 %v1689, 30
        %v1691 = vsub.s32 %v1687, %v1690
        %vm1692 = vcmp.lt.s32.totalorder %v1691, 0
        %v1693 = vsub.s32 0, %v1691
        %v1694 = vsel %vm1692, %v1693, %v1691
        %v1695 = vclz %v1694
        %v1696 = vsub.s32 %v1695, 2
        %vm1697 = vcmp.gt.s32.totalorder 0, %v1696
        %v1698 = vsel %vm1697, 0, %v1696
        %v1699 = vsub.s32 32, %v1698
        %v1700 = vshll.u32 %v1691, %v1698
        %v1701 = vshrl.u32 %v1683, %v1699
        %v1702 = vor.u32 %v1700, %v1701
        %v1703 = vsub.s32 4294967266, %v1698
        %v1704 = vadd.s32 %v1703, 127
        %v1705 = vshll.u32 %v1704, 23
        %v1706 = vor.u32 4788187, %v1705
        %v1707 = vand.u32 2147483647, %v1706
        %v1709 = vcvt.s32.f32 %v1702
        %v1710 = vmul.f32 %v1709, %v1707
        %v1711 = vxor.u32 %v1710, 2147483648
        %v1712 = vsel %vm1591, %v1711, %v1710
        %v1713 = vsub.s32 4, %v1689
        %v1714 = vsel %vm1591, %v1713, %v1689
        %v1715 = vsel %vm1590, %v811, %v1712
        %v1716 = vsel %vm1590, 0, %v1714
        %v1717 = vmul.f32 %v1715, %v1715
        %v1718 = vmul.f32 %v1717, -0.001358992
        %v1719 = vadd.f32 %v1718, 0.041655596
        %v1720 = vmul.f32 %v1717, %v1719
        %v1721 = vadd.f32 %v1720, -0.4999988
        %v1722 = vmul.f32 %v1717, %v1721
        %v1723 = vadd.f32 1.0, %v1722
        %v1724 = vmul.f32 %v1715, %v1715
        %v1725 = vmul.f32 %v1724, -0.00019511016
        %v1726 = vadd.f32 %v1725, 0.008332121
        %v1727 = vmul.f32 %v1724, %v1726
        %v1728 = vadd.f32 %v1727, -0.16666654
        %v1729 = vmul.f32 %v1724, %v1728
        %v1730 = vadd.f32 %v1729, 1.0
        %v1731 = vmul.f32 %v1730, %v1715
        %vm1732 = vweird.f32 %v811
        %v1733 = vadd.s32 %v1716, 3
        %v1734 = vand.u32 %v1733, 3
        %vm1735 = vcmp.lt.s32.totalorder %v1734, 2
        %vm1736 = vcmp.eq.s32.totalorder %v1734, 0
        %v1737 = vxor.u32 %v1731, 2147483648
        %v1738 = vsel %vm1736, %v1723, %v1737
        %vm1739 = vcmp.eq.s32.totalorder %v1734, 2
        %v1740 = vxor.u32 %v1723, 2147483648
        %v1741 = vsel %vm1739, %v1740, %v1731
        %v1742 = vsel %vm1735, %v1738, %v1741
        %v1743 = vsel %vm1732, nan, %v1742
        %v1744 = vand.u32 2147483647, %v812
        %vm1745 = vcmp.le.f32.partialorder %v1744, 0.7853982
        %vm1746 = vcmp.lt.s32.totalorder %v812, 0
        %v1747 = vand.u32 %v812, 2139095040
        %v1748 = vshrl.u32 %v1747, 23
        %v1749 = vsub.s32 %v1748, 127
        %v1750 = vand.u32 2147483647, %v812
        %v1751 = vand.u32 %v1750, 8388607
        %v1752 = vor.u32 %v1751, 8388608
        %v1753 = vsub.s32 0, %v1752
        %v1754 = vadd.s32 %v1749, 1
        %vm1755 = vcmp.gt.s32.totalorder %v1754, 0
        %v1756 = vsel %vm1755, %v1754, 0
        %v1757 = vshrl.u32 %v1756, 5
        %v1758 = vand.u32 %v1756, 31
        %v1759 = vsub.s32 32, %v1758
        %v1760 = vshrl.u32 683565275, %v1759
        %v1761 = vshll.u32 683565275, %v1758
        %v1762 = vshrl.u32 2475754826, %v1759
        %v1763 = vor.u32 %v1761, %v1762
        %v1764 = vshll.u32 2475754826, %v1758
        %v1765 = vshrl.u32 2131351028, %v1759
        %v1766 = vor.u32 %v1764, %v1765
        %v1767 = vshll.u32 2131351028, %v1758
        %v1768 = vshrl.u32 2102212464, %v1759
        %v1769 = vor.u32 %v1767, %v1768
        %v1770 = vshll.u32 2102212464, %v1758
        %v1771 = vshrl.u32 920167782, %v1759
        %v1772 = vor.u32 %v1770, %v1771
        %v1773 = vshll.u32 920167782, %v1758
        %v1774 = vshrl.u32 1326507024, %v1759
        %v1775 = vor.u32 %v1773, %v1774
        %vm1776 = vcmp.lt.s32.totalorder %v1757, 1
        %vm1777 = vcmp.lt.s32.totalorder %v1757, 2
        %vm1778 = vcmp.lt.s32.totalorder %v1757, 3
        %vm1779 = vcmp.lt.s32.totalorder %v1757, 4
        %v1780 = vsel %vm1776, %v1760, %v1763
        %v1781 = vsel %vm1779, %v1769, 2102212464
        %v1782 = vsel %vm1778, %v1766, %v1781
        %v1783 = vsel %vm1777, %v1780, %v1782
        %v1784 = vsel %vm1776, %v1763, %v1766
        %v1785 = vsel %vm1779, %v1772, 920167782
        %v1786 = vsel %vm1778, %v1769, %v1785
        %v1787 = vsel %vm1777, %v1784, %v1786
        %v1788 = vsel %vm1776, %v1766, %v1769
        %v1789 = vsel %vm1779, %v1775, 1326507024
        %v1790 = vsel %vm1778, %v1772, %v1789
        %v1791 = vsel %vm1777, %v1788, %v1790
        %v1792 = vshll.u32 %v1752, 8
        %v1793 = vand.u32 %v1792, 65535
        %v1794 = vshrl.u32 %v1792, 16
        %v1795 = vand.u32 %v1791, 65535
        %v1796 = vshrl.u32 %v1791, 16
        %v1797 = vmul.u32 %v1793, %v1795
        %v1798 = vmul.u32 %v1793, %v1796
        %v1799 = vmul.u32 %v1794, %v1795
        %v1800 = vmul.u32 %v1794, %v1796
        %v1801 = vshll.u32 %v1798, 16
        %v1802 = vshrl.u32 %v1798, 16
        %v1803 = vshll.u32 %v1799, 16
        %v1804 = vshrl.u32 %v1799, 16
        %vm1805 = vc.u32 %v1797, %v1801
        %v1806 = vsel %vm1805, 1, 0
        %v1807 = vadd.s32 %v1797, %v1801
        %v1808 = vadd.s32 %v1800, %v1806
        %vm1809 = vc.u32 %v1807, %v1803
        %v1810 = vsel %vm1809, 1, 0
        %v1811 = vadd.s32 %v1807, %v1803
        %v1812 = vadd.s32 %v1808, %v1810
        %v1813 = vadd.s32 %v1812, %v1802
        %v1814 = vadd.s32 %v1813, %v1804
        %v1815 = vand.u32 %v1792, 65535
        %v1816 = vshrl.u32 %v1792, 16
        %v1817 = vand.u32 %v1787, 65535
        %v1818 = vshrl.u32 %v1787, 16
        %v1819 = vmul.u32 %v1815, %v1817
        %v1820 = vmul.u32 %v1815, %v1818
        %v1821 = vmul.u32 %v1816, %v1817
        %v1822 = vmul.u32 %v1816, %v1818
        %v1823 = vshll.u32 %v1820, 16
        %v1824 = vshrl.u32 %v1820, 16
        %v1825 = vshll.u32 %v1821, 16
        %v1826 = vshrl.u32 %v1821, 16
        %vm1827 = vc.u32 %v1819, %v1823
        %v1828 = vsel %vm1827, 1, 0
        %v1829 = vadd.s32 %v1819, %v1823
        %v1830 = vadd.s32 %v1822, %v1828
        %vm1831 = vc.u32 %v1829, %v1825
        %v1832 = vsel %vm1831, 1, 0
        %v1833 = vadd.s32 %v1829, %v1825
        %v1834 = vadd.s32 %v1830, %v1832
        %v1835 = vadd.s32 %v1834, %v1824
        %v1836 = vadd.s32 %v1835, %v1826
        %v1837 = vmul.u32 %v1792, %v1783
        %v1838 = vadd.s32 %v1814, %v1833
        %vm1839 = vc.u32 %v1814, %v1833
        %v1840 = vadd.s32 %v1836, 1
        %v1841 = vsel %vm1839, %v1840, %v1836
        %v1842 = vadd.s32 %v1837, %v1841
        %v1843 = vadd.s32 %v1842, 536870912
        %v1844 = vshrl.u32 %v1843, 30
        %v1845 = vshll.u32 %v1844, 30
        %v1846 = vsub.s32 %v1842, %v1845
        %vm1847 = vcmp.lt.s32.totalorder %v1846, 0
        %v1848 = vsub.s32 0, %v1846
        %v1849 = vsel %vm1847, %v1848, %v1846
        %v1850 = vclz %v1849
        %v1851 = vsub.s32 %v1850, 2
        %vm1852 = vcmp.gt.s32.totalorder 0, %v1851
        %v1853 = vsel %vm1852, 0, %v1851
        %v1854 = vsub.s32 32, %v1853
        %v1855 = vshll.u32 %v1846, %v1853
        %v1856 = vshrl.u32 %v1838, %v1854
        %v1857 = vor.u32 %v1855, %v1856
        %v1858 = vsub.s32 4294967266, %v1853
        %v1859 = vadd.s32 %v1858, 127
        %v1860 = vshll.u32 %v1859, 23
        %v1861 = vor.u32 4788187, %v1860
        %v1862 = vand.u32 2147483647, %v1861
        %v1864 = vcvt.s32.f32 %v1857
        %v1865 = vmul.f32 %v1864, %v1862
        %v1866 = vxor.u32 %v1865, 2147483648
        %v1867 = vsel %vm1746, %v1866, %v1865
        %v1868 = vsub.s32 4, %v1844
        %v1869 = vsel %vm1746, %v1868, %v1844
        %v1870 = vsel %vm1745, %v812, %v1867
        %v1871 = vsel %vm1745, 0, %v1869
        %v1872 = vmul.f32 %v1870, %v1870
        %v1873 = vmul.f32 %v1872, -0.001358992
        %v1874 = vadd.f32 %v1873, 0.041655596
        %v1875 = vmul.f32 %v1872, %v1874
        %v1876 = vadd.f32 %v1875, -0.4999988
        %v1877 = vmul.f32 %v1872, %v1876
        %v1878 = vadd.f32 1.0, %v1877
        %v1879 = vmul.f32 %v1870, %v1870
        %v1880 = vmul.f32 %v1879, -0.00019511016
        %v1881 = vadd.f32 %v1880, 0.008332121
        %v1882 = vmul.f32 %v1879, %v1881
        %v1883 = vadd.f32 %v1882, -0.16666654
        %v1884 = vmul.f32 %v1879, %v1883
        %v1885 = vadd.f32 %v1884, 1.0
        %v1886 = vmul.f32 %v1885, %v1870
        %vm1887 = vweird.f32 %v812
        %v1888 = vadd.s32 %v1871, 3
        %v1889 = vand.u32 %v1888, 3
        %vm1890 = vcmp.lt.s32.totalorder %v1889, 2
        %vm1891 = vcmp.eq.s32.totalorder %v1889, 0
        %v1892 = vxor.u32 %v1886, 2147483648
        %v1893 = vsel %vm1891, %v1878, %v1892
        %vm1894 = vcmp.eq.s32.totalorder %v1889, 2
        %v1895 = vxor.u32 %v1878, 2147483648
        %v1896 = vsel %vm1894, %v1895, %v1886
        %v1897 = vsel %vm1890, %v1893, %v1896
        %v1898 = vsel %vm1887, nan, %v1897
        %v1899 = vand.u32 2147483647, %v813
        %vm1900 = vcmp.le.f32.partialorder %v1899, 0.7853982
        %vm1901 = vcmp.lt.s32.totalorder %v813, 0
        %v1902 = vand.u32 %v813, 2139095040
        %v1903 = vshrl.u32 %v1902, 23
        %v1904 = vsub.s32 %v1903, 127
        %v1905 = vand.u32 2147483647, %v813
        %v1906 = vand.u32 %v1905, 8388607
        %v1907 = vor.u32 %v1906, 8388608
        %v1908 = vsub.s32 0, %v1907
        %v1909 = vadd.s32 %v1904, 1
        %vm1910 = vcmp.gt.s32.totalorder %v1909, 0
        %v1911 = vsel %vm1910, %v1909, 0
        %v1912 = vshrl.u32 %v1911, 5
        %v1913 = vand.u32 %v1911, 31
        %v1914 = vsub.s32 32, %v1913
        %v1915 = vshrl.u32 683565275, %v1914
        %v1916 = vshll.u32 683565275, %v1913
        %v1917 = vshrl.u32 2475754826, %v1914
        %v1918 = vor.u32 %v1916, %v1917
        %v1919 = vshll.u32 2475754826, %v1913
        %v1920 = vshrl.u32 2131351028, %v1914
        %v1921 = vor.u32 %v1919, %v1920
        %v1922 = vshll.u32 2131351028, %v1913
        %v1923 = vshrl.u32 2102212464, %v1914
        %v1924 = vor.u32 %v1922, %v1923
        %v1925 = vshll.u32 2102212464, %v1913
        %v1926 = vshrl.u32 920167782, %v1914
        %v1927 = vor.u32 %v1925, %v1926
        %v1928 = vshll.u32 920167782, %v1913
        %v1929 = vshrl.u32 1326507024, %v1914
        %v1930 = vor.u32 %v1928, %v1929
        %vm1931 = vcmp.lt.s32.totalorder %v1912, 1
        %vm1932 = vcmp.lt.s32.totalorder %v1912, 2
        %vm1933 = vcmp.lt.s32.totalorder %v1912, 3
        %vm1934 = vcmp.lt.s32.totalorder %v1912, 4
        %v1935 = vsel %vm1931, %v1915, %v1918
        %v1936 = vsel %vm1934, %v1924, 2102212464
        %v1937 = vsel %vm1933, %v1921, %v1936
        %v1938 = vsel %vm1932, %v1935, %v1937
        %v1939 = vsel %vm1931, %v1918, %v1921
        %v1940 = vsel %vm1934, %v1927, 920167782
        %v1941 = vsel %vm1933, %v1924, %v1940
        %v1942 = vsel %vm1932, %v1939, %v1941
        %v1943 = vsel %vm1931, %v1921, %v1924
        %v1944 = vsel %vm1934, %v1930, 1326507024
        %v1945 = vsel %vm1933, %v1927, %v1944
        %v1946 = vsel %vm1932, %v1943, %v1945
        %v1947 = vshll.u32 %v1907, 8
        %v1948 = vand.u32 %v1947, 65535
        %v1949 = vshrl.u32 %v1947, 16
        %v1950 = vand.u32 %v1946, 65535
        %v1951 = vshrl.u32 %v1946, 16
        %v1952 = vmul.u32 %v1948, %v1950
        %v1953 = vmul.u32 %v1948, %v1951
        %v1954 = vmul.u32 %v1949, %v1950
        %v1955 = vmul.u32 %v1949, %v1951
        %v1956 = vshll.u32 %v1953, 16
        %v1957 = vshrl.u32 %v1953, 16
        %v1958 = vshll.u32 %v1954, 16
        %v1959 = vshrl.u32 %v1954, 16
        %vm1960 = vc.u32 %v1952, %v1956
        %v1961 = vsel %vm1960, 1, 0
        %v1962 = vadd.s32 %v1952, %v1956
        %v1963 = vadd.s32 %v1955, %v1961
        %vm1964 = vc.u32 %v1962, %v1958
        %v1965 = vsel %vm1964, 1, 0
        %v1966 = vadd.s32 %v1962, %v1958
        %v1967 = vadd.s32 %v1963, %v1965
        %v1968 = vadd.s32 %v1967, %v1957
        %v1969 = vadd.s32 %v1968, %v1959
        %v1970 = vand.u32 %v1947, 65535
        %v1971 = vshrl.u32 %v1947, 16
        %v1972 = vand.u32 %v1942, 65535
        %v1973 = vshrl.u32 %v1942, 16
        %v1974 = vmul.u32 %v1970, %v1972
        %v1975 = vmul.u32 %v1970, %v1973
        %v1976 = vmul.u32 %v1971, %v1972
        %v1977 = vmul.u32 %v1971, %v1973
        %v1978 = vshll.u32 %v1975, 16
        %v1979 = vshrl.u32 %v1975, 16
        %v1980 = vshll.u32 %v1976, 16
        %v1981 = vshrl.u32 %v1976, 16
        %vm1982 = vc.u32 %v1974, %v1978
        %v1983 = vsel %vm1982, 1, 0
        %v1984 = vadd.s32 %v1974, %v1978
        %v1985 = vadd.s32 %v1977, %v1983
        %vm1986 = vc.u32 %v1984, %v1980
        %v1987 = vsel %vm1986, 1, 0
        %v1988 = vadd.s32 %v1984, %v1980
        %v1989 = vadd.s32 %v1985, %v1987
        %v1990 = vadd.s32 %v1989, %v1979
        %v1991 = vadd.s32 %v1990, %v1981
        %v1992 = vmul.u32 %v1947, %v1938
        %v1993 = vadd.s32 %v1969, %v1988
        %vm1994 = vc.u32 %v1969, %v1988
        %v1995 = vadd.s32 %v1991, 1
        %v1996 = vsel %vm1994, %v1995, %v1991
        %v1997 = vadd.s32 %v1992, %v1996
        %v1998 = vadd.s32 %v1997, 536870912
        %v1999 = vshrl.u32 %v1998, 30
        %v2000 = vshll.u32 %v1999, 30
        %v2001 = vsub.s32 %v1997, %v2000
        %vm2002 = vcmp.lt.s32.totalorder %v2001, 0
        %v2003 = vsub.s32 0, %v2001
        %v2004 = vsel %vm2002, %v2003, %v2001
        %v2005 = vclz %v2004
        %v2006 = vsub.s32 %v2005, 2
        %vm2007 = vcmp.gt.s32.totalorder 0, %v2006
        %v2008 = vsel %vm2007, 0, %v2006
        %v2009 = vsub.s32 32, %v2008
        %v2010 = vshll.u32 %v2001, %v2008
        %v2011 = vshrl.u32 %v1993, %v2009
        %v2012 = vor.u32 %v2010, %v2011
        %v2013 = vsub.s32 4294967266, %v2008
        %v2014 = vadd.s32 %v2013, 127
        %v2015 = vshll.u32 %v2014, 23
        %v2016 = vor.u32 4788187, %v2015
        %v2017 = vand.u32 2147483647, %v2016
        %v2019 = vcvt.s32.f32 %v2012
        %v2020 = vmul.f32 %v2019, %v2017
        %v2021 = vxor.u32 %v2020, 2147483648
        %v2022 = vsel %vm1901, %v2021, %v2020
        %v2023 = vsub.s32 4, %v1999
        %v2024 = vsel %vm1901, %v2023, %v1999
        %v2025 = vsel %vm1900, %v813, %v2022
        %v2026 = vsel %vm1900, 0, %v2024
        %v2027 = vmul.f32 %v2025, %v2025
        %v2028 = vmul.f32 %v2027, -0.001358992
        %v2029 = vadd.f32 %v2028, 0.041655596
        %v2030 = vmul.f32 %v2027, %v2029
        %v2031 = vadd.f32 %v2030, -0.4999988
        %v2032 = vmul.f32 %v2027, %v2031
        %v2033 = vadd.f32 1.0, %v2032
        %v2034 = vmul.f32 %v2025, %v2025
        %v2035 = vmul.f32 %v2034, -0.00019511016
        %v2036 = vadd.f32 %v2035, 0.008332121
        %v2037 = vmul.f32 %v2034, %v2036
        %v2038 = vadd.f32 %v2037, -0.16666654
        %v2039 = vmul.f32 %v2034, %v2038
        %v2040 = vadd.f32 %v2039, 1.0
        %v2041 = vmul.f32 %v2040, %v2025
        %vm2042 = vweird.f32 %v813
        %v2043 = vadd.s32 %v2026, 3
        %v2044 = vand.u32 %v2043, 3
        %vm2045 = vcmp.lt.s32.totalorder %v2044, 2
        %vm2046 = vcmp.eq.s32.totalorder %v2044, 0
        %v2047 = vxor.u32 %v2041, 2147483648
        %v2048 = vsel %vm2046, %v2033, %v2047
        %vm2049 = vcmp.eq.s32.totalorder %v2044, 2
        %v2050 = vxor.u32 %v2033, 2147483648
        %v2051 = vsel %vm2049, %v2050, %v2041
        %v2052 = vsel %vm2045, %v2048, %v2051
        %v2053 = vsel %vm2042, nan, %v2052
        %v2054 = vld [vmem:[%s686] sm:$0xff]
        %v2055 = vld [vmem:[%s686 + $0x8] sm:$0xff]
        %v2056 = vld [vmem:[%s4] sm:$0x7]
        %2058 = vset.pattern.permute.xlu0 0
        %2059 = vperm.xlu0 %2058, %v2054
        %v2060 = vpop.permute.xlu0 %2059
        %2063 = vset.pattern.permute.xlu0 0
        %2064 = vperm.xlu0 %2063, %v2055
        %v2065 = vpop.permute.xlu0 %2064
        %v2067 = vperm.slane %v2056, 0
        %v2068 = vmul.f32 %v2060, %v2067
        %v2069 = vmul.f32 %v2065, %v2067
        %v2070 = vperm.slane %v2056, 2
        %v2071 = vadd.f32 %v2070, %v2068
        %v2072 = vadd.f32 %v2070, %v2069
        %2073 = vset.pattern.permute.xlu0 1
        %2074 = vperm.xlu0 %2073, %v2054
        %v2075 = vpop.permute.xlu0 %2074
        %2077 = vset.pattern.permute.xlu0 1
        %2078 = vperm.xlu0 %2077, %v2055
        %v2079 = vpop.permute.xlu0 %2078
        %v2081 = vperm.slane %v2056, 1
        %v2082 = vmul.f32 %v2075, %v2081
        %v2083 = vmul.f32 %v2079, %v2081
        %v2084 = vadd.f32 %v2071, %v2082
        %v2085 = vadd.f32 %v2072, %v2083
        %v2086 = vand.u32 2147483647, %v2084
        %vm2087 = vcmp.le.f32.partialorder %v2086, 0.7853982
        %vm2088 = vcmp.lt.s32.totalorder %v2084, 0
        %v2089 = vand.u32 %v2084, 2139095040
        %v2090 = vshrl.u32 %v2089, 23
        %v2091 = vsub.s32 %v2090, 127
        %v2092 = vand.u32 2147483647, %v2084
        %v2093 = vand.u32 %v2092, 8388607
        %v2094 = vor.u32 %v2093, 8388608
        %v2095 = vsub.s32 0, %v2094
        %v2096 = vadd.s32 %v2091, 1
        %vm2097 = vcmp.gt.s32.totalorder %v2096, 0
        %v2098 = vsel %vm2097, %v2096, 0
        %v2099 = vshrl.u32 %v2098, 5
        %v2100 = vand.u32 %v2098, 31
        %v2101 = vsub.s32 32, %v2100
        %v2102 = vshrl.u32 683565275, %v2101
        %v2103 = vshll.u32 683565275, %v2100
        %v2104 = vshrl.u32 2475754826, %v2101
        %v2105 = vor.u32 %v2103, %v2104
        %v2106 = vshll.u32 2475754826, %v2100
        %v2107 = vshrl.u32 2131351028, %v2101
        %v2108 = vor.u32 %v2106, %v2107
        %v2109 = vshll.u32 2131351028, %v2100
        %v2110 = vshrl.u32 2102212464, %v2101
        %v2111 = vor.u32 %v2109, %v2110
        %v2112 = vshll.u32 2102212464, %v2100
        %v2113 = vshrl.u32 920167782, %v2101
        %v2114 = vor.u32 %v2112, %v2113
        %v2115 = vshll.u32 920167782, %v2100
        %v2116 = vshrl.u32 1326507024, %v2101
        %v2117 = vor.u32 %v2115, %v2116
        %vm2118 = vcmp.lt.s32.totalorder %v2099, 1
        %vm2119 = vcmp.lt.s32.totalorder %v2099, 2
        %vm2120 = vcmp.lt.s32.totalorder %v2099, 3
        %vm2121 = vcmp.lt.s32.totalorder %v2099, 4
        %v2122 = vsel %vm2118, %v2102, %v2105
        %v2123 = vsel %vm2121, %v2111, 2102212464
        %v2124 = vsel %vm2120, %v2108, %v2123
        %v2125 = vsel %vm2119, %v2122, %v2124
        %v2126 = vsel %vm2118, %v2105, %v2108
        %v2127 = vsel %vm2121, %v2114, 920167782
        %v2128 = vsel %vm2120, %v2111, %v2127
        %v2129 = vsel %vm2119, %v2126, %v2128
        %v2130 = vsel %vm2118, %v2108, %v2111
        %v2131 = vsel %vm2121, %v2117, 1326507024
        %v2132 = vsel %vm2120, %v2114, %v2131
        %v2133 = vsel %vm2119, %v2130, %v2132
        %v2134 = vshll.u32 %v2094, 8
        %v2135 = vand.u32 %v2134, 65535
        %v2136 = vshrl.u32 %v2134, 16
        %v2137 = vand.u32 %v2133, 65535
        %v2138 = vshrl.u32 %v2133, 16
        %v2139 = vmul.u32 %v2135, %v2137
        %v2140 = vmul.u32 %v2135, %v2138
        %v2141 = vmul.u32 %v2136, %v2137
        %v2142 = vmul.u32 %v2136, %v2138
        %v2143 = vshll.u32 %v2140, 16
        %v2144 = vshrl.u32 %v2140, 16
        %v2145 = vshll.u32 %v2141, 16
        %v2146 = vshrl.u32 %v2141, 16
        %vm2147 = vc.u32 %v2139, %v2143
        %v2148 = vsel %vm2147, 1, 0
        %v2149 = vadd.s32 %v2139, %v2143
        %v2150 = vadd.s32 %v2142, %v2148
        %vm2151 = vc.u32 %v2149, %v2145
        %v2152 = vsel %vm2151, 1, 0
        %v2153 = vadd.s32 %v2149, %v2145
        %v2154 = vadd.s32 %v2150, %v2152
        %v2155 = vadd.s32 %v2154, %v2144
        %v2156 = vadd.s32 %v2155, %v2146
        %v2157 = vand.u32 %v2134, 65535
        %v2158 = vshrl.u32 %v2134, 16
        %v2159 = vand.u32 %v2129, 65535
        %v2160 = vshrl.u32 %v2129, 16
        %v2161 = vmul.u32 %v2157, %v2159
        %v2162 = vmul.u32 %v2157, %v2160
        %v2163 = vmul.u32 %v2158, %v2159
        %v2164 = vmul.u32 %v2158, %v2160
        %v2165 = vshll.u32 %v2162, 16
        %v2166 = vshrl.u32 %v2162, 16
        %v2167 = vshll.u32 %v2163, 16
        %v2168 = vshrl.u32 %v2163, 16
        %vm2169 = vc.u32 %v2161, %v2165
        %v2170 = vsel %vm2169, 1, 0
        %v2171 = vadd.s32 %v2161, %v2165
        %v2172 = vadd.s32 %v2164, %v2170
        %vm2173 = vc.u32 %v2171, %v2167
        %v2174 = vsel %vm2173, 1, 0
        %v2175 = vadd.s32 %v2171, %v2167
        %v2176 = vadd.s32 %v2172, %v2174
        %v2177 = vadd.s32 %v2176, %v2166
        %v2178 = vadd.s32 %v2177, %v2168
        %v2179 = vmul.u32 %v2134, %v2125
        %v2180 = vadd.s32 %v2156, %v2175
        %vm2181 = vc.u32 %v2156, %v2175
        %v2182 = vadd.s32 %v2178, 1
        %v2183 = vsel %vm2181, %v2182, %v2178
        %v2184 = vadd.s32 %v2179, %v2183
        %v2185 = vadd.s32 %v2184, 536870912
        %v2186 = vshrl.u32 %v2185, 30
        %v2187 = vshll.u32 %v2186, 30
        %v2188 = vsub.s32 %v2184, %v2187
        %vm2189 = vcmp.lt.s32.totalorder %v2188, 0
        %v2190 = vsub.s32 0, %v2188
        %v2191 = vsel %vm2189, %v2190, %v2188
        %v2192 = vclz %v2191
        %v2193 = vsub.s32 %v2192, 2
        %vm2194 = vcmp.gt.s32.totalorder 0, %v2193
        %v2195 = vsel %vm2194, 0, %v2193
        %v2196 = vsub.s32 32, %v2195
        %v2197 = vshll.u32 %v2188, %v2195
        %v2198 = vshrl.u32 %v2180, %v2196
        %v2199 = vor.u32 %v2197, %v2198
        %v2200 = vsub.s32 4294967266, %v2195
        %v2201 = vadd.s32 %v2200, 127
        %v2202 = vshll.u32 %v2201, 23
        %v2203 = vor.u32 4788187, %v2202
        %v2204 = vand.u32 2147483647, %v2203
        %v2206 = vcvt.s32.f32 %v2199
        %v2207 = vmul.f32 %v2206, %v2204
        %v2208 = vxor.u32 %v2207, 2147483648
        %v2209 = vsel %vm2088, %v2208, %v2207
        %v2210 = vsub.s32 4, %v2186
        %v2211 = vsel %vm2088, %v2210, %v2186
        %v2212 = vsel %vm2087, %v2084, %v2209
        %v2213 = vsel %vm2087, 0, %v2211
        %v2214 = vmul.f32 %v2212, %v2212
        %v2215 = vmul.f32 %v2214, -0.001358992
        %v2216 = vadd.f32 %v2215, 0.041655596
        %v2217 = vmul.f32 %v2214, %v2216
        %v2218 = vadd.f32 %v2217, -0.4999988
        %v2219 = vmul.f32 %v2214, %v2218
        %v2220 = vadd.f32 1.0, %v2219
        %v2221 = vmul.f32 %v2212, %v2212
        %v2222 = vmul.f32 %v2221, -0.00019511016
        %v2223 = vadd.f32 %v2222, 0.008332121
        %v2224 = vmul.f32 %v2221, %v2223
        %v2225 = vadd.f32 %v2224, -0.16666654
        %v2226 = vmul.f32 %v2221, %v2225
        %v2227 = vadd.f32 %v2226, 1.0
        %v2228 = vmul.f32 %v2227, %v2212
        %vm2229 = vweird.f32 %v2084
        %v2230 = vadd.s32 %v2213, 3
        %v2231 = vand.u32 %v2230, 3
        %vm2232 = vcmp.lt.s32.totalorder %v2231, 2
        %vm2233 = vcmp.eq.s32.totalorder %v2231, 0
        %v2234 = vxor.u32 %v2228, 2147483648
        %v2235 = vsel %vm2233, %v2220, %v2234
        %vm2236 = vcmp.eq.s32.totalorder %v2231, 2
        %v2237 = vxor.u32 %v2220, 2147483648
        %v2238 = vsel %vm2236, %v2237, %v2228
        %v2239 = vsel %vm2232, %v2235, %v2238
        %v2240 = vsel %vm2229, nan, %v2239
        %v2241 = vand.u32 2147483647, %v2085
        %vm2242 = vcmp.le.f32.partialorder %v2241, 0.7853982
        %vm2243 = vcmp.lt.s32.totalorder %v2085, 0
        %v2244 = vand.u32 %v2085, 2139095040
        %v2245 = vshrl.u32 %v2244, 23
        %v2246 = vsub.s32 %v2245, 127
        %v2247 = vand.u32 2147483647, %v2085
        %v2248 = vand.u32 %v2247, 8388607
        %v2249 = vor.u32 %v2248, 8388608
        %v2250 = vsub.s32 0, %v2249
        %v2251 = vadd.s32 %v2246, 1
        %vm2252 = vcmp.gt.s32.totalorder %v2251, 0
        %v2253 = vsel %vm2252, %v2251, 0
        %v2254 = vshrl.u32 %v2253, 5
        %v2255 = vand.u32 %v2253, 31
        %v2256 = vsub.s32 32, %v2255
        %v2257 = vshrl.u32 683565275, %v2256
        %v2258 = vshll.u32 683565275, %v2255
        %v2259 = vshrl.u32 2475754826, %v2256
        %v2260 = vor.u32 %v2258, %v2259
        %v2261 = vshll.u32 2475754826, %v2255
        %v2262 = vshrl.u32 2131351028, %v2256
        %v2263 = vor.u32 %v2261, %v2262
        %v2264 = vshll.u32 2131351028, %v2255
        %v2265 = vshrl.u32 2102212464, %v2256
        %v2266 = vor.u32 %v2264, %v2265
        %v2267 = vshll.u32 2102212464, %v2255
        %v2268 = vshrl.u32 920167782, %v2256
        %v2269 = vor.u32 %v2267, %v2268
        %v2270 = vshll.u32 920167782, %v2255
        %v2271 = vshrl.u32 1326507024, %v2256
        %v2272 = vor.u32 %v2270, %v2271
        %vm2273 = vcmp.lt.s32.totalorder %v2254, 1
        %vm2274 = vcmp.lt.s32.totalorder %v2254, 2
        %vm2275 = vcmp.lt.s32.totalorder %v2254, 3
        %vm2276 = vcmp.lt.s32.totalorder %v2254, 4
        %v2277 = vsel %vm2273, %v2257, %v2260
        %v2278 = vsel %vm2276, %v2266, 2102212464
        %v2279 = vsel %vm2275, %v2263, %v2278
        %v2280 = vsel %vm2274, %v2277, %v2279
        %v2281 = vsel %vm2273, %v2260, %v2263
        %v2282 = vsel %vm2276, %v2269, 920167782
        %v2283 = vsel %vm2275, %v2266, %v2282
        %v2284 = vsel %vm2274, %v2281, %v2283
        %v2285 = vsel %vm2273, %v2263, %v2266
        %v2286 = vsel %vm2276, %v2272, 1326507024
        %v2287 = vsel %vm2275, %v2269, %v2286
        %v2288 = vsel %vm2274, %v2285, %v2287
        %v2289 = vshll.u32 %v2249, 8
        %v2290 = vand.u32 %v2289, 65535
        %v2291 = vshrl.u32 %v2289, 16
        %v2292 = vand.u32 %v2288, 65535
        %v2293 = vshrl.u32 %v2288, 16
        %v2294 = vmul.u32 %v2290, %v2292
        %v2295 = vmul.u32 %v2290, %v2293
        %v2296 = vmul.u32 %v2291, %v2292
        %v2297 = vmul.u32 %v2291, %v2293
        %v2298 = vshll.u32 %v2295, 16
        %v2299 = vshrl.u32 %v2295, 16
        %v2300 = vshll.u32 %v2296, 16
        %v2301 = vshrl.u32 %v2296, 16
        %vm2302 = vc.u32 %v2294, %v2298
        %v2303 = vsel %vm2302, 1, 0
        %v2304 = vadd.s32 %v2294, %v2298
        %v2305 = vadd.s32 %v2297, %v2303
        %vm2306 = vc.u32 %v2304, %v2300
        %v2307 = vsel %vm2306, 1, 0
        %v2308 = vadd.s32 %v2304, %v2300
        %v2309 = vadd.s32 %v2305, %v2307
        %v2310 = vadd.s32 %v2309, %v2299
        %v2311 = vadd.s32 %v2310, %v2301
        %v2312 = vand.u32 %v2289, 65535
        %v2313 = vshrl.u32 %v2289, 16
        %v2314 = vand.u32 %v2284, 65535
        %v2315 = vshrl.u32 %v2284, 16
        %v2316 = vmul.u32 %v2312, %v2314
        %v2317 = vmul.u32 %v2312, %v2315
        %v2318 = vmul.u32 %v2313, %v2314
        %v2319 = vmul.u32 %v2313, %v2315
        %v2320 = vshll.u32 %v2317, 16
        %v2321 = vshrl.u32 %v2317, 16
        %v2322 = vshll.u32 %v2318, 16
        %v2323 = vshrl.u32 %v2318, 16
        %vm2324 = vc.u32 %v2316, %v2320
        %v2325 = vsel %vm2324, 1, 0
        %v2326 = vadd.s32 %v2316, %v2320
        %v2327 = vadd.s32 %v2319, %v2325
        %vm2328 = vc.u32 %v2326, %v2322
        %v2329 = vsel %vm2328, 1, 0
        %v2330 = vadd.s32 %v2326, %v2322
        %v2331 = vadd.s32 %v2327, %v2329
        %v2332 = vadd.s32 %v2331, %v2321
        %v2333 = vadd.s32 %v2332, %v2323
        %v2334 = vmul.u32 %v2289, %v2280
        %v2335 = vadd.s32 %v2311, %v2330
        %vm2336 = vc.u32 %v2311, %v2330
        %v2337 = vadd.s32 %v2333, 1
        %v2338 = vsel %vm2336, %v2337, %v2333
        %v2339 = vadd.s32 %v2334, %v2338
        %v2340 = vadd.s32 %v2339, 536870912
        %v2341 = vshrl.u32 %v2340, 30
        %v2342 = vshll.u32 %v2341, 30
        %v2343 = vsub.s32 %v2339, %v2342
        %vm2344 = vcmp.lt.s32.totalorder %v2343, 0
        %v2345 = vsub.s32 0, %v2343
        %v2346 = vsel %vm2344, %v2345, %v2343
        %v2347 = vclz %v2346
        %v2348 = vsub.s32 %v2347, 2
        %vm2349 = vcmp.gt.s32.totalorder 0, %v2348
        %v2350 = vsel %vm2349, 0, %v2348
        %v2351 = vsub.s32 32, %v2350
        %v2352 = vshll.u32 %v2343, %v2350
        %v2353 = vshrl.u32 %v2335, %v2351
        %v2354 = vor.u32 %v2352, %v2353
        %v2355 = vsub.s32 4294967266, %v2350
        %v2356 = vadd.s32 %v2355, 127
        %v2357 = vshll.u32 %v2356, 23
        %v2358 = vor.u32 4788187, %v2357
        %v2359 = vand.u32 2147483647, %v2358
        %v2361 = vcvt.s32.f32 %v2354
        %v2362 = vmul.f32 %v2361, %v2359
        %v2363 = vxor.u32 %v2362, 2147483648
        %v2364 = vsel %vm2243, %v2363, %v2362
        %v2365 = vsub.s32 4, %v2341
        %v2366 = vsel %vm2243, %v2365, %v2341
        %v2367 = vsel %vm2242, %v2085, %v2364
        %v2368 = vsel %vm2242, 0, %v2366
        %v2369 = vmul.f32 %v2367, %v2367
        %v2370 = vmul.f32 %v2369, -0.001358992
        %v2371 = vadd.f32 %v2370, 0.041655596
        %v2372 = vmul.f32 %v2369, %v2371
        %v2373 = vadd.f32 %v2372, -0.4999988
        %v2374 = vmul.f32 %v2369, %v2373
        %v2375 = vadd.f32 1.0, %v2374
        %v2376 = vmul.f32 %v2367, %v2367
        %v2377 = vmul.f32 %v2376, -0.00019511016
        %v2378 = vadd.f32 %v2377, 0.008332121
        %v2379 = vmul.f32 %v2376, %v2378
        %v2380 = vadd.f32 %v2379, -0.16666654
        %v2381 = vmul.f32 %v2376, %v2380
        %v2382 = vadd.f32 %v2381, 1.0
        %v2383 = vmul.f32 %v2382, %v2367
        %vm2384 = vweird.f32 %v2085
        %v2385 = vadd.s32 %v2368, 3
        %v2386 = vand.u32 %v2385, 3
        %vm2387 = vcmp.lt.s32.totalorder %v2386, 2
        %vm2388 = vcmp.eq.s32.totalorder %v2386, 0
        %v2389 = vxor.u32 %v2383, 2147483648
        %v2390 = vsel %vm2388, %v2375, %v2389
        %vm2391 = vcmp.eq.s32.totalorder %v2386, 2
        %v2392 = vxor.u32 %v2375, 2147483648
        %v2393 = vsel %vm2391, %v2392, %v2383
        %v2394 = vsel %vm2387, %v2390, %v2393
        %v2395 = vsel %vm2384, nan, %v2394
        %v2396 = vpack.c.bf16 %v1123, %v968
        %v2397 = vpack.c.bf16 %v1433, %v1278
        %v2398 = vpack.c.bf16 %v1743, %v1588
        %v2399 = vpack.c.bf16 %v2053, %v1898
        %v2400 = vld [vmem:[%s6] sm:$0xf]
        %v2401 = vld [vmem:[%s6 + $0x4] sm:$0xf]
        %v2402 = vld [vmem:[%s6 + $0x8] sm:$0xf]
        %v2403 = vld [vmem:[%s6 + $0xc] sm:$0xf]
        %v2408 = vunpack.c.l.b16 %v2400
        %v2409 = vunpack.c.l.b16 %v2401
        %v2410 = vunpack.c.l.b16 %v2402
        %v2411 = vunpack.c.l.b16 %v2403
        %v2412 = vpack.c.b16 %v2409, %v2408
        %v2413 = vpack.c.b16 %v2411, %v2410
        %vm2416 = vcmask 261120
        %v2418 = vsel %vm2416, %v2396, 0
        %v2421 = vsel %vm2416, %v2397, 0
        %v2424 = vsel %vm2416, %v2398, 0
        %v2427 = vsel %vm2416, %v2399, 0
        %2429 = vmatpush.bf16.msra.mxu0 0
        %2430 = vmatpush.bf16.msra.mxu0 0
        %2431 = vmatpush.bf16.msra.mxu0 0
        %2432 = vmatpush.bf16.msra.mxu0 0
        %2433 = vmatpush.bf16.msra.mxu0 0
        %2434 = vmatpush.bf16.msra.mxu0 0
        %2435 = vmatpush.bf16.msra.mxu0 %v2413
        %2436 = vmatpush.bf16.msra.mxu0 %v2412
        %2437 = vmatmul.bf16.gmra.mxu0 %v2418
        %v2438 = vpop.f32.mrf.mxu0
        %v2439 = vadd.f32 0.0, %v2438
        %v2440 = vpop.f32.mrf.mxu0
        %v2441 = vadd.f32 0.0, %v2440
        %2442 = vmatmul.bf16.gmra.mxu0 %v2421
        %v2443 = vpop.f32.mrf.mxu0
        %v2444 = vadd.f32 0.0, %v2443
        %v2445 = vpop.f32.mrf.mxu0
        %v2446 = vadd.f32 0.0, %v2445
        %2447 = vmatmul.bf16.gmra.mxu0 %v2424
        %v2448 = vpop.f32.mrf.mxu0
        %v2449 = vadd.f32 0.0, %v2448
        %v2450 = vpop.f32.mrf.mxu0
        %v2451 = vadd.f32 0.0, %v2450
        %2452 = vmatmul.bf16.gmra.mxu0 %v2427
        %v2453 = vpop.f32.mrf.mxu0
        %v2454 = vadd.f32 0.0, %v2453
        %v2455 = vpop.f32.mrf.mxu0
        %v2456 = vadd.f32 0.0, %v2455
        %2457 = vdwg.mxu0
        %v2458 = vld [vmem:[%s7] sm:$0xf]
        %v2459 = vld [vmem:[%s7 + $0x4] sm:$0xf]
        %v2460 = vld [vmem:[%s7 + $0x8] sm:$0xf]
        %v2461 = vld [vmem:[%s7 + $0xc] sm:$0xf]
        %v2466 = vunpack.c.l.b16 %v2458
        %v2467 = vunpack.c.l.b16 %v2459
        %v2468 = vunpack.c.l.b16 %v2460
        %v2469 = vunpack.c.l.b16 %v2461
        %v2470 = vpack.c.b16 %v2467, %v2466
        %v2471 = vpack.c.b16 %v2469, %v2468
        %2474 = vmatpush.bf16.msra.mxu0 0
        %2475 = vmatpush.bf16.msra.mxu0 0
        %2476 = vmatpush.bf16.msra.mxu0 0
        %2477 = vmatpush.bf16.msra.mxu0 0
        %2478 = vmatpush.bf16.msra.mxu0 0
        %2479 = vmatpush.bf16.msra.mxu0 0
        %2480 = vmatpush.bf16.msra.mxu0 %v2471
        %2481 = vmatpush.bf16.msra.mxu0 %v2470
        %2482 = vmatmul.bf16.gmra.mxu0 %v2418
        %v2483 = vpop.f32.mrf.mxu0
        %v2484 = vadd.f32 0.0, %v2483
        %v2485 = vpop.f32.mrf.mxu0
        %v2486 = vadd.f32 0.0, %v2485
        %2487 = vmatmul.bf16.gmra.mxu0 %v2421
        %v2488 = vpop.f32.mrf.mxu0
        %v2489 = vadd.f32 0.0, %v2488
        %v2490 = vpop.f32.mrf.mxu0
        %v2491 = vadd.f32 0.0, %v2490
        %2492 = vmatmul.bf16.gmra.mxu0 %v2424
        %v2493 = vpop.f32.mrf.mxu0
        %v2494 = vadd.f32 0.0, %v2493
        %v2495 = vpop.f32.mrf.mxu0
        %v2496 = vadd.f32 0.0, %v2495
        %2497 = vmatmul.bf16.gmra.mxu0 %v2427
        %v2498 = vpop.f32.mrf.mxu0
        %v2499 = vadd.f32 0.0, %v2498
        %v2500 = vpop.f32.mrf.mxu0
        %v2501 = vadd.f32 0.0, %v2500
        %2502 = vdwg.mxu0
        %v2503 = vpack.c.bf16 %v2439, %v2439
        %v2504 = vpack.c.bf16 %v2441, %v2441
        %v2505 = vpack.c.bf16 %v2444, %v2444
        %v2506 = vpack.c.bf16 %v2446, %v2446
        %v2507 = vpack.c.bf16 %v2449, %v2449
        %v2508 = vpack.c.bf16 %v2451, %v2451
        %v2509 = vpack.c.bf16 %v2454, %v2454
        %v2510 = vpack.c.bf16 %v2456, %v2456
        %v2511 = vpack.c.bf16 %v2484, %v2484
        %v2512 = vpack.c.bf16 %v2486, %v2486
        %v2513 = vpack.c.bf16 %v2489, %v2489
        %v2514 = vpack.c.bf16 %v2491, %v2491
        %v2515 = vpack.c.bf16 %v2494, %v2494
        %v2516 = vpack.c.bf16 %v2496, %v2496
        %v2517 = vpack.c.bf16 %v2499, %v2499
        %v2518 = vpack.c.bf16 %v2501, %v2501
        %v2519 = vld [vmem:[%s5] sm:$0xf]
        %v2520 = vld [vmem:[%s681] sm:$0x1]
        %v2522 = vperm.slane %v2520, 0
        %v2532 = vunpack.c.l.b16 %v2503
        %v2533 = vunpack.c.l.b16 %v2504
        %v2534 = vunpack.c.l.b16 %v2505
        %v2535 = vunpack.c.l.b16 %v2506
        %v2536 = vunpack.c.l.b16 %v2507
        %v2537 = vunpack.c.l.b16 %v2508
        %v2538 = vunpack.c.l.b16 %v2509
        %v2539 = vunpack.c.l.b16 %v2510
        %v2540 = vpack.c.b16 %v2533, %v2532
        %v2541 = vpack.c.b16 %v2535, %v2534
        %v2542 = vpack.c.b16 %v2537, %v2536
        %v2543 = vpack.c.b16 %v2539, %v2538
        %v2545 = vsel %vm2416, %v2519, 0
        %v2548 = vsel %vm2416, %v2540, 0
        %v2551 = vsel %vm2416, %v2541, 0
        %v2554 = vsel %vm2416, %v2542, 0
        %v2557 = vsel %vm2416, %v2543, 0
        %2559 = vmatpush.bf16.xpose.msra.mxu0 0
        %2560 = vmatpush.bf16.xpose.msra.mxu0 0
        %2561 = vmatpush.bf16.xpose.msra.mxu0 0
        %2562 = vmatpush.bf16.xpose.msra.mxu0 0
        %2563 = vmatpush.bf16.xpose.msra.mxu0 %v2557
        %2564 = vmatpush.bf16.xpose.msra.mxu0 %v2554
        %2565 = vmatpush.bf16.xpose.msra.mxu0 %v2551
        %2566 = vmatpush.bf16.xpose.msra.mxu0 %v2548
        %2567 = vmatmul.bf16.gmra.mxu0 %v2545
        %v2568 = vpop.f32.mrf.mxu0
        %v2569 = vadd.f32 %v2522, %v2568
        %v2570 = vpop.f32.mrf.mxu0
        %2571 = vdwg.mxu0
        %vm2572 = vcmask 523264
        %v2573 = vsel %vm2572, %v2569, -inf
        %2574 = vmax.xlane.f32.xlu0 %v2573
        %v2575 = vpop.xlane.xlu0 %2574
        %v2576 = vsub.f32 %v2569, %v2575
        %v2577 = vmul.f32 %v2576, 1.442695
        %v2578 = vpow.pop %v2577
        %v2579 = vsel %vm2572, %v2578, 0.0
        %2580 = vadd.xlane.f32.xlu0 %v2579
        %v2581 = vpop.xlane.xlu0 %2580
        %v2582 = vrcp.pop %v2581
        %v2583 = vmul.f32 %v2578, %v2582
        %v2584 = vpack.c.bf16 %v2583, %v2583
        %v2593 = vunpack.c.l.b16 %v2511
        %v2594 = vunpack.c.l.b16 %v2512
        %v2595 = vunpack.c.l.b16 %v2513
        %v2596 = vunpack.c.l.b16 %v2514
        %v2597 = vunpack.c.l.b16 %v2515
        %v2598 = vunpack.c.l.b16 %v2516
        %v2599 = vunpack.c.l.b16 %v2517
        %v2600 = vunpack.c.l.b16 %v2518
        %v2601 = vpack.c.b16 %v2594, %v2593
        %v2602 = vpack.c.b16 %v2596, %v2595
        %v2603 = vpack.c.b16 %v2598, %v2597
        %v2604 = vpack.c.b16 %v2600, %v2599
        %v2610 = vsel %vm2572, %v2584, 0
        %2612 = vmatpush.bf16.msra.mxu0 0
        %2613 = vmatpush.bf16.msra.mxu0 0
        %2614 = vmatpush.bf16.msra.mxu0 0
        %2615 = vmatpush.bf16.msra.mxu0 0
        %2616 = vmatpush.bf16.msra.mxu0 %v2604
        %2617 = vmatpush.bf16.msra.mxu0 %v2603
        %2618 = vmatpush.bf16.msra.mxu0 %v2602
        %2619 = vmatpush.bf16.msra.mxu0 %v2601
        %2620 = vmatmul.bf16.gmra.mxu0 %v2610
        %v2621 = vpop.f32.mrf.mxu0
        %v2622 = vadd.f32 0.0, %v2621
        %v2623 = vpop.f32.mrf.mxu0
        %2624 = vdwg.mxu0
        %v2625 = vpack.c.bf16 %v2622, %v2622
        %v2626 = vld [vmem:[%s8] sm:$0xf]
        %v2627 = vld [vmem:[%s8 + $0x4] sm:$0xf]
        %v2628 = vld [vmem:[%s8 + $0x8] sm:$0xf]
        %v2629 = vld [vmem:[%s8 + $0xc] sm:$0xf]
        %v2630 = vld [vmem:[%s9] sm:$0x1]
        %v2632 = vperm.slane %v2630, 0
        %v2638 = vunpack.c.l.b16 %v2626
        %v2639 = vunpack.c.l.b16 %v2627
        %v2640 = vunpack.c.l.b16 %v2628
        %v2641 = vunpack.c.l.b16 %v2629
        %v2642 = vpack.c.b16 %v2639, %v2638
        %v2643 = vpack.c.b16 %v2641, %v2640
        %v2647 = vsel %vm2416, %v2625, 0
        %2649 = vmatpush.bf16.msra.mxu0 0
        %2650 = vmatpush.bf16.msra.mxu0 0
        %2651 = vmatpush.bf16.msra.mxu0 0
        %2652 = vmatpush.bf16.msra.mxu0 0
        %2653 = vmatpush.bf16.msra.mxu0 0
        %2654 = vmatpush.bf16.msra.mxu0 0
        %2655 = vmatpush.bf16.msra.mxu0 %v2643
        %2656 = vmatpush.bf16.msra.mxu0 %v2642
        %2657 = vmatmul.bf16.gmra.mxu0 %v2647
        %v2658 = vpop.f32.mrf.mxu0
        %v2659 = vadd.f32 %v2632, %v2658
        %v2660 = vpop.f32.mrf.mxu0
        %2661 = vdwg.mxu0
        %v2662 = vmul.f32 %v2659, %v2659
        %v2663 = vmul.f32 %v2659, %v2662
        %v2664 = vmul.f32 %v2663, 0.044715
        %v2665 = vadd.f32 %v2659, %v2664
        %v2666 = vmul.f32 %v2665, 0.7978846
        %v2667 = vtanh.pop %v2666
        %v2668 = vadd.f32 %v2667, 1.0
        %v2669 = vmul.f32 %v2668, 0.5
        %v2670 = vmul.f32 %v2659, %v2669
        %v2671 = vpack.c.bf16 %v2670, %v2670
        %v2672 = vld [vmem:[%s10] sm:$0xf]
        %v2673 = vld [vmem:[%s10 + $0x4] sm:$0xf]
        %v2674 = vld [vmem:[%s10 + $0x8] sm:$0xf]
        %v2675 = vld [vmem:[%s10 + $0xc] sm:$0xf]
        %v2676 = vld [vmem:[%s10 + $0x10] sm:$0xf]
        %v2677 = vld [vmem:[%s10 + $0x14] sm:$0xf]
        %v2678 = vld [vmem:[%s10 + $0x18] sm:$0xf]
        %v2679 = vld [vmem:[%s10 + $0x1c] sm:$0xf]
        %v2680 = vld [vmem:[%s11] sm:$0x1]
        %v2682 = vperm.slane %v2680, 0
        %v2692 = vunpack.c.l.b16 %v2672
        %v2693 = vunpack.c.l.b16 %v2673
        %v2694 = vunpack.c.l.b16 %v2674
        %v2695 = vunpack.c.l.b16 %v2675
        %v2696 = vunpack.c.l.b16 %v2676
        %v2697 = vunpack.c.l.b16 %v2677
        %v2698 = vunpack.c.l.b16 %v2678
        %v2699 = vunpack.c.l.b16 %v2679
        %v2700 = vpack.c.b16 %v2693, %v2692
        %v2701 = vpack.c.b16 %v2695, %v2694
        %v2702 = vpack.c.b16 %v2697, %v2696
        %v2703 = vpack.c.b16 %v2699, %v2698
        %v2709 = vsel %vm2572, %v2671, 0
        %2711 = vmatpush.bf16.msra.mxu0 0
        %2712 = vmatpush.bf16.msra.mxu0 0
        %2713 = vmatpush.bf16.msra.mxu0 0
        %2714 = vmatpush.bf16.msra.mxu0 0
        %2715 = vmatpush.bf16.msra.mxu0 %v2703
        %2716 = vmatpush.bf16.msra.mxu0 %v2702
        %2717 = vmatpush.bf16.msra.mxu0 %v2701
        %2718 = vmatpush.bf16.msra.mxu0 %v2700
        %2719 = vmatmul.bf16.gmra.mxu0 %v2709
        %v2720 = vpop.f32.mrf.mxu0
        %v2721 = vadd.f32 %v2682, %v2720
        %v2722 = vpop.f32.mrf.mxu0
        %2723 = vdwg.mxu0
        %2724 = vst.msk [vmem:[%s659] sm:$0xff] %vm2416, %v2721
        %v2725 = vpack.c.bf16 %v2395, %v2240
        %v2726 = vld [vmem:[%s12] sm:$0xf]
        %v2727 = vld [vmem:[%s12 + $0x4] sm:$0xf]
        %v2728 = vld [vmem:[%s12 + $0x8] sm:$0xf]
        %v2729 = vld [vmem:[%s12 + $0xc] sm:$0xf]
        %v2734 = vunpack.c.l.b16 %v2726
        %v2735 = vunpack.c.l.b16 %v2727
        %v2736 = vunpack.c.l.b16 %v2728
        %v2737 = vunpack.c.l.b16 %v2729
        %v2738 = vpack.c.b16 %v2735, %v2734
        %v2739 = vpack.c.b16 %v2737, %v2736
        %v2743 = vsel %vm2416, %v2725, 0
        %2745 = vmatpush.bf16.msra.mxu0 0
        %2746 = vmatpush.bf16.msra.mxu0 0
        %2747 = vmatpush.bf16.msra.mxu0 0
        %2748 = vmatpush.bf16.msra.mxu0 0
        %2749 = vmatpush.bf16.msra.mxu0 0
        %2750 = vmatpush.bf16.msra.mxu0 0
        %2751 = vmatpush.bf16.msra.mxu0 %v2739
        %2752 = vmatpush.bf16.msra.mxu0 %v2738
        %2753 = vmatmul.bf16.gmra.mxu0 %v2743
        %v2754 = vpop.f32.mrf.mxu0
        %v2755 = vadd.f32 0.0, %v2754
        %v2756 = vpop.f32.mrf.mxu0
        %v2757 = vadd.f32 0.0, %v2756
        %2758 = vdwg.mxu0
        %v2759 = vmul.f32 %v2755, 0.17677669
        %v2760 = vmul.f32 %v2757, 0.17677669
        %v2761 = vpack.c.bf16 %v2759, %v2759
        %v2762 = vpack.c.bf16 %v2760, %v2760
        %v2763 = vpack.c.bf16 %v2721, %v2721
        %v2764 = vld [vmem:[%s13] sm:$0xf]
        %v2765 = vld [vmem:[%s13 + $0x4] sm:$0xf]
        %v2766 = vld [vmem:[%s13 + $0x8] sm:$0xf]
        %v2767 = vld [vmem:[%s13 + $0xc] sm:$0xf]
        %v2772 = vunpack.c.l.b16 %v2764
        %v2773 = vunpack.c.l.b16 %v2765
        %v2774 = vunpack.c.l.b16 %v2766
        %v2775 = vunpack.c.l.b16 %v2767
        %v2776 = vpack.c.b16 %v2773, %v2772
        %v2777 = vpack.c.b16 %v2775, %v2774
        %v2781 = vsel %vm2416, %v2763, 0
        %2783 = vmatpush.bf16.msra.mxu0 0
        %2784 = vmatpush.bf16.msra.mxu0 0
        %2785 = vmatpush.bf16.msra.mxu0 0
        %2786 = vmatpush.bf16.msra.mxu0 0
        %2787 = vmatpush.bf16.msra.mxu0 0
        %2788 = vmatpush.bf16.msra.mxu0 0
        %2789 = vmatpush.bf16.msra.mxu0 %v2777
        %2790 = vmatpush.bf16.msra.mxu0 %v2776
        %2791 = vmatmul.bf16.gmra.mxu0 %v2781
        %v2792 = vpop.f32.mrf.mxu0
        %v2793 = vadd.f32 0.0, %v2792
        %v2794 = vpop.f32.mrf.mxu0
        %2795 = vdwg.mxu0
        %v2796 = vpack.c.bf16 %v2793, %v2793
        %v2797 = vld [vmem:[%s14] sm:$0xf]
        %v2798 = vld [vmem:[%s14 + $0x4] sm:$0xf]
        %v2799 = vld [vmem:[%s14 + $0x8] sm:$0xf]
        %v2800 = vld [vmem:[%s14 + $0xc] sm:$0xf]
        %v2805 = vunpack.c.l.b16 %v2797
        %v2806 = vunpack.c.l.b16 %v2798
        %v2807 = vunpack.c.l.b16 %v2799
        %v2808 = vunpack.c.l.b16 %v2800
        %v2809 = vpack.c.b16 %v2806, %v2805
        %v2810 = vpack.c.b16 %v2808, %v2807
        %2813 = vmatpush.bf16.msra.mxu0 0
        %2814 = vmatpush.bf16.msra.mxu0 0
        %2815 = vmatpush.bf16.msra.mxu0 0
        %2816 = vmatpush.bf16.msra.mxu0 0
        %2817 = vmatpush.bf16.msra.mxu0 0
        %2818 = vmatpush.bf16.msra.mxu0 0
        %2819 = vmatpush.bf16.msra.mxu0 %v2810
        %2820 = vmatpush.bf16.msra.mxu0 %v2809
        %2821 = vmatmul.bf16.gmra.mxu0 %v2781
        %v2822 = vpop.f32.mrf.mxu0
        %v2823 = vadd.f32 0.0, %v2822
        %v2824 = vpop.f32.mrf.mxu0
        %2825 = vdwg.mxu0
        %v2826 = vpack.c.bf16 %v2823, %v2823
        %v2829 = vunpack.c.l.b16 %v2761
        %v2830 = vunpack.c.l.b16 %v2762
        %v2831 = vpack.c.b16 %v2830, %v2829
        %v2833 = vsel %vm2416, %v2831, 0
        %v2836 = vsel %vm2416, %v2796, 0
        %2838 = vmatpush.bf16.xpose.msra.mxu0 0
        %2839 = vmatpush.bf16.xpose.msra.mxu0 0
        %2840 = vmatpush.bf16.xpose.msra.mxu0 0
        %2841 = vmatpush.bf16.xpose.msra.mxu0 0
        %2842 = vmatpush.bf16.xpose.msra.mxu0 0
        %2843 = vmatpush.bf16.xpose.msra.mxu0 0
        %2844 = vmatpush.bf16.xpose.msra.mxu0 0
        %2845 = vmatpush.bf16.xpose.msra.mxu0 %v2836
        %2846 = vmatmul.bf16.gmra.mxu0 %v2833
        %v2847 = vpop.f32.mrf.mxu0
        %v2848 = vadd.f32 0.0, %v2847
        %v2849 = vpop.f32.mrf.mxu0
        %v2850 = vadd.f32 0.0, %v2849
        %2851 = vdwg.mxu0
        %vm2852 = vcmask 64512
        %v2853 = vsel %vm2852, %v2848, -inf
        %2854 = vmax.xlane.f32.xlu0 %v2853
        %v2855 = vpop.xlane.xlu0 %2854
        %v2856 = vsel %vm2852, %v2850, -inf
        %2857 = vmax.xlane.f32.xlu0 %v2856
        %v2858 = vpop.xlane.xlu0 %2857
        %v2859 = vsub.f32 %v2848, %v2855
        %v2860 = vsub.f32 %v2850, %v2858
        %v2861 = vmul.f32 %v2859, 1.442695
        %v2862 = vpow.pop %v2861
        %v2863 = vmul.f32 %v2860, 1.442695
        %v2864 = vpow.pop %v2863
        %v2865 = vsel %vm2852, %v2862, 0.0
        %2866 = vadd.xlane.f32.xlu0 %v2865
        %v2867 = vpop.xlane.xlu0 %2866
        %v2868 = vsel %vm2852, %v2864, 0.0
        %2869 = vadd.xlane.f32.xlu0 %v2868
        %v2870 = vpop.xlane.xlu0 %2869
        %v2871 = vrcp.pop %v2867
        %v2872 = vmul.f32 %v2867, %v2871
        %v2873 = vsub.f32 1.0, %v2872
        %v2874 = vmul.f32 %v2871, %v2873
        %v2875 = vadd.f32 %v2871, %v2874
        %vm2876 = vweird.f32 %v2867
        %vm2877 = vweird.f32 %v2871
        %vm2878 = vmor %vm2876, %vm2877
        %v2879 = vsel %vm2878, %v2871, %v2875
        %v2880 = vand.u32 2147483647, %v2867
        %vm2881 = vcmp.eq.f32.partialorder %v2880, 8.507059e+37
        %v2882 = vand.u32 %v2867, 2147483648
        %v2883 = vor.u32 1.1754944e-38, %v2882
        %v2884 = vsel %vm2881, %v2883, %v2879
        %v2885 = vmul.f32 %v2862, %v2884
        %v2886 = vrcp.pop %v2870
        %v2887 = vmul.f32 %v2870, %v2886
        %v2888 = vsub.f32 1.0, %v2887
        %v2889 = vmul.f32 %v2886, %v2888
        %v2890 = vadd.f32 %v2886, %v2889
        %vm2891 = vweird.f32 %v2870
        %vm2892 = vweird.f32 %v2886
        %vm2893 = vmor %vm2891, %vm2892
        %v2894 = vsel %vm2893, %v2886, %v2890
        %v2895 = vand.u32 2147483647, %v2870
        %vm2896 = vcmp.eq.f32.partialorder %v2895, 8.507059e+37
        %v2897 = vand.u32 %v2870, 2147483648
        %v2898 = vor.u32 1.1754944e-38, %v2897
        %v2899 = vsel %vm2896, %v2898, %v2894
        %v2900 = vmul.f32 %v2864, %v2899
        %v2901 = vpack.c.bf16 %v2885, %v2885
        %v2902 = vpack.c.bf16 %v2900, %v2900
        %v2905 = vunpack.c.l.b16 %v2901
        %v2906 = vunpack.c.l.b16 %v2902
        %v2907 = vpack.c.b16 %v2906, %v2905
        %v2909 = vsel %vm2852, %v2907, 0
        %vm2911 = vcmask 1043456
        %v2913 = vsel %vm2911, %v2826, 0
        %2915 = vmatpush.bf16.msra.mxu0 0
        %2916 = vmatpush.bf16.msra.mxu0 0
        %2917 = vmatpush.bf16.msra.mxu0 0
        %2918 = vmatpush.bf16.msra.mxu0 0
        %2919 = vmatpush.bf16.msra.mxu0 0
        %2920 = vmatpush.bf16.msra.mxu0 0
        %2921 = vmatpush.bf16.msra.mxu0 0
        %2922 = vmatpush.bf16.msra.mxu0 %v2913
        %2923 = vmatmul.bf16.gmra.mxu0 %v2909
        %v2924 = vpop.f32.mrf.mxu0
        %v2925 = vadd.f32 0.0, %v2924
        %v2926 = vpop.f32.mrf.mxu0
        %v2927 = vadd.f32 0.0, %v2926
        %2928 = vdwg.mxu0
        %2929 = vst.msk [vmem:[%s666] sm:$0xff] %vm2416, %v2925
        %2930 = vst.msk [vmem:[%s666 + $0x8] sm:$0xff] %vm2416, %v2927
        %2931 = vst.msk [vmem:[%s696] sm:$0xff] %vm2852, %v2885
        %2932 = vst.msk [vmem:[%s696 + $0x8] sm:$0xff] %vm2852, %v2900
        %v2933 = vpack.c.bf16 %v2927, %v2925
        %v2934 = vld [vmem:[%s15] sm:$0xf]
        %v2935 = vld [vmem:[%s15 + $0x4] sm:$0xf]
        %v2936 = vld [vmem:[%s15 + $0x8] sm:$0xf]
        %v2937 = vld [vmem:[%s15 + $0xc] sm:$0xf]
        %v2938 = vld [vmem:[%s16] sm:$0x1]
        %v2940 = vperm.slane %v2938, 0
        %v2946 = vunpack.c.l.b16 %v2934
        %v2947 = vunpack.c.l.b16 %v2935
        %v2948 = vunpack.c.l.b16 %v2936
        %v2949 = vunpack.c.l.b16 %v2937
        %v2950 = vpack.c.b16 %v2947, %v2946
        %v2951 = vpack.c.b16 %v2949, %v2948
        %v2955 = vsel %vm2416, %v2933, 0
        %2957 = vmatpush.bf16.msra.mxu0 0
        %2958 = vmatpush.bf16.msra.mxu0 0
        %2959 = vmatpush.bf16.msra.mxu0 0
        %2960 = vmatpush.bf16.msra.mxu0 0
        %2961 = vmatpush.bf16.msra.mxu0 0
        %2962 = vmatpush.bf16.msra.mxu0 0
        %2963 = vmatpush.bf16.msra.mxu0 %v2951
        %2964 = vmatpush.bf16.msra.mxu0 %v2950
        %2965 = vmatmul.bf16.gmra.mxu0 %v2955
        %v2966 = vpop.f32.mrf.mxu0
        %v2967 = vadd.f32 %v2940, %v2966
        %v2968 = vpop.f32.mrf.mxu0
        %v2969 = vadd.f32 %v2940, %v2968
        %2970 = vdwg.mxu0
        %vm2971 = vcmask 31744
        %2972 = vst.msk [vmem:[%s691] sm:$0xff] %vm2971, %v2967
        %2973 = vst.msk [vmem:[%s691 + $0x8] sm:$0xff] %vm2971, %v2969
        %p2974 = scmp.lt.s32.totalorder %s38, 1
        %s2975 = scalar_select %p2974, %s38, 1
        %s2976 = smul.addr %s2975, 2
        %s2977 = smul.addr %s2976, 8
        %s2978 = scalar_lea.vmem %s17, %s2977
        %s2979 = sand.u32 %s444, 1
        %s2980 = scalar_lea.sflag [#allocation3], %s2979
        %s2981 = sand.u32 %s444, 1
        %s2982 = smul.addr %s2981, 8
        %s2983 = scalar_lea.vmem [#allocation2], %s2982
        %s2984 = sand.u32 %s470, 1
        %s2985 = scalar_lea.sflag [#allocation5], %s2984
        %s2986 = sand.u32 %s470, 1
        %s2987 = smul.addr %s2986, 16
        %s2988 = scalar_lea.vmem [#allocation4], %s2987
        %p2989 = scmp.lt.s32.totalorder %s38, 1
        %s2990 = scalar_select %p2989, %s38, 1
        %s2991 = smul.addr %s2990, 2
        %s2992 = smul.addr %s2991, 8
        %s2993 = scalar_lea.vmem %s20, %s2992
        // Predicated region
        $region89: #{ipot_forward.1} parent=87 // pred_check
          %p2994 = pneg %p428
        $region90: #{ipot_forward.1} parent=87 // pred_check_branch
          %2996 = sbr.rel (%p2994) target = $region92
        $region91: #{ipot_forward.1} parent=87 // pred_region
          _
        $region92: #{ipot_forward.1} parent=87 // pred_fallthru
          _
        // Predicated region
        $region93: #{ipot_forward.1} parent=87 // pred_check
          %p2997 = pneg %p454
        $region94: #{ipot_forward.1} parent=87 // pred_check_branch
          %2999 = sbr.rel (%p2997) target = $region96
        $region95: #{ipot_forward.1} parent=87 // pred_region
          %3001 = vsyncadd %s2980, 0
          %s3002 = smul.addr %s38, 8
          %s3003 = scalar_lea.hbm %s18, %s3002
          %s3005 = sshll.u32 %s2983, 4
          %s3006 = int_to_ptr.vmem [resolvable:$true] %s3005
          %s3007 = sshll.u32 %s3003, 4
          %s3008 = int_to_ptr.hbm [resolvable:$true] %s3007
          %3010 = dma.vmem_to_hbm [thread:$0]  %s3006, 128, %s3008, %s2980
        $region96: #{ipot_forward.1} parent=87 // pred_fallthru
          _
        // Predicated region
        $region97: #{ipot_forward.1} parent=87 // pred_check
          %p3011 = pneg %p480
        $region98: #{ipot_forward.1} parent=87 // pred_check_branch
          %3013 = sbr.rel (%p3011) target = $region100
        $region99: #{ipot_forward.1} parent=87 // pred_region
          %3015 = vsyncadd %s2985, 0
          %s3016 = smul.addr %s38, 2
          %s3017 = smul.addr %s3016, 8
          %s3018 = scalar_lea.hbm %s19, %s3017
          %s3019 = sshll.u32 %s2988, 4
          %s3020 = int_to_ptr.vmem [resolvable:$true] %s3019
          %s3021 = sshll.u32 %s3018, 4
          %s3022 = int_to_ptr.hbm [resolvable:$true] %s3021
          %3027 = dma.vmem_to_hbm [thread:$0]  %s3020, 256, %s3022, %s2985, 128, 128, 8
        $region100: #{ipot_forward.1} parent=87 // pred_fallthru
          _
        // Predicated region
        $region101: #{ipot_forward.1} parent=87 // pred_check
          %p3028 = pneg %p506
        $region102: #{ipot_forward.1} parent=87 // pred_check_branch
          %3030 = sbr.rel (%p3028) target = $region104
        $region103: #{ipot_forward.1} parent=87 // pred_region
          _
        $region104: #{ipot_forward.1} parent=87 // pred_fallthru
          _
      $region88: #{ipot_forward.1} parent=5 // pred_fallthru
        _
      %p3031 = scmp.le.s32.totalorder 2, %s33
      // Predicated region
      $region105: #{ipot_forward.1} parent=5 // pred_check
        %p3032 = pneg %p3031
      $region106: #{ipot_forward.1} parent=5 // pred_check_branch
        %3034 = sbr.rel (%p3032) target = $region108
      $region107: #{ipot_forward.1} parent=5 // pred_region
        %s3035 = ssub.s32 %s33, 2
        // Predicated region
        $region109: #{ipot_forward.1} parent=107 // pred_check
          %p3036 = pneg %p434
        $region110: #{ipot_forward.1} parent=107 // pred_check_branch
          %3038 = sbr.rel (%p3036) target = $region112
        $region111: #{ipot_forward.1} parent=107 // pred_region
          %p3039 = scmp.lt.s32.totalorder %s39, 1
          %s3040 = scalar_select %p3039, %s39, 1
          %s3041 = smul.addr %s3040, 2
          %s3042 = smul.addr %s3041, 8
          %s3043 = scalar_lea.vmem %s17, %s3042
        $region112: #{ipot_forward.1} parent=107 // pred_fallthru
          _
        // Predicated region
        $region113: #{ipot_forward.1} parent=107 // pred_check
          %p3044 = pneg %p460
        $region114: #{ipot_forward.1} parent=107 // pred_check_branch
          %3046 = sbr.rel (%p3044) target = $region116
        $region115: #{ipot_forward.1} parent=107 // pred_region
          %s3047 = sand.u32 %s445, 1
          %s3048 = scalar_lea.sflag [#allocation3], %s3047
          %s3049 = sand.u32 %s445, 1
          %s3050 = smul.addr %s3049, 8
          %s3051 = scalar_lea.vmem [#allocation2], %s3050
          %3053 = dma.done %s3048, 128
        $region116: #{ipot_forward.1} parent=107 // pred_fallthru
          _
        // Predicated region
        $region117: #{ipot_forward.1} parent=107 // pred_check
          %p3054 = pneg %p486
        $region118: #{ipot_forward.1} parent=107 // pred_check_branch
          %3056 = sbr.rel (%p3054) target = $region120
        $region119: #{ipot_forward.1} parent=107 // pred_region
          %s3057 = sand.u32 %s471, 1
          %s3058 = scalar_lea.sflag [#allocation5], %s3057
          %s3059 = sand.u32 %s471, 1
          %s3060 = smul.addr %s3059, 16
          %s3061 = scalar_lea.vmem [#allocation4], %s3060
          %3063 = dma.done %s3058, 256
        $region120: #{ipot_forward.1} parent=107 // pred_fallthru
          _
        // Predicated region
        $region121: #{ipot_forward.1} parent=107 // pred_check
          %p3064 = pneg %p512
        $region122: #{ipot_forward.1} parent=107 // pred_check_branch
          %3066 = sbr.rel (%p3064) target = $region124
        $region123: #{ipot_forward.1} parent=107 // pred_region
          %p3067 = scmp.lt.s32.totalorder %s39, 1
          %s3068 = scalar_select %p3067, %s39, 1
          %s3069 = smul.addr %s3068, 2
          %s3070 = smul.addr %s3069, 8
          %s3071 = scalar_lea.vmem %s20, %s3070
        $region124: #{ipot_forward.1} parent=107 // pred_fallthru
          _
      $region108: #{ipot_forward.1} parent=5 // pred_fallthru
        _
    $region6: #{ipot_forward.1} parent=1 // loop_footer
      %s37 = sadd.s32 1, %s33
    $region7: #{ipot_forward.1} parent=1 // loop_footer_branch
      %32 = sbr.rel target = $region3
    $region8: #{ipot_forward.1} parent=1 // loop_exit
      _
    %3072 = vsyncpa [#allocation3], 1
    %s3073 = scalar_lea.sflag [#allocation3], 1
    %3074 = vsyncpa %s3073, 1
    %3075 = vsyncpa [#allocation5], 1
    %s3076 = scalar_lea.sflag [#allocation5], 1
    %3077 = vsyncpa %s3076, 1

</llo_original>
